<compile_context>
chip_gen: v6e
topology: v6e:2x2x1
jax: 0.10.0
libtpu: 0.0.40
codegen_flags: <defaults>
</compile_context>

<pallas_src>
import functools

import jax
import jax.numpy as jnp
from jax.experimental import pallas as pl
from jax.experimental.pallas import tpu as pltpu


_PRECISION = jax.lax.Precision.HIGHEST


def _dot(a, b):
    return jnp.dot(a, b, preferred_element_type=jnp.float32, precision=_PRECISION)


# ---------------------------------------------------------------------------
# Shared math (values, not refs).
# ---------------------------------------------------------------------------
def _gru_step(y, h, w_gx, w_gh, b_gru, hidden_size):
    """One GRUCell step.  Columns of w_g* are [r | z | gx_n | gh_n]."""
    H = hidden_size
    g = _dot(y, w_gx) + _dot(h, w_gh) + b_gru          # [B, 4H] lane-dense (4H=128)
    r = jax.nn.sigmoid(g[:, 0:H])
    z = jax.nn.sigmoid(g[:, H:2 * H])
    n = jnp.tanh(g[:, 2 * H:3 * H] + r * g[:, 3 * H:4 * H])
    return (1.0 - z) * n + z * h


def _heads(hb, w_h0, b_h0, w_h1, b_h1, w_h2, b_h2):
    """Fused temphr+class heads on a batch of hidden rows [R, H] -> [R, out_pad].

    Layer0 is the lane-concat of the two heads' first layers, layers 1/2 are
    block-diagonal, so layer 2 emits [temphr | class | 0-pad] directly
    (torch.cat eliminated, store is 128-lane dense)."""
    a = jnp.maximum(_dot(hb, w_h0) + b_h0, 0.0)
    a = jnp.maximum(_dot(a, w_h1) + b_h1, 0.0)
    return _dot(a, w_h2) + b_h2


# ---------------------------------------------------------------------------
# Single-step kernel (matches DecoderCell.forward exactly).
# ---------------------------------------------------------------------------
def decoder_cell_kernel(y_ref, h_ref,
                        w_gx_ref, w_gh_ref, b_gru_ref,
                        w_h0_ref, b_h0_ref, w_h1_ref, b_h1_ref,
                        w_h2_ref, b_h2_ref,
                        out_ref, hid_ref,
                        *, hidden_size):
    h_new = _gru_step(y_ref[...], h_ref[...],
                      w_gx_ref[...], w_gh_ref[...], b_gru_ref[...],
                      hidden_size)
    hid_ref[...] = h_new                                  # dropout == identity (eval)
    out_ref[...] = _heads(h_new,
                          w_h0_ref[...], b_h0_ref[...],
                          w_h1_ref[...], b_h1_ref[...],
                          w_h2_ref[...], b_h2_ref[...])   # [B, out_pad] lane-dense


def decoder_cell(y, prev_hidden, fused, *, hidden_size, output_size):
    """Single step.  NOTE: for decode loops use decoder_cell_sequence — this
    path re-DMAs the (small) weights on every call."""
    B = y.shape[0]
    out_pad = fused["w_h2"].shape[1]
    vmem = pl.BlockSpec(memory_space=pltpu.MemorySpace.VMEM)
    args = (y, prev_hidden,
            fused["w_gx"], fused["w_gh"], fused["b_gru"],
            fused["w_h0"], fused["b_h0"], fused["w_h1"], fused["b_h1"],
            fused["w_h2"], fused["b_h2"])
    kernel = functools.partial(decoder_cell_kernel, hidden_size=hidden_size)
    out_p, new_hidden = pl.pallas_call(
        kernel,
        out_shape=(
            jax.ShapeDtypeStruct((B, out_pad), jnp.float32),
            jax.ShapeDtypeStruct((B, hidden_size), jnp.float32),
        ),
        in_specs=[vmem] * len(args),
        out_specs=(vmem, vmem),
    )(*args)
    return out_p[:, :output_size], new_hidden


# ---------------------------------------------------------------------------
# Sequence kernel: whole decode loop in one pallas_call.
#   grid=(T//Tb,): each grid step runs Tb recurrent GRU steps (h carried in
#   vregs, chunk-to-chunk via a [B,H] VMEM scratch) and then one batched,
#   lane-dense head pass over the chunk's Tb*B hidden rows.
# ---------------------------------------------------------------------------
def decoder_seq_kernel(y_ref, h0_ref,
                       w_gx_ref, w_gh_ref, b_gru_ref,
                       w_h0_ref, b_h0_ref, w_h1_ref, b_h1_ref,
                       w_h2_ref, b_h2_ref,
                       out_ref, hfin_ref,
                       h_carry_ref,
                       *, hidden_size, time_block):
    H = hidden_size
    Tb = time_block
    B = y_ref.shape[1]

    @pl.when(pl.program_id(0) == 0)
    def _():
        h_carry_ref[...] = h0_ref[...]

    # Hoist weight/bias loads above the unrolled step loop.
    w_gx = w_gx_ref[...]
    w_gh = w_gh_ref[...]
    b_gru = b_gru_ref[...]

    y = y_ref[...]                       # [Tb, B, F] — a couple of vregs
    h = h_carry_ref[...]                 # [B, H]

    hs = []
    for s in range(Tb):                  # static unroll; h stays in vregs
        h = _gru_step(y[s], h, w_gx, w_gh, b_gru, H)
        hs.append(h)

    h_carry_ref[...] = h                 # carry to next chunk (once per Tb steps)

    @pl.when(pl.program_id(0) == pl.num_programs(0) - 1)
    def _():
        hfin_ref[...] = h                # final hidden written once

    # Batched heads over the whole chunk: Tb*B rows, 256/128/128-lane dots.
    hb = jnp.concatenate(hs, axis=0)     # [Tb*B, H]
    o = _heads(hb,
               w_h0_ref[...], b_h0_ref[...],
               w_h1_ref[...], b_h1_ref[...],
               w_h2_ref[...], b_h2_ref[...])
    out_ref[...] = o.reshape(Tb, B, -1)  # [Tb, B, out_pad] lane-dense store


def _pick_time_block(T, max_tb=8):
    for tb in range(min(T, max_tb), 0, -1):
        if T % tb == 0:
            return tb
    return 1


def decoder_cell_sequence(y_seq, h0, fused, *, hidden_size, output_size,
                          time_block=None):
    T, B, F = y_seq.shape
    H = hidden_size
    out_pad = fused["w_h2"].shape[1]
    Tb = _pick_time_block(T) if time_block is None else time_block
    assert T % Tb == 0

    def resident(arr):
        nd = arr.ndim
        return pl.BlockSpec(arr.shape, lambda c, _nd=nd: (0,) * _nd)

    grid_spec = pltpu.PrefetchScalarGridSpec(
        num_scalar_prefetch=0,
        grid=(T // Tb,),
        in_specs=[
            pl.BlockSpec((Tb, B, F), lambda c: (c, 0, 0)),   # y chunk
            resident(h0),
            resident(fused["w_gx"]), resident(fused["w_gh"]), resident(fused["b_gru"]),
            resident(fused["w_h0"]), resident(fused["b_h0"]),
            resident(fused["w_h1"]), resident(fused["b_h1"]),
            resident(fused["w_h2"]), resident(fused["b_h2"]),
        ],
        out_specs=(
            pl.BlockSpec((Tb, B, out_pad), lambda c: (c, 0, 0)),
            pl.BlockSpec((B, H), lambda c: (0, 0)),
        ),
        scratch_shapes=[pltpu.VMEM((B, H), jnp.float32)],    # chunk-to-chunk hidden
    )
    kernel = functools.partial(decoder_seq_kernel, hidden_size=H, time_block=Tb)
    out_p, h_final = pl.pallas_call(
        kernel,
        out_shape=(
            jax.ShapeDtypeStruct((T, B, out_pad), jnp.float32),
            jax.ShapeDtypeStruct((B, H), jnp.float32),
        ),
        grid_spec=grid_spec,
        compiler_params=pltpu.CompilerParams(
            dimension_semantics=("arbitrary",)),             # sequential recurrence
    )(y_seq, h0,
      fused["w_gx"], fused["w_gh"], fused["b_gru"],
      fused["w_h0"], fused["b_h0"], fused["w_h1"], fused["b_h1"],
      fused["w_h2"], fused["b_h2"])
    return out_p[..., :output_size], h_final


# ---------------------------------------------------------------------------
# Parameter construction.
# ---------------------------------------------------------------------------
def init_params(key, input_feature_len, hidden_size, output_size, bins_len,
                temphr_units, class_units):
    """Deterministic synthetic params (shapes match the torch module).
    Weights are stored transposed relative to nn.Linear: [in, out].
    GRU gate column order = [r | z | n] (torch convention)."""
    keys = jax.random.split(key, 20)
    k = iter(keys)

    def lin(kk, fan_in, fan_out):
        return jax.random.normal(kk, (fan_in, fan_out), jnp.float32) * (1.0 / jnp.sqrt(fan_in))

    H, F = hidden_size, input_feature_len
    params = {
        "w_ih": lin(next(k), F, 3 * H),
        "w_hh": lin(next(k), H, 3 * H),
        "b_ih": jax.random.normal(next(k), (1, 3 * H), jnp.float32) * 0.01,
        "b_hh": jax.random.normal(next(k), (1, 3 * H), jnp.float32) * 0.01,
    }
    t_dims = [H, temphr_units[0], temphr_units[1], output_size - bins_len]
    for i in range(3):
        params[f"wt{i}"] = lin(next(k), t_dims[i], t_dims[i + 1])
        params[f"bt{i}"] = jax.random.normal(next(k), (1, t_dims[i + 1]), jnp.float32) * 0.01
    c_dims = [H, class_units[0], class_units[1], bins_len]
    for i in range(3):
        params[f"wc{i}"] = lin(next(k), c_dims[i], c_dims[i + 1])
        params[f"bc{i}"] = jax.random.normal(next(k), (1, c_dims[i + 1]), jnp.float32) * 0.01
    return params


def fuse_params(p, *, input_feature_len, hidden_size, output_size, bins_len,
                temphr_units, class_units, out_pad=128):
    """Build the fused / stacked weights consumed by the kernels (done once)."""
    F, H = input_feature_len, hidden_size
    T0, T1 = temphr_units
    C0, C1 = class_units
    t_out = output_size - bins_len
    assert out_pad % 128 == 0 and out_pad >= output_size

    w_ih, w_hh = p["w_ih"], p["w_hh"]          # [F,3H], [H,3H]
    b_ih, b_hh = p["b_ih"], p["b_hh"]          # [1,3H]

    # GRU split weights, columns [ r | z | gx_n | gh_n ] (4H = 128 lanes).
    w_gx = jnp.zeros((F, 4 * H), jnp.float32)
    w_gx = w_gx.at[:, 0:H].set(w_ih[:, 0:H])                 # W_ir
    w_gx = w_gx.at[:, H:2 * H].set(w_ih[:, H:2 * H])         # W_iz
    w_gx = w_gx.at[:, 2 * H:3 * H].set(w_ih[:, 2 * H:3 * H])  # W_in

    w_gh = jnp.zeros((H, 4 * H), jnp.float32)
    w_gh = w_gh.at[:, 0:H].set(w_hh[:, 0:H])                 # W_hr
    w_gh = w_gh.at[:, H:2 * H].set(w_hh[:, H:2 * H])         # W_hz
    w_gh = w_gh.at[:, 3 * H:4 * H].set(w_hh[:, 2 * H:3 * H])  # W_hn

    b_gru = jnp.concatenate([
        b_ih[:, 0:H] + b_hh[:, 0:H],                 # b_ir + b_hr
        b_ih[:, H:2 * H] + b_hh[:, H:2 * H],         # b_iz + b_hz
        b_ih[:, 2 * H:3 * H],                        # b_in  (gx_n columns)
        b_hh[:, 2 * H:3 * H],                        # b_hn  (gh_n columns, scaled by r)
    ], axis=-1)

    # Heads: layer0 lane-concat, layers 1/2 block-diagonal, layer2 lane-padded.
    w_h0 = jnp.concatenate([p["wt0"], p["wc0"]], axis=1)     # [H, T0+C0]
    b_h0 = jnp.concatenate([p["bt0"], p["bc0"]], axis=1)

    w_h1 = jnp.zeros((T0 + C0, T1 + C1), jnp.float32)
    w_h1 = w_h1.at[:T0, :T1].set(p["wt1"])
    w_h1 = w_h1.at[T0:, T1:].set(p["wc1"])
    b_h1 = jnp.concatenate([p["bt1"], p["bc1"]], axis=1)

    w_h2 = jnp.zeros((T1 + C1, out_pad), jnp.float32)
    w_h2 = w_h2.at[:T1, :t_out].set(p["wt2"])
    w_h2 = w_h2.at[T1:, t_out:output_size].set(p["wc2"])
    b_h2 = jnp.zeros((1, out_pad), jnp.float32)
    b_h2 = b_h2.at[:, :t_out].set(p["bt2"])
    b_h2 = b_h2.at[:, t_out:output_size].set(p["bc2"])

    return dict(w_gx=w_gx, w_gh=w_gh, b_gru=b_gru,
                w_h0=w_h0, b_h0=b_h0, w_h1=w_h1, b_h1=b_h1,
                w_h2=w_h2, b_h2=b_h2)


# ---------------------------------------------------------------------------
# Pure-JAX reference (torch eval-mode forward), UNFUSED params, same precision.
# ---------------------------------------------------------------------------
def reference_forward(y, h, params, hidden_size):
    H = hidden_size
    gx = _dot(y, params["w_ih"]) + params["b_ih"]
    gh = _dot(h, params["w_hh"]) + params["b_hh"]
    r = jax.nn.sigmoid(gx[:, :H] + gh[:, :H])
    z = jax.nn.sigmoid(gx[:, H:2 * H] + gh[:, H:2 * H])
    n = jnp.tanh(gx[:, 2 * H:] + r * gh[:, 2 * H:])
    hid = (1.0 - z) * n + z * h

    t = jnp.maximum(_dot(hid, params["wt0"]) + params["bt0"], 0.0)
    t = jnp.maximum(_dot(t, params["wt1"]) + params["bt1"], 0.0)
    t = _dot(t, params["wt2"]) + params["bt2"]

    c = jnp.maximum(_dot(hid, params["wc0"]) + params["bc0"], 0.0)
    c = jnp.maximum(_dot(c, params["wc1"]) + params["bc1"], 0.0)
    c = _dot(c, params["wc2"]) + params["bc2"]
    return jnp.concatenate([t, c], axis=-1), hid


def reference_sequence(y_seq, h0, params, hidden_size):
    outs, h = [], h0
    for t in range(y_seq.shape[0]):
        o, h = reference_forward(y_seq[t], h, params, hidden_size)
        outs.append(o)
    return jnp.stack(outs, axis=0), h


if __name__ == "__main__":
    batch = 8
    input_feature_len = 32
    hidden_size = 32
    bins_len = 8
    output_size = 24                      # temphr emits output_size - bins_len = 16
    temphr_units = (128, 64)              # trial.suggest_int(..., 50, 250) -> fixed
    class_units = (128, 64)
    seq_len = 12

    key = jax.random.PRNGKey(0)
    k_y, k_h, k_p, k_s = jax.random.split(key, 4)
    y = jax.random.normal(k_y, (batch, input_feature_len), jnp.float32)
    prev_hidden = jax.random.normal(k_h, (batch, hidden_size), jnp.float32)
    params = init_params(k_p, input_feature_len, hidden_size, output_size,
                         bins_len, temphr_units, class_units)
    fused = fuse_params(params,
                        input_feature_len=input_feature_len,
                        hidden_size=hidden_size, output_size=output_size,
                        bins_len=bins_len, temphr_units=temphr_units,
                        class_units=class_units)

    # --- single-step cell (matches DecoderCell.forward) ---------------------
    out, new_hidden = decoder_cell(y, prev_hidden, fused,
                                   hidden_size=hidden_size,
                                   output_size=output_size)
    jax.block_until_ready((out, new_hidden))

    ref_out, ref_hid = reference_forward(y, prev_hidden, params, hidden_size)
    assert out.shape == (batch, output_size)
    assert new_hidden.shape == (batch, hidden_size)
    assert jnp.allclose(out, ref_out, atol=5e-5, rtol=5e-5)
    assert jnp.allclose(new_hidden, ref_hid, atol=5e-5, rtol=5e-5)

    # --- fused decode loop: one pallas_call for the whole sequence ----------
    y_seq = jax.random.normal(k_s, (seq_len, batch, input_feature_len), jnp.float32)
    out_seq, h_final = decoder_cell_sequence(y_seq, prev_hidden, fused,
                                             hidden_size=hidden_size,
                                             output_size=output_size)
    jax.block_until_ready((out_seq, h_final))

    ref_seq, ref_hfin = reference_sequence(y_seq, prev_hidden, params, hidden_size)
    assert out_seq.shape == (seq_len, batch, output_size)
    assert h_final.shape == (batch, hidden_size)
    assert jnp.allclose(out_seq, ref_seq, atol=1e-4, rtol=1e-4)
    assert jnp.allclose(h_final, ref_hfin, atol=1e-4, rtol=1e-4)

    print("KERNEL_OK")
</pallas_src>

<mosaic_0001>
module attributes {stable_mosaic.version = 11 : i64} {
  func.func @decoder_cell_kernel(%arg0: memref<8x32xf32, #tpu.memory_space<vmem>>, %arg1: memref<8x32xf32, #tpu.memory_space<vmem>>, %arg2: memref<32x128xf32, #tpu.memory_space<vmem>>, %arg3: memref<32x128xf32, #tpu.memory_space<vmem>>, %arg4: memref<1x128xf32, #tpu.memory_space<vmem>>, %arg5: memref<32x256xf32, #tpu.memory_space<vmem>>, %arg6: memref<1x256xf32, #tpu.memory_space<vmem>>, %arg7: memref<256x128xf32, #tpu.memory_space<vmem>>, %arg8: memref<1x128xf32, #tpu.memory_space<vmem>>, %arg9: memref<128x128xf32, #tpu.memory_space<vmem>>, %arg10: memref<1x128xf32, #tpu.memory_space<vmem>>, %arg11: memref<8x128xf32, #tpu.memory_space<vmem>>, %arg12: memref<8x32xf32, #tpu.memory_space<vmem>>) attributes {dimension_semantics = [], scalar_prefetch = 0 : i64, scratch_operands = 0 : i64, tpu.core_type = #tpu.core_type<tc>} {
    %c0 = arith.constant 0 : index
    %c0_0 = arith.constant 0 : index
    %0 = vector.load %arg0[%c0, %c0_0] : memref<8x32xf32, #tpu.memory_space<vmem>>, vector<8x32xf32>
    %c0_1 = arith.constant 0 : index
    %c0_2 = arith.constant 0 : index
    %1 = vector.load %arg1[%c0_1, %c0_2] : memref<8x32xf32, #tpu.memory_space<vmem>>, vector<8x32xf32>
    %c0_3 = arith.constant 0 : index
    %c0_4 = arith.constant 0 : index
    %2 = vector.load %arg2[%c0_3, %c0_4] : memref<32x128xf32, #tpu.memory_space<vmem>>, vector<32x128xf32>
    %c0_5 = arith.constant 0 : index
    %c0_6 = arith.constant 0 : index
    %3 = vector.load %arg3[%c0_5, %c0_6] : memref<32x128xf32, #tpu.memory_space<vmem>>, vector<32x128xf32>
    %c0_7 = arith.constant 0 : index
    %c0_8 = arith.constant 0 : index
    %4 = vector.load %arg4[%c0_7, %c0_8] : memref<1x128xf32, #tpu.memory_space<vmem>>, vector<1x128xf32>
    %cst = arith.constant dense<0.000000e+00> : vector<8x128xf32>
    %5 = tpu.matmul %0, %2, %cst {dimension_numbers = #tpu.dot_dimension_numbers<[1], [0], [0], [1], [0, 0, 1, 1], [], []>, precision = #tpu.contract_precision<fp32>} : vector<8x32xf32>, vector<32x128xf32>, vector<8x128xf32> -> vector<8x128xf32>
    %cst_9 = arith.constant dense<0.000000e+00> : vector<8x128xf32>
    %6 = tpu.matmul %1, %3, %cst_9 {dimension_numbers = #tpu.dot_dimension_numbers<[1], [0], [0], [1], [0, 0, 1, 1], [], []>, precision = #tpu.contract_precision<fp32>} : vector<8x32xf32>, vector<32x128xf32>, vector<8x128xf32> -> vector<8x128xf32>
    %7 = arith.addf %5, %6 : vector<8x128xf32>
    %8 = vector.broadcast %4 : vector<1x128xf32> to vector<8x128xf32>
    %9 = arith.addf %7, %8 : vector<8x128xf32>
    %10 = vector.extract_strided_slice %9 {offsets = [0, 0], sizes = [8, 32], strides = [1, 1]} : vector<8x128xf32> to vector<8x32xf32>
    %11 = arith.negf %10 : vector<8x32xf32>
    %12 = math.exp %11 : vector<8x32xf32>
    %cst_10 = arith.constant 1.000000e+00 : f32
    %13 = vector.broadcast %cst_10 : f32 to vector<8x32xf32>
    %14 = arith.addf %13, %12 : vector<8x32xf32>
    %15 = arith.divf %13, %14 : vector<8x32xf32>
    %16 = vector.extract_strided_slice %9 {offsets = [0, 32], sizes = [8, 32], strides = [1, 1]} : vector<8x128xf32> to vector<8x32xf32>
    %17 = arith.negf %16 : vector<8x32xf32>
    %18 = math.exp %17 : vector<8x32xf32>
    %cst_11 = arith.constant 1.000000e+00 : f32
    %19 = vector.broadcast %cst_11 : f32 to vector<8x32xf32>
    %20 = arith.addf %19, %18 : vector<8x32xf32>
    %21 = arith.divf %19, %20 : vector<8x32xf32>
    %22 = vector.extract_strided_slice %9 {offsets = [0, 64], sizes = [8, 32], strides = [1, 1]} : vector<8x128xf32> to vector<8x32xf32>
    %23 = vector.extract_strided_slice %9 {offsets = [0, 96], sizes = [8, 32], strides = [1, 1]} : vector<8x128xf32> to vector<8x32xf32>
    %24 = arith.mulf %15, %23 : vector<8x32xf32>
    %25 = arith.addf %22, %24 : vector<8x32xf32>
    %26 = math.tanh %25 : vector<8x32xf32>
    %cst_12 = arith.constant 1.000000e+00 : f32
    %27 = vector.broadcast %cst_12 : f32 to vector<8x32xf32>
    %28 = arith.subf %27, %21 : vector<8x32xf32>
    %29 = arith.mulf %28, %26 : vector<8x32xf32>
    %30 = arith.mulf %21, %1 : vector<8x32xf32>
    %31 = arith.addf %29, %30 : vector<8x32xf32>
    %c0_13 = arith.constant 0 : index
    %c0_14 = arith.constant 0 : index
    %32 = vector.load %arg12[%c0_13, %c0_14] : memref<8x32xf32, #tpu.memory_space<vmem>>, vector<8x32xf32>
    tpu.vector_store %arg12[%c0_13, %c0_14], %31 {strides = array<i32>} : memref<8x32xf32, #tpu.memory_space<vmem>>, vector<8x32xf32>,
    %c0_15 = arith.constant 0 : index
    %c0_16 = arith.constant 0 : index
    %33 = vector.load %arg5[%c0_15, %c0_16] : memref<32x256xf32, #tpu.memory_space<vmem>>, vector<32x256xf32>
    %c0_17 = arith.constant 0 : index
    %c0_18 = arith.constant 0 : index
    %34 = vector.load %arg6[%c0_17, %c0_18] : memref<1x256xf32, #tpu.memory_space<vmem>>, vector<1x256xf32>
    %c0_19 = arith.constant 0 : index
    %c0_20 = arith.constant 0 : index
    %35 = vector.load %arg7[%c0_19, %c0_20] : memref<256x128xf32, #tpu.memory_space<vmem>>, vector<256x128xf32>
    %c0_21 = arith.constant 0 : index
    %c0_22 = arith.constant 0 : index
    %36 = vector.load %arg8[%c0_21, %c0_22] : memref<1x128xf32, #tpu.memory_space<vmem>>, vector<1x128xf32>
    %c0_23 = arith.constant 0 : index
    %c0_24 = arith.constant 0 : index
    %37 = vector.load %arg9[%c0_23, %c0_24] : memref<128x128xf32, #tpu.memory_space<vmem>>, vector<128x128xf32>
    %c0_25 = arith.constant 0 : index
    %c0_26 = arith.constant 0 : index
    %38 = vector.load %arg10[%c0_25, %c0_26] : memref<1x128xf32, #tpu.memory_space<vmem>>, vector<1x128xf32>
    %cst_27 = arith.constant dense<0.000000e+00> : vector<8x256xf32>
    %39 = tpu.matmul %31, %33, %cst_27 {dimension_numbers = #tpu.dot_dimension_numbers<[1], [0], [0], [1], [0, 0, 1, 1], [], []>, precision = #tpu.contract_precision<fp32>} : vector<8x32xf32>, vector<32x256xf32>, vector<8x256xf32> -> vector<8x256xf32>
    %40 = vector.broadcast %34 : vector<1x256xf32> to vector<8x256xf32>
    %41 = arith.addf %39, %40 : vector<8x256xf32>
    %cst_28 = arith.constant 0.000000e+00 : f32
    %42 = vector.broadcast %cst_28 : f32 to vector<8x256xf32>
    %43 = arith.maximumf %41, %42 : vector<8x256xf32>
    %cst_29 = arith.constant dense<0.000000e+00> : vector<8x128xf32>
    %44 = tpu.matmul %43, %35, %cst_29 {dimension_numbers = #tpu.dot_dimension_numbers<[1], [0], [0], [1], [0, 0, 1, 1], [], []>, precision = #tpu.contract_precision<fp32>} : vector<8x256xf32>, vector<256x128xf32>, vector<8x128xf32> -> vector<8x128xf32>
    %45 = vector.broadcast %36 : vector<1x128xf32> to vector<8x128xf32>
    %46 = arith.addf %44, %45 : vector<8x128xf32>
    %cst_30 = arith.constant 0.000000e+00 : f32
    %47 = vector.broadcast %cst_30 : f32 to vector<8x128xf32>
    %48 = arith.maximumf %46, %47 : vector<8x128xf32>
    %cst_31 = arith.constant dense<0.000000e+00> : vector<8x128xf32>
    %49 = tpu.matmul %48, %37, %cst_31 {dimension_numbers = #tpu.dot_dimension_numbers<[1], [0], [0], [1], [0, 0, 1, 1], [], []>, precision = #tpu.contract_precision<fp32>} : vector<8x128xf32>, vector<128x128xf32>, vector<8x128xf32> -> vector<8x128xf32>
    %50 = vector.broadcast %38 : vector<1x128xf32> to vector<8x128xf32>
    %51 = arith.addf %49, %50 : vector<8x128xf32>
    %c0_32 = arith.constant 0 : index
    %c0_33 = arith.constant 0 : index
    %52 = vector.load %arg11[%c0_32, %c0_33] : memref<8x128xf32, #tpu.memory_space<vmem>>, vector<8x128xf32>
    tpu.vector_store %arg11[%c0_32, %c0_33], %51 {strides = array<i32>} : memref<8x128xf32, #tpu.memory_space<vmem>>, vector<8x128xf32>,
    return
  }
}

</mosaic_0001>

<llo_original>
// kernel: tpu_custom_call.1
$region0: #{tpu_custom_call.1}
  #allocation0 [shape = 'u32[]', space=smem, size = 0x4, offset = 0x4, fixed_abs, tag = 'smem constant byte address 0x4 - core index']
  #allocation1 [shape = 'u32[144,128]{1,0:T(1,128)}', space=vmem, size = 0x12000, scoped, tag = 'internal scratch']
  %s0 = inlined_call_operand.hbm [shape: f32[8,32], index: 0, kind: input, shape index: {}]
  %s1 = inlined_call_operand.hbm [shape: f32[8,32], index: 1, kind: input, shape index: {}]
  %s2 = inlined_call_operand.hbm [shape: f32[32,128], index: 2, kind: input, shape index: {}]
  %s3 = inlined_call_operand.hbm [shape: f32[32,128], index: 3, kind: input, shape index: {}]
  %s4 = inlined_call_operand.vmem [shape: f32[1,128], index: 4, kind: input, shape index: {}]
  %s5 = inlined_call_operand.hbm [shape: f32[32,256], index: 5, kind: input, shape index: {}]
  %s6 = inlined_call_operand.vmem [shape: f32[1,256], index: 6, kind: input, shape index: {}]
  %s7 = inlined_call_operand.hbm [shape: f32[256,128], index: 7, kind: input, shape index: {}]
  %s8 = inlined_call_operand.vmem [shape: f32[1,128], index: 8, kind: input, shape index: {}]
  %s9 = inlined_call_operand.hbm [shape: f32[128,128], index: 9, kind: input, shape index: {}]
  %s10 = inlined_call_operand.vmem [shape: f32[1,128], index: 10, kind: input, shape index: {}]
  %s11 = inlined_call_operand.hbm [shape: f32[8,128], index: 11, kind: output, shape index: {0}]
  %s12 = inlined_call_operand.hbm [shape: f32[8,32], index: 12, kind: output, shape index: {1}]
  %13 = xla_tuple %s11, %s12
  %s14 = sld [smem:[#allocation0]]
  $region90: #{tpu_custom_call.1} parent=0
    _
  %s16 = ssub.s32 1, %s14
  %s17 = scalar_select 0, %s16, %s14
  $region1: #{tpu_custom_call.1} parent=0
    #allocation2 [shape = 'u8[4096]{0}', space=vmem, size = 0x1000, scoped, tag = 'input window, operand 0, single buffered']
    #allocation3 [shape = 's32[1]{0}', space=sflag, size = 0x4, scoped, tag = 'scoped memory for tpu_custom_call.1']
    #allocation4 [shape = 's32[1]{0}', space=sflag, size = 0x4, scoped, tag = 'scoped memory for tpu_custom_call.1']
    #allocation5 [shape = 'u8[4096]{0}', space=vmem, size = 0x1000, scoped, tag = 'input window, operand 1, single buffered']
    #allocation6 [shape = 's32[1]{0}', space=sflag, size = 0x4, scoped, tag = 'scoped memory for tpu_custom_call.1']
    #allocation7 [shape = 'u8[16384]{0}', space=vmem, size = 0x4000, scoped, tag = 'input window, operand 2, single buffered']
    #allocation8 [shape = 'u8[16384]{0}', space=vmem, size = 0x4000, scoped, tag = 'input window, operand 3, single buffered']
    #allocation9 [shape = 's32[1]{0}', space=sflag, size = 0x4, scoped, tag = 'scoped memory for tpu_custom_call.1']
    #allocation10 [shape = 'u8[32768]{0}', space=vmem, size = 0x8000, scoped, tag = 'input window, operand 5, single buffered']
    #allocation11 [shape = 'u8[131072]{0}', space=vmem, size = 0x20000, scoped, tag = 'input window, operand 7, single buffered']
    #allocation12 [shape = 's32[1]{0}', space=sflag, size = 0x4, scoped, tag = 'scoped memory for tpu_custom_call.1']
    #allocation13 [shape = 'u8[65536]{0}', space=vmem, size = 0x10000, scoped, tag = 'input window, operand 9, single buffered']
    #allocation14 [shape = 'u8[4096]{0}', space=vmem, size = 0x1000, scoped, tag = 'output window, operand 0, single buffered']
    #allocation15 [shape = 'u8[4096]{0}', space=vmem, size = 0x1000, scoped, tag = 'output window, operand 1, single buffered']
    #allocation16 [shape = 's32[1]{0}', space=sflag, size = 0x4, scoped, tag = 'scoped memory for tpu_custom_call.1']
    %18 = vsyncpa [#allocation3], 0
    %19 = vsyncpa [#allocation6], 0
    %20 = vsyncpa [#allocation9], 0
    %21 = vsyncpa [#allocation12], 0
    %22 = vsyncpa [#allocation4], 0
    %23 = vsyncpa [#allocation16], 0
    // Predicated region
    $region2: #{tpu_custom_call.1} parent=1 // pred_check
      _
    $region3: #{tpu_custom_call.1} parent=1 // pred_check_branch
      %25 = sbr.rel (0) target = $region5
    $region4: #{tpu_custom_call.1} parent=1 // pred_region
      %s27 = ssub.s32 128, 128
      %28 = vsyncadd [#allocation3], %s27
      %s30 = sshll.u32 [#allocation2], 4
      %s31 = int_to_ptr.vmem [resolvable:$true] %s30
      %33 = dma.hbm_to_vmem [thread:$0]  %s0, 128, %s31, [#allocation3]
    $region5: #{tpu_custom_call.1} parent=1 // pred_fallthru
      _
    // Predicated region
    $region6: #{tpu_custom_call.1} parent=1 // pred_check
      _
    $region7: #{tpu_custom_call.1} parent=1 // pred_check_branch
      %35 = sbr.rel (0) target = $region9
    $region8: #{tpu_custom_call.1} parent=1 // pred_region
      %s37 = ssub.s32 128, 128
      %38 = vsyncadd [#allocation6], %s37
      %s40 = sshll.u32 [#allocation5], 4
      %s41 = int_to_ptr.vmem [resolvable:$true] %s40
      %43 = dma.hbm_to_vmem [thread:$0]  %s1, 128, %s41, [#allocation6]
    $region9: #{tpu_custom_call.1} parent=1 // pred_fallthru
      _
    // Predicated region
    $region10: #{tpu_custom_call.1} parent=1 // pred_check
      _
    $region11: #{tpu_custom_call.1} parent=1 // pred_check_branch
      %45 = sbr.rel (0) target = $region13
    $region12: #{tpu_custom_call.1} parent=1 // pred_region
      %s47 = ssub.s32 512, 512
      %48 = vsyncadd [#allocation6], %s47
      %s49 = sshll.u32 [#allocation7], 4
      %s50 = int_to_ptr.vmem [resolvable:$true] %s49
      %55 = dma.hbm_to_vmem [thread:$0]  %s2, 512, %s50, [#allocation6], 128, 128, 8
    $region13: #{tpu_custom_call.1} parent=1 // pred_fallthru
      _
    // Predicated region
    $region14: #{tpu_custom_call.1} parent=1 // pred_check
      _
    $region15: #{tpu_custom_call.1} parent=1 // pred_check_branch
      %57 = sbr.rel (0) target = $region17
    $region16: #{tpu_custom_call.1} parent=1 // pred_region
      %s59 = ssub.s32 512, 512
      %60 = vsyncadd [#allocation9], %s59
      %s61 = sshll.u32 [#allocation8], 4
      %s62 = int_to_ptr.vmem [resolvable:$true] %s61
      %67 = dma.hbm_to_vmem [thread:$0]  %s3, 512, %s62, [#allocation9], 128, 128, 8
    $region17: #{tpu_custom_call.1} parent=1 // pred_fallthru
      _
    // Predicated region
    $region18: #{tpu_custom_call.1} parent=1 // pred_check
      _
    $region19: #{tpu_custom_call.1} parent=1 // pred_check_branch
      %69 = sbr.rel (0) target = $region21
    $region20: #{tpu_custom_call.1} parent=1 // pred_region
      _
    $region21: #{tpu_custom_call.1} parent=1 // pred_fallthru
      _
    // Predicated region
    $region22: #{tpu_custom_call.1} parent=1 // pred_check
      _
    $region23: #{tpu_custom_call.1} parent=1 // pred_check_branch
      %71 = sbr.rel (0) target = $region25
    $region24: #{tpu_custom_call.1} parent=1 // pred_region
      %s73 = ssub.s32 1024, 1024
      %74 = vsyncadd [#allocation9], %s73
      %s75 = sshll.u32 [#allocation10], 4
      %s76 = int_to_ptr.vmem [resolvable:$true] %s75
      %81 = dma.hbm_to_vmem [thread:$0]  %s5, 1024, %s76, [#allocation9], 256, 256, 16
    $region25: #{tpu_custom_call.1} parent=1 // pred_fallthru
      _
    // Predicated region
    $region26: #{tpu_custom_call.1} parent=1 // pred_check
      _
    $region27: #{tpu_custom_call.1} parent=1 // pred_check_branch
      %83 = sbr.rel (0) target = $region29
    $region28: #{tpu_custom_call.1} parent=1 // pred_region
      _
    $region29: #{tpu_custom_call.1} parent=1 // pred_fallthru
      _
    // Predicated region
    $region30: #{tpu_custom_call.1} parent=1 // pred_check
      _
    $region31: #{tpu_custom_call.1} parent=1 // pred_check_branch
      %85 = sbr.rel (0) target = $region33
    $region32: #{tpu_custom_call.1} parent=1 // pred_region
      %s87 = ssub.s32 4096, 4096
      %88 = vsyncadd [#allocation12], %s87
      %s89 = sshll.u32 [#allocation11], 4
      %s90 = int_to_ptr.vmem [resolvable:$true] %s89
      %95 = dma.hbm_to_vmem [thread:$0]  %s7, 4096, %s90, [#allocation12], 128, 128, 8
    $region33: #{tpu_custom_call.1} parent=1 // pred_fallthru
      _
    // Predicated region
    $region34: #{tpu_custom_call.1} parent=1 // pred_check
      _
    $region35: #{tpu_custom_call.1} parent=1 // pred_check_branch
      %97 = sbr.rel (0) target = $region37
    $region36: #{tpu_custom_call.1} parent=1 // pred_region
      _
    $region37: #{tpu_custom_call.1} parent=1 // pred_fallthru
      _
    // Predicated region
    $region38: #{tpu_custom_call.1} parent=1 // pred_check
      _
    $region39: #{tpu_custom_call.1} parent=1 // pred_check_branch
      %99 = sbr.rel (0) target = $region41
    $region40: #{tpu_custom_call.1} parent=1 // pred_region
      %s101 = ssub.s32 2048, 2048
      %102 = vsyncadd [#allocation12], %s101
      %s103 = sshll.u32 [#allocation13], 4
      %s104 = int_to_ptr.vmem [resolvable:$true] %s103
      %109 = dma.hbm_to_vmem [thread:$0]  %s9, 2048, %s104, [#allocation12], 128, 128, 8
    $region41: #{tpu_custom_call.1} parent=1 // pred_fallthru
      _
    // Predicated region
    $region42: #{tpu_custom_call.1} parent=1 // pred_check
      _
    $region43: #{tpu_custom_call.1} parent=1 // pred_check_branch
      %111 = sbr.rel (0) target = $region45
    $region44: #{tpu_custom_call.1} parent=1 // pred_region
      _
    $region45: #{tpu_custom_call.1} parent=1 // pred_fallthru
      _
    // Predicated region
    $region46: #{tpu_custom_call.1} parent=1 // pred_check
      _
    $region47: #{tpu_custom_call.1} parent=1 // pred_check_branch
      %113 = sbr.rel (0) target = $region49
    $region48: #{tpu_custom_call.1} parent=1 // pred_region
      %114 = dma.done [#allocation3], 128
    $region49: #{tpu_custom_call.1} parent=1 // pred_fallthru
      _
    // Predicated region
    $region50: #{tpu_custom_call.1} parent=1 // pred_check
      _
    $region51: #{tpu_custom_call.1} parent=1 // pred_check_branch
      %116 = sbr.rel (0) target = $region53
    $region52: #{tpu_custom_call.1} parent=1 // pred_region
      %117 = dma.done [#allocation6], 128
    $region53: #{tpu_custom_call.1} parent=1 // pred_fallthru
      _
    // Predicated region
    $region54: #{tpu_custom_call.1} parent=1 // pred_check
      _
    $region55: #{tpu_custom_call.1} parent=1 // pred_check_branch
      %119 = sbr.rel (0) target = $region57
    $region56: #{tpu_custom_call.1} parent=1 // pred_region
      %120 = dma.done [#allocation6], 512
    $region57: #{tpu_custom_call.1} parent=1 // pred_fallthru
      _
    // Predicated region
    $region58: #{tpu_custom_call.1} parent=1 // pred_check
      _
    $region59: #{tpu_custom_call.1} parent=1 // pred_check_branch
      %122 = sbr.rel (0) target = $region61
    $region60: #{tpu_custom_call.1} parent=1 // pred_region
      %123 = dma.done [#allocation9], 512
    $region61: #{tpu_custom_call.1} parent=1 // pred_fallthru
      _
    // Predicated region
    $region62: #{tpu_custom_call.1} parent=1 // pred_check
      _
    $region63: #{tpu_custom_call.1} parent=1 // pred_check_branch
      %125 = sbr.rel (0) target = $region65
    $region64: #{tpu_custom_call.1} parent=1 // pred_region
      %126 = dma.done [#allocation9], 1024
    $region65: #{tpu_custom_call.1} parent=1 // pred_fallthru
      _
    // Predicated region
    $region66: #{tpu_custom_call.1} parent=1 // pred_check
      _
    $region67: #{tpu_custom_call.1} parent=1 // pred_check_branch
      %128 = sbr.rel (0) target = $region69
    $region68: #{tpu_custom_call.1} parent=1 // pred_region
      %129 = dma.done [#allocation12], 4096
    $region69: #{tpu_custom_call.1} parent=1 // pred_fallthru
      _
    // Predicated region
    $region70: #{tpu_custom_call.1} parent=1 // pred_check
      _
    $region71: #{tpu_custom_call.1} parent=1 // pred_check_branch
      %131 = sbr.rel (0) target = $region73
    $region72: #{tpu_custom_call.1} parent=1 // pred_region
      %132 = dma.done [#allocation12], 2048
    $region73: #{tpu_custom_call.1} parent=1 // pred_fallthru
      _
    %v133 = vld [vmem:[#allocation2] sm:$0xff]
    %v134 = vld [vmem:[#allocation5] sm:$0xff]
    %v135 = vld [vmem:[#allocation7] sm:$0xff]
    %v136 = vld [vmem:[#allocation7 + $0x8] sm:$0xff]
    %v137 = vld [vmem:[#allocation7 + $0x10] sm:$0xff]
    %v138 = vld [vmem:[#allocation7 + $0x18] sm:$0xff]
    %v139 = vld [vmem:[#allocation8] sm:$0xff]
    %v140 = vld [vmem:[#allocation8 + $0x8] sm:$0xff]
    %v141 = vld [vmem:[#allocation8 + $0x10] sm:$0xff]
    %v142 = vld [vmem:[#allocation8 + $0x18] sm:$0xff]
    %v143 = vld [vmem:[%s4] sm:$0x1]
    %vm144 = vcmask 261120
    %v146 = vsel %vm144, %v134, 0
    %148 = vmatprep.subr.mxu0 0.0
    %149 = vmatpush1.msra.mxu0 0.0
    %150 = vmatprep.subr.mxu0 0.0
    %151 = vmatpush1.msra.mxu0 0.0
    %152 = vmatprep.subr.mxu0 0.0
    %153 = vmatpush1.msra.mxu0 0.0
    %154 = vmatprep.subr.mxu0 0.0
    %155 = vmatpush1.msra.mxu0 0.0
    %156 = vmatprep.subr.mxu0 0.0
    %157 = vmatpush1.msra.mxu0 0.0
    %158 = vmatprep.subr.mxu0 0.0
    %159 = vmatpush1.msra.mxu0 0.0
    %160 = vmatprep.subr.mxu0 0.0
    %161 = vmatpush1.msra.mxu0 0.0
    %162 = vmatprep.subr.mxu0 0.0
    %163 = vmatpush1.msra.mxu0 0.0
    %164 = vmatprep.subr.mxu0 0.0
    %165 = vmatpush1.msra.mxu0 0.0
    %166 = vmatprep.subr.mxu0 0.0
    %167 = vmatpush1.msra.mxu0 0.0
    %168 = vmatprep.subr.mxu0 0.0
    %169 = vmatpush1.msra.mxu0 0.0
    %170 = vmatprep.subr.mxu0 0.0
    %171 = vmatpush1.msra.mxu0 0.0
    %172 = vmatprep.subr.mxu0 0.0
    %v173 = vand.u32 %v142, 4294901760
    %174 = vmatpush1.msra.mxu0 %v173
    %175 = vmatprep.subr.mxu0 0.0
    %v176 = vand.u32 %v141, 4294901760
    %177 = vmatpush1.msra.mxu0 %v176
    %178 = vmatprep.subr.mxu0 0.0
    %v179 = vand.u32 %v140, 4294901760
    %180 = vmatpush1.msra.mxu0 %v179
    %181 = vmatprep.subr.mxu0 0.0
    %v182 = vand.u32 %v139, 4294901760
    %183 = vmatpush1.msra.mxu0 %v182
    %184 = vmatprep.subr.mxu0 0.0
    %185 = vmatpush2.msra.mxu0 0.0
    %186 = vmatprep.subr.mxu0 0.0
    %187 = vmatpush2.msra.mxu0 0.0
    %188 = vmatprep.subr.mxu0 0.0
    %189 = vmatpush2.msra.mxu0 0.0
    %190 = vmatprep.subr.mxu0 0.0
    %191 = vmatpush2.msra.mxu0 0.0
    %192 = vmatprep.subr.mxu0 0.0
    %193 = vmatpush2.msra.mxu0 0.0
    %194 = vmatprep.subr.mxu0 0.0
    %195 = vmatpush2.msra.mxu0 0.0
    %196 = vmatprep.subr.mxu0 0.0
    %197 = vmatpush2.msra.mxu0 0.0
    %198 = vmatprep.subr.mxu0 0.0
    %199 = vmatpush2.msra.mxu0 0.0
    %200 = vmatprep.subr.mxu0 0.0
    %201 = vmatpush2.msra.mxu0 0.0
    %202 = vmatprep.subr.mxu0 0.0
    %203 = vmatpush2.msra.mxu0 0.0
    %204 = vmatprep.subr.mxu0 0.0
    %205 = vmatpush2.msra.mxu0 0.0
    %206 = vmatprep.subr.mxu0 0.0
    %207 = vmatpush2.msra.mxu0 0.0
    %208 = vmatprep.subr.mxu0 0.0
    %209 = vmatpush2.msra.mxu0 0.0
    %210 = vmatprep.subr.mxu0 0.0
    %211 = vmatpush2.msra.mxu0 0.0
    %212 = vmatprep.subr.mxu0 0.0
    %213 = vmatpush2.msra.mxu0 0.0
    %214 = vmatprep.subr.mxu0 0.0
    %215 = vmatpush2.msra.mxu0 0.0
    %216 = vmatprep.mubr.f32.mxu0 0.0
    %v217 = vand.u32 %v146, 4294901760
    %v218 = vsub.f32 %v146, %v217
    %v219 = vand.u32 %v218, 4294901760
    %v220 = vsub.f32 %v218, %v219
    %v221 = vand.u32 %v220, 4294901760
    %222 = vmatmul.mubr.f32.gmra.mxu0 %v221
    %v223 = vpop.f32.mrf.mxu0
    %v224 = vadd.f32 0.0, %v223
    %v225 = vpop.f32.mrf.mxu0
    %226 = vdwg.mxu0
    %227 = vmatprep.subr.mxu0 0.0
    %228 = vmatpush1.msra.mxu0 0.0
    %229 = vmatprep.subr.mxu0 0.0
    %230 = vmatpush1.msra.mxu0 0.0
    %231 = vmatprep.subr.mxu0 0.0
    %232 = vmatpush1.msra.mxu0 0.0
    %233 = vmatprep.subr.mxu0 0.0
    %234 = vmatpush1.msra.mxu0 0.0
    %235 = vmatprep.subr.mxu0 0.0
    %236 = vmatpush1.msra.mxu0 0.0
    %237 = vmatprep.subr.mxu0 0.0
    %238 = vmatpush1.msra.mxu0 0.0
    %239 = vmatprep.subr.mxu0 0.0
    %240 = vmatpush1.msra.mxu0 0.0
    %241 = vmatprep.subr.mxu0 0.0
    %242 = vmatpush1.msra.mxu0 0.0
    %243 = vmatprep.subr.mxu0 0.0
    %244 = vmatpush1.msra.mxu0 0.0
    %245 = vmatprep.subr.mxu0 0.0
    %246 = vmatpush1.msra.mxu0 0.0
    %247 = vmatprep.subr.mxu0 0.0
    %248 = vmatpush1.msra.mxu0 0.0
    %249 = vmatprep.subr.mxu0 0.0
    %250 = vmatpush1.msra.mxu0 0.0
    %251 = vmatprep.subr.mxu0 0.0
    %v252 = vand.u32 %v142, 4294901760
    %v253 = vsub.f32 %v142, %v252
    %v254 = vand.u32 %v253, 4294901760
    %v255 = vsub.f32 %v253, %v254
    %v256 = vand.u32 %v255, 4294901760
    %257 = vmatpush1.msra.mxu0 %v256
    %258 = vmatprep.subr.mxu0 0.0
    %v259 = vand.u32 %v141, 4294901760
    %v260 = vsub.f32 %v141, %v259
    %v261 = vand.u32 %v260, 4294901760
    %v262 = vsub.f32 %v260, %v261
    %v263 = vand.u32 %v262, 4294901760
    %264 = vmatpush1.msra.mxu0 %v263
    %265 = vmatprep.subr.mxu0 0.0
    %v266 = vand.u32 %v140, 4294901760
    %v267 = vsub.f32 %v140, %v266
    %v268 = vand.u32 %v267, 4294901760
    %v269 = vsub.f32 %v267, %v268
    %v270 = vand.u32 %v269, 4294901760
    %271 = vmatpush1.msra.mxu0 %v270
    %272 = vmatprep.subr.mxu0 0.0
    %v273 = vand.u32 %v139, 4294901760
    %v274 = vsub.f32 %v139, %v273
    %v275 = vand.u32 %v274, 4294901760
    %v276 = vsub.f32 %v274, %v275
    %v277 = vand.u32 %v276, 4294901760
    %278 = vmatpush1.msra.mxu0 %v277
    %279 = vmatprep.subr.mxu0 0.0
    %280 = vmatpush2.msra.mxu0 0.0
    %281 = vmatprep.subr.mxu0 0.0
    %282 = vmatpush2.msra.mxu0 0.0
    %283 = vmatprep.subr.mxu0 0.0
    %284 = vmatpush2.msra.mxu0 0.0
    %285 = vmatprep.subr.mxu0 0.0
    %286 = vmatpush2.msra.mxu0 0.0
    %287 = vmatprep.subr.mxu0 0.0
    %288 = vmatpush2.msra.mxu0 0.0
    %289 = vmatprep.subr.mxu0 0.0
    %290 = vmatpush2.msra.mxu0 0.0
    %291 = vmatprep.subr.mxu0 0.0
    %292 = vmatpush2.msra.mxu0 0.0
    %293 = vmatprep.subr.mxu0 0.0
    %294 = vmatpush2.msra.mxu0 0.0
    %295 = vmatprep.subr.mxu0 0.0
    %296 = vmatpush2.msra.mxu0 0.0
    %297 = vmatprep.subr.mxu0 0.0
    %298 = vmatpush2.msra.mxu0 0.0
    %299 = vmatprep.subr.mxu0 0.0
    %300 = vmatpush2.msra.mxu0 0.0
    %301 = vmatprep.subr.mxu0 0.0
    %302 = vmatpush2.msra.mxu0 0.0
    %303 = vmatprep.subr.mxu0 0.0
    %304 = vmatpush2.msra.mxu0 0.0
    %305 = vmatprep.subr.mxu0 0.0
    %306 = vmatpush2.msra.mxu0 0.0
    %307 = vmatprep.subr.mxu0 0.0
    %308 = vmatpush2.msra.mxu0 0.0
    %309 = vmatprep.subr.mxu0 0.0
    %310 = vmatpush2.msra.mxu0 0.0
    %311 = vmatprep.mubr.f32.mxu0 0.0
    %v312 = vand.u32 %v146, 4294901760
    %313 = vmatmul.mubr.f32.gmra.mxu0 %v312
    %v314 = vpop.f32.mrf.mxu0
    %v315 = vadd.f32 %v224, %v314
    %v316 = vpop.f32.mrf.mxu0
    %317 = vdwg.mxu0
    %318 = vmatprep.subr.mxu0 0.0
    %319 = vmatpush1.msra.mxu0 0.0
    %320 = vmatprep.subr.mxu0 0.0
    %321 = vmatpush1.msra.mxu0 0.0
    %322 = vmatprep.subr.mxu0 0.0
    %323 = vmatpush1.msra.mxu0 0.0
    %324 = vmatprep.subr.mxu0 0.0
    %325 = vmatpush1.msra.mxu0 0.0
    %326 = vmatprep.subr.mxu0 0.0
    %327 = vmatpush1.msra.mxu0 0.0
    %328 = vmatprep.subr.mxu0 0.0
    %329 = vmatpush1.msra.mxu0 0.0
    %330 = vmatprep.subr.mxu0 0.0
    %331 = vmatpush1.msra.mxu0 0.0
    %332 = vmatprep.subr.mxu0 0.0
    %333 = vmatpush1.msra.mxu0 0.0
    %334 = vmatprep.subr.mxu0 0.0
    %335 = vmatpush1.msra.mxu0 0.0
    %336 = vmatprep.subr.mxu0 0.0
    %337 = vmatpush1.msra.mxu0 0.0
    %338 = vmatprep.subr.mxu0 0.0
    %339 = vmatpush1.msra.mxu0 0.0
    %340 = vmatprep.subr.mxu0 0.0
    %341 = vmatpush1.msra.mxu0 0.0
    %342 = vmatprep.subr.mxu0 0.0
    %v343 = vand.u32 %v142, 4294901760
    %v344 = vsub.f32 %v142, %v343
    %345 = vmatpush1.msra.mxu0 %v344
    %346 = vmatprep.subr.mxu0 0.0
    %v347 = vand.u32 %v141, 4294901760
    %v348 = vsub.f32 %v141, %v347
    %349 = vmatpush1.msra.mxu0 %v348
    %350 = vmatprep.subr.mxu0 0.0
    %v351 = vand.u32 %v140, 4294901760
    %v352 = vsub.f32 %v140, %v351
    %353 = vmatpush1.msra.mxu0 %v352
    %354 = vmatprep.subr.mxu0 0.0
    %v355 = vand.u32 %v139, 4294901760
    %v356 = vsub.f32 %v139, %v355
    %357 = vmatpush1.msra.mxu0 %v356
    %358 = vmatprep.subr.mxu0 0.0
    %359 = vmatpush2.msra.mxu0 0.0
    %360 = vmatprep.subr.mxu0 0.0
    %361 = vmatpush2.msra.mxu0 0.0
    %362 = vmatprep.subr.mxu0 0.0
    %363 = vmatpush2.msra.mxu0 0.0
    %364 = vmatprep.subr.mxu0 0.0
    %365 = vmatpush2.msra.mxu0 0.0
    %366 = vmatprep.subr.mxu0 0.0
    %367 = vmatpush2.msra.mxu0 0.0
    %368 = vmatprep.subr.mxu0 0.0
    %369 = vmatpush2.msra.mxu0 0.0
    %370 = vmatprep.subr.mxu0 0.0
    %371 = vmatpush2.msra.mxu0 0.0
    %372 = vmatprep.subr.mxu0 0.0
    %373 = vmatpush2.msra.mxu0 0.0
    %374 = vmatprep.subr.mxu0 0.0
    %375 = vmatpush2.msra.mxu0 0.0
    %376 = vmatprep.subr.mxu0 0.0
    %377 = vmatpush2.msra.mxu0 0.0
    %378 = vmatprep.subr.mxu0 0.0
    %379 = vmatpush2.msra.mxu0 0.0
    %380 = vmatprep.subr.mxu0 0.0
    %381 = vmatpush2.msra.mxu0 0.0
    %382 = vmatprep.subr.mxu0 0.0
    %383 = vmatpush2.msra.mxu0 0.0
    %384 = vmatprep.subr.mxu0 0.0
    %385 = vmatpush2.msra.mxu0 0.0
    %386 = vmatprep.subr.mxu0 0.0
    %387 = vmatpush2.msra.mxu0 0.0
    %388 = vmatprep.subr.mxu0 0.0
    %389 = vmatpush2.msra.mxu0 0.0
    %390 = vmatprep.mubr.f32.mxu0 0.0
    %v391 = vand.u32 %v146, 4294901760
    %v392 = vsub.f32 %v146, %v391
    %393 = vmatmul.mubr.f32.gmra.mxu0 %v392
    %v394 = vpop.f32.mrf.mxu0
    %v395 = vadd.f32 %v315, %v394
    %v396 = vpop.f32.mrf.mxu0
    %397 = vdwg.mxu0
    %398 = vmatprep.subr.mxu0 0.0
    %399 = vmatpush1.msra.mxu0 0.0
    %400 = vmatprep.subr.mxu0 0.0
    %401 = vmatpush1.msra.mxu0 0.0
    %402 = vmatprep.subr.mxu0 0.0
    %403 = vmatpush1.msra.mxu0 0.0
    %404 = vmatprep.subr.mxu0 0.0
    %405 = vmatpush1.msra.mxu0 0.0
    %406 = vmatprep.subr.mxu0 0.0
    %407 = vmatpush1.msra.mxu0 0.0
    %408 = vmatprep.subr.mxu0 0.0
    %409 = vmatpush1.msra.mxu0 0.0
    %410 = vmatprep.subr.mxu0 0.0
    %411 = vmatpush1.msra.mxu0 0.0
    %412 = vmatprep.subr.mxu0 0.0
    %413 = vmatpush1.msra.mxu0 0.0
    %414 = vmatprep.subr.mxu0 0.0
    %415 = vmatpush1.msra.mxu0 0.0
    %416 = vmatprep.subr.mxu0 0.0
    %417 = vmatpush1.msra.mxu0 0.0
    %418 = vmatprep.subr.mxu0 0.0
    %419 = vmatpush1.msra.mxu0 0.0
    %420 = vmatprep.subr.mxu0 0.0
    %421 = vmatpush1.msra.mxu0 0.0
    %422 = vmatprep.subr.mxu0 0.0
    %v423 = vand.u32 %v142, 4294901760
    %424 = vmatpush1.msra.mxu0 %v423
    %425 = vmatprep.subr.mxu0 0.0
    %v426 = vand.u32 %v141, 4294901760
    %427 = vmatpush1.msra.mxu0 %v426
    %428 = vmatprep.subr.mxu0 0.0
    %v429 = vand.u32 %v140, 4294901760
    %430 = vmatpush1.msra.mxu0 %v429
    %431 = vmatprep.subr.mxu0 0.0
    %v432 = vand.u32 %v139, 4294901760
    %433 = vmatpush1.msra.mxu0 %v432
    %434 = vmatprep.subr.mxu0 0.0
    %435 = vmatpush2.msra.mxu0 0.0
    %436 = vmatprep.subr.mxu0 0.0
    %437 = vmatpush2.msra.mxu0 0.0
    %438 = vmatprep.subr.mxu0 0.0
    %439 = vmatpush2.msra.mxu0 0.0
    %440 = vmatprep.subr.mxu0 0.0
    %441 = vmatpush2.msra.mxu0 0.0
    %442 = vmatprep.subr.mxu0 0.0
    %443 = vmatpush2.msra.mxu0 0.0
    %444 = vmatprep.subr.mxu0 0.0
    %445 = vmatpush2.msra.mxu0 0.0
    %446 = vmatprep.subr.mxu0 0.0
    %447 = vmatpush2.msra.mxu0 0.0
    %448 = vmatprep.subr.mxu0 0.0
    %449 = vmatpush2.msra.mxu0 0.0
    %450 = vmatprep.subr.mxu0 0.0
    %451 = vmatpush2.msra.mxu0 0.0
    %452 = vmatprep.subr.mxu0 0.0
    %453 = vmatpush2.msra.mxu0 0.0
    %454 = vmatprep.subr.mxu0 0.0
    %455 = vmatpush2.msra.mxu0 0.0
    %456 = vmatprep.subr.mxu0 0.0
    %457 = vmatpush2.msra.mxu0 0.0
    %458 = vmatprep.subr.mxu0 0.0
    %459 = vmatpush2.msra.mxu0 0.0
    %460 = vmatprep.subr.mxu0 0.0
    %461 = vmatpush2.msra.mxu0 0.0
    %462 = vmatprep.subr.mxu0 0.0
    %463 = vmatpush2.msra.mxu0 0.0
    %464 = vmatprep.subr.mxu0 0.0
    %465 = vmatpush2.msra.mxu0 0.0
    %466 = vmatprep.mubr.f32.mxu0 0.0
    %v467 = vand.u32 %v146, 4294901760
    %v468 = vsub.f32 %v146, %v467
    %v469 = vand.u32 %v468, 4294901760
    %470 = vmatmul.mubr.f32.gmra.mxu0 %v469
    %v471 = vpop.f32.mrf.mxu0
    %v472 = vadd.f32 %v395, %v471
    %v473 = vpop.f32.mrf.mxu0
    %474 = vdwg.mxu0
    %475 = vmatprep.subr.mxu0 0.0
    %476 = vmatpush1.msra.mxu0 0.0
    %477 = vmatprep.subr.mxu0 0.0
    %478 = vmatpush1.msra.mxu0 0.0
    %479 = vmatprep.subr.mxu0 0.0
    %480 = vmatpush1.msra.mxu0 0.0
    %481 = vmatprep.subr.mxu0 0.0
    %482 = vmatpush1.msra.mxu0 0.0
    %483 = vmatprep.subr.mxu0 0.0
    %484 = vmatpush1.msra.mxu0 0.0
    %485 = vmatprep.subr.mxu0 0.0
    %486 = vmatpush1.msra.mxu0 0.0
    %487 = vmatprep.subr.mxu0 0.0
    %488 = vmatpush1.msra.mxu0 0.0
    %489 = vmatprep.subr.mxu0 0.0
    %490 = vmatpush1.msra.mxu0 0.0
    %491 = vmatprep.subr.mxu0 0.0
    %492 = vmatpush1.msra.mxu0 0.0
    %493 = vmatprep.subr.mxu0 0.0
    %494 = vmatpush1.msra.mxu0 0.0
    %495 = vmatprep.subr.mxu0 0.0
    %496 = vmatpush1.msra.mxu0 0.0
    %497 = vmatprep.subr.mxu0 0.0
    %498 = vmatpush1.msra.mxu0 0.0
    %499 = vmatprep.subr.mxu0 0.0
    %v500 = vand.u32 %v142, 4294901760
    %v501 = vsub.f32 %v142, %v500
    %v502 = vand.u32 %v501, 4294901760
    %503 = vmatpush1.msra.mxu0 %v502
    %504 = vmatprep.subr.mxu0 0.0
    %v505 = vand.u32 %v141, 4294901760
    %v506 = vsub.f32 %v141, %v505
    %v507 = vand.u32 %v506, 4294901760
    %508 = vmatpush1.msra.mxu0 %v507
    %509 = vmatprep.subr.mxu0 0.0
    %v510 = vand.u32 %v140, 4294901760
    %v511 = vsub.f32 %v140, %v510
    %v512 = vand.u32 %v511, 4294901760
    %513 = vmatpush1.msra.mxu0 %v512
    %514 = vmatprep.subr.mxu0 0.0
    %v515 = vand.u32 %v139, 4294901760
    %v516 = vsub.f32 %v139, %v515
    %v517 = vand.u32 %v516, 4294901760
    %518 = vmatpush1.msra.mxu0 %v517
    %519 = vmatprep.subr.mxu0 0.0
    %520 = vmatpush2.msra.mxu0 0.0
    %521 = vmatprep.subr.mxu0 0.0
    %522 = vmatpush2.msra.mxu0 0.0
    %523 = vmatprep.subr.mxu0 0.0
    %524 = vmatpush2.msra.mxu0 0.0
    %525 = vmatprep.subr.mxu0 0.0
    %526 = vmatpush2.msra.mxu0 0.0
    %527 = vmatprep.subr.mxu0 0.0
    %528 = vmatpush2.msra.mxu0 0.0
    %529 = vmatprep.subr.mxu0 0.0
    %530 = vmatpush2.msra.mxu0 0.0
    %531 = vmatprep.subr.mxu0 0.0
    %532 = vmatpush2.msra.mxu0 0.0
    %533 = vmatprep.subr.mxu0 0.0
    %534 = vmatpush2.msra.mxu0 0.0
    %535 = vmatprep.subr.mxu0 0.0
    %536 = vmatpush2.msra.mxu0 0.0
    %537 = vmatprep.subr.mxu0 0.0
    %538 = vmatpush2.msra.mxu0 0.0
    %539 = vmatprep.subr.mxu0 0.0
    %540 = vmatpush2.msra.mxu0 0.0
    %541 = vmatprep.subr.mxu0 0.0
    %542 = vmatpush2.msra.mxu0 0.0
    %543 = vmatprep.subr.mxu0 0.0
    %544 = vmatpush2.msra.mxu0 0.0
    %545 = vmatprep.subr.mxu0 0.0
    %546 = vmatpush2.msra.mxu0 0.0
    %547 = vmatprep.subr.mxu0 0.0
    %548 = vmatpush2.msra.mxu0 0.0
    %549 = vmatprep.subr.mxu0 0.0
    %550 = vmatpush2.msra.mxu0 0.0
    %551 = vmatprep.mubr.f32.mxu0 0.0
    %v552 = vand.u32 %v146, 4294901760
    %553 = vmatmul.mubr.f32.gmra.mxu0 %v552
    %v554 = vpop.f32.mrf.mxu0
    %v555 = vadd.f32 %v472, %v554
    %v556 = vpop.f32.mrf.mxu0
    %557 = vdwg.mxu0
    %558 = vmatprep.subr.mxu0 0.0
    %559 = vmatpush1.msra.mxu0 0.0
    %560 = vmatprep.subr.mxu0 0.0
    %561 = vmatpush1.msra.mxu0 0.0
    %562 = vmatprep.subr.mxu0 0.0
    %563 = vmatpush1.msra.mxu0 0.0
    %564 = vmatprep.subr.mxu0 0.0
    %565 = vmatpush1.msra.mxu0 0.0
    %566 = vmatprep.subr.mxu0 0.0
    %567 = vmatpush1.msra.mxu0 0.0
    %568 = vmatprep.subr.mxu0 0.0
    %569 = vmatpush1.msra.mxu0 0.0
    %570 = vmatprep.subr.mxu0 0.0
    %571 = vmatpush1.msra.mxu0 0.0
    %572 = vmatprep.subr.mxu0 0.0
    %573 = vmatpush1.msra.mxu0 0.0
    %574 = vmatprep.subr.mxu0 0.0
    %575 = vmatpush1.msra.mxu0 0.0
    %576 = vmatprep.subr.mxu0 0.0
    %577 = vmatpush1.msra.mxu0 0.0
    %578 = vmatprep.subr.mxu0 0.0
    %579 = vmatpush1.msra.mxu0 0.0
    %580 = vmatprep.subr.mxu0 0.0
    %581 = vmatpush1.msra.mxu0 0.0
    %582 = vmatprep.subr.mxu0 0.0
    %v583 = vand.u32 %v142, 4294901760
    %584 = vmatpush1.msra.mxu0 %v583
    %585 = vmatprep.subr.mxu0 0.0
    %v586 = vand.u32 %v141, 4294901760
    %587 = vmatpush1.msra.mxu0 %v586
    %588 = vmatprep.subr.mxu0 0.0
    %v589 = vand.u32 %v140, 4294901760
    %590 = vmatpush1.msra.mxu0 %v589
    %591 = vmatprep.subr.mxu0 0.0
    %v592 = vand.u32 %v139, 4294901760
    %593 = vmatpush1.msra.mxu0 %v592
    %594 = vmatprep.subr.mxu0 0.0
    %595 = vmatpush2.msra.mxu0 0.0
    %596 = vmatprep.subr.mxu0 0.0
    %597 = vmatpush2.msra.mxu0 0.0
    %598 = vmatprep.subr.mxu0 0.0
    %599 = vmatpush2.msra.mxu0 0.0
    %600 = vmatprep.subr.mxu0 0.0
    %601 = vmatpush2.msra.mxu0 0.0
    %602 = vmatprep.subr.mxu0 0.0
    %603 = vmatpush2.msra.mxu0 0.0
    %604 = vmatprep.subr.mxu0 0.0
    %605 = vmatpush2.msra.mxu0 0.0
    %606 = vmatprep.subr.mxu0 0.0
    %607 = vmatpush2.msra.mxu0 0.0
    %608 = vmatprep.subr.mxu0 0.0
    %609 = vmatpush2.msra.mxu0 0.0
    %610 = vmatprep.subr.mxu0 0.0
    %611 = vmatpush2.msra.mxu0 0.0
    %612 = vmatprep.subr.mxu0 0.0
    %613 = vmatpush2.msra.mxu0 0.0
    %614 = vmatprep.subr.mxu0 0.0
    %615 = vmatpush2.msra.mxu0 0.0
    %616 = vmatprep.subr.mxu0 0.0
    %617 = vmatpush2.msra.mxu0 0.0
    %618 = vmatprep.subr.mxu0 0.0
    %619 = vmatpush2.msra.mxu0 0.0
    %620 = vmatprep.subr.mxu0 0.0
    %621 = vmatpush2.msra.mxu0 0.0
    %622 = vmatprep.subr.mxu0 0.0
    %623 = vmatpush2.msra.mxu0 0.0
    %624 = vmatprep.subr.mxu0 0.0
    %625 = vmatpush2.msra.mxu0 0.0
    %626 = vmatprep.mubr.f32.mxu0 0.0
    %v627 = vand.u32 %v146, 4294901760
    %628 = vmatmul.mubr.f32.gmra.mxu0 %v627
    %v629 = vpop.f32.mrf.mxu0
    %v630 = vadd.f32 %v555, %v629
    %v631 = vpop.f32.mrf.mxu0
    %632 = vdwg.mxu0
    %v634 = vsel %vm144, %v133, 0
    %636 = vmatprep.subr.mxu0 0.0
    %637 = vmatpush1.msra.mxu0 0.0
    %638 = vmatprep.subr.mxu0 0.0
    %639 = vmatpush1.msra.mxu0 0.0
    %640 = vmatprep.subr.mxu0 0.0
    %641 = vmatpush1.msra.mxu0 0.0
    %642 = vmatprep.subr.mxu0 0.0
    %643 = vmatpush1.msra.mxu0 0.0
    %644 = vmatprep.subr.mxu0 0.0
    %645 = vmatpush1.msra.mxu0 0.0
    %646 = vmatprep.subr.mxu0 0.0
    %647 = vmatpush1.msra.mxu0 0.0
    %648 = vmatprep.subr.mxu0 0.0
    %649 = vmatpush1.msra.mxu0 0.0
    %650 = vmatprep.subr.mxu0 0.0
    %651 = vmatpush1.msra.mxu0 0.0
    %652 = vmatprep.subr.mxu0 0.0
    %653 = vmatpush1.msra.mxu0 0.0
    %654 = vmatprep.subr.mxu0 0.0
    %655 = vmatpush1.msra.mxu0 0.0
    %656 = vmatprep.subr.mxu0 0.0
    %657 = vmatpush1.msra.mxu0 0.0
    %658 = vmatprep.subr.mxu0 0.0
    %659 = vmatpush1.msra.mxu0 0.0
    %660 = vmatprep.subr.mxu0 0.0
    %v661 = vand.u32 %v138, 4294901760
    %662 = vmatpush1.msra.mxu0 %v661
    %663 = vmatprep.subr.mxu0 0.0
    %v664 = vand.u32 %v137, 4294901760
    %665 = vmatpush1.msra.mxu0 %v664
    %666 = vmatprep.subr.mxu0 0.0
    %v667 = vand.u32 %v136, 4294901760
    %668 = vmatpush1.msra.mxu0 %v667
    %669 = vmatprep.subr.mxu0 0.0
    %v670 = vand.u32 %v135, 4294901760
    %671 = vmatpush1.msra.mxu0 %v670
    %672 = vmatprep.subr.mxu0 0.0
    %673 = vmatpush2.msra.mxu0 0.0
    %674 = vmatprep.subr.mxu0 0.0
    %675 = vmatpush2.msra.mxu0 0.0
    %676 = vmatprep.subr.mxu0 0.0
    %677 = vmatpush2.msra.mxu0 0.0
    %678 = vmatprep.subr.mxu0 0.0
    %679 = vmatpush2.msra.mxu0 0.0
    %680 = vmatprep.subr.mxu0 0.0
    %681 = vmatpush2.msra.mxu0 0.0
    %682 = vmatprep.subr.mxu0 0.0
    %683 = vmatpush2.msra.mxu0 0.0
    %684 = vmatprep.subr.mxu0 0.0
    %685 = vmatpush2.msra.mxu0 0.0
    %686 = vmatprep.subr.mxu0 0.0
    %687 = vmatpush2.msra.mxu0 0.0
    %688 = vmatprep.subr.mxu0 0.0
    %689 = vmatpush2.msra.mxu0 0.0
    %690 = vmatprep.subr.mxu0 0.0
    %691 = vmatpush2.msra.mxu0 0.0
    %692 = vmatprep.subr.mxu0 0.0
    %693 = vmatpush2.msra.mxu0 0.0
    %694 = vmatprep.subr.mxu0 0.0
    %695 = vmatpush2.msra.mxu0 0.0
    %696 = vmatprep.subr.mxu0 0.0
    %697 = vmatpush2.msra.mxu0 0.0
    %698 = vmatprep.subr.mxu0 0.0
    %699 = vmatpush2.msra.mxu0 0.0
    %700 = vmatprep.subr.mxu0 0.0
    %701 = vmatpush2.msra.mxu0 0.0
    %702 = vmatprep.subr.mxu0 0.0
    %703 = vmatpush2.msra.mxu0 0.0
    %704 = vmatprep.mubr.f32.mxu0 0.0
    %v705 = vand.u32 %v634, 4294901760
    %v706 = vsub.f32 %v634, %v705
    %v707 = vand.u32 %v706, 4294901760
    %v708 = vsub.f32 %v706, %v707
    %v709 = vand.u32 %v708, 4294901760
    %710 = vmatmul.mubr.f32.gmra.mxu0 %v709
    %v711 = vpop.f32.mrf.mxu0
    %v712 = vadd.f32 %v630, %v711
    %v713 = vpop.f32.mrf.mxu0
    %714 = vdwg.mxu0
    %715 = vmatprep.subr.mxu0 0.0
    %716 = vmatpush1.msra.mxu0 0.0
    %717 = vmatprep.subr.mxu0 0.0
    %718 = vmatpush1.msra.mxu0 0.0
    %719 = vmatprep.subr.mxu0 0.0
    %720 = vmatpush1.msra.mxu0 0.0
    %721 = vmatprep.subr.mxu0 0.0
    %722 = vmatpush1.msra.mxu0 0.0
    %723 = vmatprep.subr.mxu0 0.0
    %724 = vmatpush1.msra.mxu0 0.0
    %725 = vmatprep.subr.mxu0 0.0
    %726 = vmatpush1.msra.mxu0 0.0
    %727 = vmatprep.subr.mxu0 0.0
    %728 = vmatpush1.msra.mxu0 0.0
    %729 = vmatprep.subr.mxu0 0.0
    %730 = vmatpush1.msra.mxu0 0.0
    %731 = vmatprep.subr.mxu0 0.0
    %732 = vmatpush1.msra.mxu0 0.0
    %733 = vmatprep.subr.mxu0 0.0
    %734 = vmatpush1.msra.mxu0 0.0
    %735 = vmatprep.subr.mxu0 0.0
    %736 = vmatpush1.msra.mxu0 0.0
    %737 = vmatprep.subr.mxu0 0.0
    %738 = vmatpush1.msra.mxu0 0.0
    %739 = vmatprep.subr.mxu0 0.0
    %v740 = vand.u32 %v138, 4294901760
    %v741 = vsub.f32 %v138, %v740
    %v742 = vand.u32 %v741, 4294901760
    %v743 = vsub.f32 %v741, %v742
    %v744 = vand.u32 %v743, 4294901760
    %745 = vmatpush1.msra.mxu0 %v744
    %746 = vmatprep.subr.mxu0 0.0
    %v747 = vand.u32 %v137, 4294901760
    %v748 = vsub.f32 %v137, %v747
    %v749 = vand.u32 %v748, 4294901760
    %v750 = vsub.f32 %v748, %v749
    %v751 = vand.u32 %v750, 4294901760
    %752 = vmatpush1.msra.mxu0 %v751
    %753 = vmatprep.subr.mxu0 0.0
    %v754 = vand.u32 %v136, 4294901760
    %v755 = vsub.f32 %v136, %v754
    %v756 = vand.u32 %v755, 4294901760
    %v757 = vsub.f32 %v755, %v756
    %v758 = vand.u32 %v757, 4294901760
    %759 = vmatpush1.msra.mxu0 %v758
    %760 = vmatprep.subr.mxu0 0.0
    %v761 = vand.u32 %v135, 4294901760
    %v762 = vsub.f32 %v135, %v761
    %v763 = vand.u32 %v762, 4294901760
    %v764 = vsub.f32 %v762, %v763
    %v765 = vand.u32 %v764, 4294901760
    %766 = vmatpush1.msra.mxu0 %v765
    %767 = vmatprep.subr.mxu0 0.0
    %768 = vmatpush2.msra.mxu0 0.0
    %769 = vmatprep.subr.mxu0 0.0
    %770 = vmatpush2.msra.mxu0 0.0
    %771 = vmatprep.subr.mxu0 0.0
    %772 = vmatpush2.msra.mxu0 0.0
    %773 = vmatprep.subr.mxu0 0.0
    %774 = vmatpush2.msra.mxu0 0.0
    %775 = vmatprep.subr.mxu0 0.0
    %776 = vmatpush2.msra.mxu0 0.0
    %777 = vmatprep.subr.mxu0 0.0
    %778 = vmatpush2.msra.mxu0 0.0
    %779 = vmatprep.subr.mxu0 0.0
    %780 = vmatpush2.msra.mxu0 0.0
    %781 = vmatprep.subr.mxu0 0.0
    %782 = vmatpush2.msra.mxu0 0.0
    %783 = vmatprep.subr.mxu0 0.0
    %784 = vmatpush2.msra.mxu0 0.0
    %785 = vmatprep.subr.mxu0 0.0
    %786 = vmatpush2.msra.mxu0 0.0
    %787 = vmatprep.subr.mxu0 0.0
    %788 = vmatpush2.msra.mxu0 0.0
    %789 = vmatprep.subr.mxu0 0.0
    %790 = vmatpush2.msra.mxu0 0.0
    %791 = vmatprep.subr.mxu0 0.0
    %792 = vmatpush2.msra.mxu0 0.0
    %793 = vmatprep.subr.mxu0 0.0
    %794 = vmatpush2.msra.mxu0 0.0
    %795 = vmatprep.subr.mxu0 0.0
    %796 = vmatpush2.msra.mxu0 0.0
    %797 = vmatprep.subr.mxu0 0.0
    %798 = vmatpush2.msra.mxu0 0.0
    %799 = vmatprep.mubr.f32.mxu0 0.0
    %v800 = vand.u32 %v634, 4294901760
    %801 = vmatmul.mubr.f32.gmra.mxu0 %v800
    %v802 = vpop.f32.mrf.mxu0
    %v803 = vadd.f32 %v712, %v802
    %v804 = vpop.f32.mrf.mxu0
    %805 = vdwg.mxu0
    %806 = vmatprep.subr.mxu0 0.0
    %807 = vmatpush1.msra.mxu0 0.0
    %808 = vmatprep.subr.mxu0 0.0
    %809 = vmatpush1.msra.mxu0 0.0
    %810 = vmatprep.subr.mxu0 0.0
    %811 = vmatpush1.msra.mxu0 0.0
    %812 = vmatprep.subr.mxu0 0.0
    %813 = vmatpush1.msra.mxu0 0.0
    %814 = vmatprep.subr.mxu0 0.0
    %815 = vmatpush1.msra.mxu0 0.0
    %816 = vmatprep.subr.mxu0 0.0
    %817 = vmatpush1.msra.mxu0 0.0
    %818 = vmatprep.subr.mxu0 0.0
    %819 = vmatpush1.msra.mxu0 0.0
    %820 = vmatprep.subr.mxu0 0.0
    %821 = vmatpush1.msra.mxu0 0.0
    %822 = vmatprep.subr.mxu0 0.0
    %823 = vmatpush1.msra.mxu0 0.0
    %824 = vmatprep.subr.mxu0 0.0
    %825 = vmatpush1.msra.mxu0 0.0
    %826 = vmatprep.subr.mxu0 0.0
    %827 = vmatpush1.msra.mxu0 0.0
    %828 = vmatprep.subr.mxu0 0.0
    %829 = vmatpush1.msra.mxu0 0.0
    %830 = vmatprep.subr.mxu0 0.0
    %v831 = vand.u32 %v138, 4294901760
    %v832 = vsub.f32 %v138, %v831
    %833 = vmatpush1.msra.mxu0 %v832
    %834 = vmatprep.subr.mxu0 0.0
    %v835 = vand.u32 %v137, 4294901760
    %v836 = vsub.f32 %v137, %v835
    %837 = vmatpush1.msra.mxu0 %v836
    %838 = vmatprep.subr.mxu0 0.0
    %v839 = vand.u32 %v136, 4294901760
    %v840 = vsub.f32 %v136, %v839
    %841 = vmatpush1.msra.mxu0 %v840
    %842 = vmatprep.subr.mxu0 0.0
    %v843 = vand.u32 %v135, 4294901760
    %v844 = vsub.f32 %v135, %v843
    %845 = vmatpush1.msra.mxu0 %v844
    %846 = vmatprep.subr.mxu0 0.0
    %847 = vmatpush2.msra.mxu0 0.0
    %848 = vmatprep.subr.mxu0 0.0
    %849 = vmatpush2.msra.mxu0 0.0
    %850 = vmatprep.subr.mxu0 0.0
    %851 = vmatpush2.msra.mxu0 0.0
    %852 = vmatprep.subr.mxu0 0.0
    %853 = vmatpush2.msra.mxu0 0.0
    %854 = vmatprep.subr.mxu0 0.0
    %855 = vmatpush2.msra.mxu0 0.0
    %856 = vmatprep.subr.mxu0 0.0
    %857 = vmatpush2.msra.mxu0 0.0
    %858 = vmatprep.subr.mxu0 0.0
    %859 = vmatpush2.msra.mxu0 0.0
    %860 = vmatprep.subr.mxu0 0.0
    %861 = vmatpush2.msra.mxu0 0.0
    %862 = vmatprep.subr.mxu0 0.0
    %863 = vmatpush2.msra.mxu0 0.0
    %864 = vmatprep.subr.mxu0 0.0
    %865 = vmatpush2.msra.mxu0 0.0
    %866 = vmatprep.subr.mxu0 0.0
    %867 = vmatpush2.msra.mxu0 0.0
    %868 = vmatprep.subr.mxu0 0.0
    %869 = vmatpush2.msra.mxu0 0.0
    %870 = vmatprep.subr.mxu0 0.0
    %871 = vmatpush2.msra.mxu0 0.0
    %872 = vmatprep.subr.mxu0 0.0
    %873 = vmatpush2.msra.mxu0 0.0
    %874 = vmatprep.subr.mxu0 0.0
    %875 = vmatpush2.msra.mxu0 0.0
    %876 = vmatprep.subr.mxu0 0.0
    %877 = vmatpush2.msra.mxu0 0.0
    %878 = vmatprep.mubr.f32.mxu0 0.0
    %v879 = vand.u32 %v634, 4294901760
    %v880 = vsub.f32 %v634, %v879
    %881 = vmatmul.mubr.f32.gmra.mxu0 %v880
    %v882 = vpop.f32.mrf.mxu0
    %v883 = vadd.f32 %v803, %v882
    %v884 = vpop.f32.mrf.mxu0
    %885 = vdwg.mxu0
    %886 = vmatprep.subr.mxu0 0.0
    %887 = vmatpush1.msra.mxu0 0.0
    %888 = vmatprep.subr.mxu0 0.0
    %889 = vmatpush1.msra.mxu0 0.0
    %890 = vmatprep.subr.mxu0 0.0
    %891 = vmatpush1.msra.mxu0 0.0
    %892 = vmatprep.subr.mxu0 0.0
    %893 = vmatpush1.msra.mxu0 0.0
    %894 = vmatprep.subr.mxu0 0.0
    %895 = vmatpush1.msra.mxu0 0.0
    %896 = vmatprep.subr.mxu0 0.0
    %897 = vmatpush1.msra.mxu0 0.0
    %898 = vmatprep.subr.mxu0 0.0
    %899 = vmatpush1.msra.mxu0 0.0
    %900 = vmatprep.subr.mxu0 0.0
    %901 = vmatpush1.msra.mxu0 0.0
    %902 = vmatprep.subr.mxu0 0.0
    %903 = vmatpush1.msra.mxu0 0.0
    %904 = vmatprep.subr.mxu0 0.0
    %905 = vmatpush1.msra.mxu0 0.0
    %906 = vmatprep.subr.mxu0 0.0
    %907 = vmatpush1.msra.mxu0 0.0
    %908 = vmatprep.subr.mxu0 0.0
    %909 = vmatpush1.msra.mxu0 0.0
    %910 = vmatprep.subr.mxu0 0.0
    %v911 = vand.u32 %v138, 4294901760
    %912 = vmatpush1.msra.mxu0 %v911
    %913 = vmatprep.subr.mxu0 0.0
    %v914 = vand.u32 %v137, 4294901760
    %915 = vmatpush1.msra.mxu0 %v914
    %916 = vmatprep.subr.mxu0 0.0
    %v917 = vand.u32 %v136, 4294901760
    %918 = vmatpush1.msra.mxu0 %v917
    %919 = vmatprep.subr.mxu0 0.0
    %v920 = vand.u32 %v135, 4294901760
    %921 = vmatpush1.msra.mxu0 %v920
    %922 = vmatprep.subr.mxu0 0.0
    %923 = vmatpush2.msra.mxu0 0.0
    %924 = vmatprep.subr.mxu0 0.0
    %925 = vmatpush2.msra.mxu0 0.0
    %926 = vmatprep.subr.mxu0 0.0
    %927 = vmatpush2.msra.mxu0 0.0
    %928 = vmatprep.subr.mxu0 0.0
    %929 = vmatpush2.msra.mxu0 0.0
    %930 = vmatprep.subr.mxu0 0.0
    %931 = vmatpush2.msra.mxu0 0.0
    %932 = vmatprep.subr.mxu0 0.0
    %933 = vmatpush2.msra.mxu0 0.0
    %934 = vmatprep.subr.mxu0 0.0
    %935 = vmatpush2.msra.mxu0 0.0
    %936 = vmatprep.subr.mxu0 0.0
    %937 = vmatpush2.msra.mxu0 0.0
    %938 = vmatprep.subr.mxu0 0.0
    %939 = vmatpush2.msra.mxu0 0.0
    %940 = vmatprep.subr.mxu0 0.0
    %941 = vmatpush2.msra.mxu0 0.0
    %942 = vmatprep.subr.mxu0 0.0
    %943 = vmatpush2.msra.mxu0 0.0
    %944 = vmatprep.subr.mxu0 0.0
    %945 = vmatpush2.msra.mxu0 0.0
    %946 = vmatprep.subr.mxu0 0.0
    %947 = vmatpush2.msra.mxu0 0.0
    %948 = vmatprep.subr.mxu0 0.0
    %949 = vmatpush2.msra.mxu0 0.0
    %950 = vmatprep.subr.mxu0 0.0
    %951 = vmatpush2.msra.mxu0 0.0
    %952 = vmatprep.subr.mxu0 0.0
    %953 = vmatpush2.msra.mxu0 0.0
    %954 = vmatprep.mubr.f32.mxu0 0.0
    %v955 = vand.u32 %v634, 4294901760
    %v956 = vsub.f32 %v634, %v955
    %v957 = vand.u32 %v956, 4294901760
    %958 = vmatmul.mubr.f32.gmra.mxu0 %v957
    %v959 = vpop.f32.mrf.mxu0
    %v960 = vadd.f32 %v883, %v959
    %v961 = vpop.f32.mrf.mxu0
    %962 = vdwg.mxu0
    %963 = vmatprep.subr.mxu0 0.0
    %964 = vmatpush1.msra.mxu0 0.0
    %965 = vmatprep.subr.mxu0 0.0
    %966 = vmatpush1.msra.mxu0 0.0
    %967 = vmatprep.subr.mxu0 0.0
    %968 = vmatpush1.msra.mxu0 0.0
    %969 = vmatprep.subr.mxu0 0.0
    %970 = vmatpush1.msra.mxu0 0.0
    %971 = vmatprep.subr.mxu0 0.0
    %972 = vmatpush1.msra.mxu0 0.0
    %973 = vmatprep.subr.mxu0 0.0
    %974 = vmatpush1.msra.mxu0 0.0
    %975 = vmatprep.subr.mxu0 0.0
    %976 = vmatpush1.msra.mxu0 0.0
    %977 = vmatprep.subr.mxu0 0.0
    %978 = vmatpush1.msra.mxu0 0.0
    %979 = vmatprep.subr.mxu0 0.0
    %980 = vmatpush1.msra.mxu0 0.0
    %981 = vmatprep.subr.mxu0 0.0
    %982 = vmatpush1.msra.mxu0 0.0
    %983 = vmatprep.subr.mxu0 0.0
    %984 = vmatpush1.msra.mxu0 0.0
    %985 = vmatprep.subr.mxu0 0.0
    %986 = vmatpush1.msra.mxu0 0.0
    %987 = vmatprep.subr.mxu0 0.0
    %v988 = vand.u32 %v138, 4294901760
    %v989 = vsub.f32 %v138, %v988
    %v990 = vand.u32 %v989, 4294901760
    %991 = vmatpush1.msra.mxu0 %v990
    %992 = vmatprep.subr.mxu0 0.0
    %v993 = vand.u32 %v137, 4294901760
    %v994 = vsub.f32 %v137, %v993
    %v995 = vand.u32 %v994, 4294901760
    %996 = vmatpush1.msra.mxu0 %v995
    %997 = vmatprep.subr.mxu0 0.0
    %v998 = vand.u32 %v136, 4294901760
    %v999 = vsub.f32 %v136, %v998
    %v1000 = vand.u32 %v999, 4294901760
    %1001 = vmatpush1.msra.mxu0 %v1000
    %1002 = vmatprep.subr.mxu0 0.0
    %v1003 = vand.u32 %v135, 4294901760
    %v1004 = vsub.f32 %v135, %v1003
    %v1005 = vand.u32 %v1004, 4294901760
    %1006 = vmatpush1.msra.mxu0 %v1005
    %1007 = vmatprep.subr.mxu0 0.0
    %1008 = vmatpush2.msra.mxu0 0.0
    %1009 = vmatprep.subr.mxu0 0.0
    %1010 = vmatpush2.msra.mxu0 0.0
    %1011 = vmatprep.subr.mxu0 0.0
    %1012 = vmatpush2.msra.mxu0 0.0
    %1013 = vmatprep.subr.mxu0 0.0
    %1014 = vmatpush2.msra.mxu0 0.0
    %1015 = vmatprep.subr.mxu0 0.0
    %1016 = vmatpush2.msra.mxu0 0.0
    %1017 = vmatprep.subr.mxu0 0.0
    %1018 = vmatpush2.msra.mxu0 0.0
    %1019 = vmatprep.subr.mxu0 0.0
    %1020 = vmatpush2.msra.mxu0 0.0
    %1021 = vmatprep.subr.mxu0 0.0
    %1022 = vmatpush2.msra.mxu0 0.0
    %1023 = vmatprep.subr.mxu0 0.0
    %1024 = vmatpush2.msra.mxu0 0.0
    %1025 = vmatprep.subr.mxu0 0.0
    %1026 = vmatpush2.msra.mxu0 0.0
    %1027 = vmatprep.subr.mxu0 0.0
    %1028 = vmatpush2.msra.mxu0 0.0
    %1029 = vmatprep.subr.mxu0 0.0
    %1030 = vmatpush2.msra.mxu0 0.0
    %1031 = vmatprep.subr.mxu0 0.0
    %1032 = vmatpush2.msra.mxu0 0.0
    %1033 = vmatprep.subr.mxu0 0.0
    %1034 = vmatpush2.msra.mxu0 0.0
    %1035 = vmatprep.subr.mxu0 0.0
    %1036 = vmatpush2.msra.mxu0 0.0
    %1037 = vmatprep.subr.mxu0 0.0
    %1038 = vmatpush2.msra.mxu0 0.0
    %1039 = vmatprep.mubr.f32.mxu0 0.0
    %v1040 = vand.u32 %v634, 4294901760
    %1041 = vmatmul.mubr.f32.gmra.mxu0 %v1040
    %v1042 = vpop.f32.mrf.mxu0
    %v1043 = vadd.f32 %v960, %v1042
    %v1044 = vpop.f32.mrf.mxu0
    %1045 = vdwg.mxu0
    %1046 = vmatprep.subr.mxu0 0.0
    %1047 = vmatpush1.msra.mxu0 0.0
    %1048 = vmatprep.subr.mxu0 0.0
    %1049 = vmatpush1.msra.mxu0 0.0
    %1050 = vmatprep.subr.mxu0 0.0
    %1051 = vmatpush1.msra.mxu0 0.0
    %1052 = vmatprep.subr.mxu0 0.0
    %1053 = vmatpush1.msra.mxu0 0.0
    %1054 = vmatprep.subr.mxu0 0.0
    %1055 = vmatpush1.msra.mxu0 0.0
    %1056 = vmatprep.subr.mxu0 0.0
    %1057 = vmatpush1.msra.mxu0 0.0
    %1058 = vmatprep.subr.mxu0 0.0
    %1059 = vmatpush1.msra.mxu0 0.0
    %1060 = vmatprep.subr.mxu0 0.0
    %1061 = vmatpush1.msra.mxu0 0.0
    %1062 = vmatprep.subr.mxu0 0.0
    %1063 = vmatpush1.msra.mxu0 0.0
    %1064 = vmatprep.subr.mxu0 0.0
    %1065 = vmatpush1.msra.mxu0 0.0
    %1066 = vmatprep.subr.mxu0 0.0
    %1067 = vmatpush1.msra.mxu0 0.0
    %1068 = vmatprep.subr.mxu0 0.0
    %1069 = vmatpush1.msra.mxu0 0.0
    %1070 = vmatprep.subr.mxu0 0.0
    %v1071 = vand.u32 %v138, 4294901760
    %1072 = vmatpush1.msra.mxu0 %v1071
    %1073 = vmatprep.subr.mxu0 0.0
    %v1074 = vand.u32 %v137, 4294901760
    %1075 = vmatpush1.msra.mxu0 %v1074
    %1076 = vmatprep.subr.mxu0 0.0
    %v1077 = vand.u32 %v136, 4294901760
    %1078 = vmatpush1.msra.mxu0 %v1077
    %1079 = vmatprep.subr.mxu0 0.0
    %v1080 = vand.u32 %v135, 4294901760
    %1081 = vmatpush1.msra.mxu0 %v1080
    %1082 = vmatprep.subr.mxu0 0.0
    %1083 = vmatpush2.msra.mxu0 0.0
    %1084 = vmatprep.subr.mxu0 0.0
    %1085 = vmatpush2.msra.mxu0 0.0
    %1086 = vmatprep.subr.mxu0 0.0
    %1087 = vmatpush2.msra.mxu0 0.0
    %1088 = vmatprep.subr.mxu0 0.0
    %1089 = vmatpush2.msra.mxu0 0.0
    %1090 = vmatprep.subr.mxu0 0.0
    %1091 = vmatpush2.msra.mxu0 0.0
    %1092 = vmatprep.subr.mxu0 0.0
    %1093 = vmatpush2.msra.mxu0 0.0
    %1094 = vmatprep.subr.mxu0 0.0
    %1095 = vmatpush2.msra.mxu0 0.0
    %1096 = vmatprep.subr.mxu0 0.0
    %1097 = vmatpush2.msra.mxu0 0.0
    %1098 = vmatprep.subr.mxu0 0.0
    %1099 = vmatpush2.msra.mxu0 0.0
    %1100 = vmatprep.subr.mxu0 0.0
    %1101 = vmatpush2.msra.mxu0 0.0
    %1102 = vmatprep.subr.mxu0 0.0
    %1103 = vmatpush2.msra.mxu0 0.0
    %1104 = vmatprep.subr.mxu0 0.0
    %1105 = vmatpush2.msra.mxu0 0.0
    %1106 = vmatprep.subr.mxu0 0.0
    %1107 = vmatpush2.msra.mxu0 0.0
    %1108 = vmatprep.subr.mxu0 0.0
    %1109 = vmatpush2.msra.mxu0 0.0
    %1110 = vmatprep.subr.mxu0 0.0
    %1111 = vmatpush2.msra.mxu0 0.0
    %1112 = vmatprep.subr.mxu0 0.0
    %1113 = vmatpush2.msra.mxu0 0.0
    %1114 = vmatprep.mubr.f32.mxu0 0.0
    %v1115 = vand.u32 %v634, 4294901760
    %1116 = vmatmul.mubr.f32.gmra.mxu0 %v1115
    %v1117 = vpop.f32.mrf.mxu0
    %v1118 = vadd.f32 %v1043, %v1117
    %v1119 = vpop.f32.mrf.mxu0
    %1120 = vdwg.mxu0
    %v1122 = vlaneseq
    %v1123 = vshrl.u32 %v1122, 7
    %v1124 = vsub.s32 0, %v1123
    %v1125 = vrot.slane %v143, %v1124
    %v1127 = vadd.f32 %v1118, %v1125
    %v1128 = vxor.u32 %v1127, 2147483648
    %v1129 = vmul.f32 %v1128, 1.442695
    %v1130 = vpow.pop %v1129
    %v1131 = vadd.f32 %v1130, 1.0
    %v1132 = vrcp.pop %v1131
    %v1133 = vmul.f32 1.0, %v1132
    %1135 = vrot.lane.b32.xlu0 %v1127, 32
    %v1136 = vpop.permute.xlu0 %1135
    %v1138 = vmul.f32 %v1133, %v1136
    %1140 = vrot.lane.b32.xlu0 %v1138, 64
    %v1141 = vpop.permute.xlu0 %1140
    %v1143 = vadd.f32 %v1127, %v1141
    %v1144 = vtanh.pop %v1143
    %v1145 = vsub.f32 1.0, %v1133
    %1147 = vrot.lane.b32.xlu0 %v1144, 96
    %v1148 = vpop.permute.xlu0 %1147
    %v1150 = vmul.f32 %v1145, %v1148
    %1151 = vrot.lane.b32.xlu0 %v134, 32
    %v1152 = vpop.permute.xlu0 %1151
    %v1154 = vmul.f32 %v1133, %v1152
    %v1155 = vadd.f32 %v1150, %v1154
    %1157 = vrot.lane.b32.xlu0 %v1155, 96
    %v1158 = vpop.permute.xlu0 %1157
    %1160 = vst.msk [vmem:[#allocation15] sm:$0xff] %vm144, %v1158
    %v1161 = vld [vmem:[#allocation10] sm:$0xff]
    %v1162 = vld [vmem:[#allocation10 + $0x8] sm:$0xff]
    %v1163 = vld [vmem:[#allocation10 + $0x10] sm:$0xff]
    %v1164 = vld [vmem:[#allocation10 + $0x18] sm:$0xff]
    %v1165 = vld [vmem:[#allocation10 + $0x20] sm:$0xff]
    %v1166 = vld [vmem:[#allocation10 + $0x28] sm:$0xff]
    %v1167 = vld [vmem:[#allocation10 + $0x30] sm:$0xff]
    %v1168 = vld [vmem:[#allocation10 + $0x38] sm:$0xff]
    %v1169 = vld [vmem:[%s6] sm:$0x3]
    %v1170 = vld [vmem:[#allocation11] sm:$0xff]
    %v1171 = vld [vmem:[#allocation11 + $0x8] sm:$0xff]
    %v1172 = vld [vmem:[#allocation11 + $0x10] sm:$0xff]
    %v1173 = vld [vmem:[#allocation11 + $0x18] sm:$0xff]
    %v1174 = vld [vmem:[#allocation11 + $0x20] sm:$0xff]
    %v1175 = vld [vmem:[#allocation11 + $0x28] sm:$0xff]
    %v1176 = vld [vmem:[#allocation11 + $0x30] sm:$0xff]
    %v1177 = vld [vmem:[#allocation11 + $0x38] sm:$0xff]
    %v1178 = vld [vmem:[#allocation11 + $0x40] sm:$0xff]
    %v1179 = vld [vmem:[#allocation11 + $0x48] sm:$0xff]
    %v1180 = vld [vmem:[#allocation11 + $0x50] sm:$0xff]
    %v1181 = vld [vmem:[#allocation11 + $0x58] sm:$0xff]
    %v1182 = vld [vmem:[#allocation11 + $0x60] sm:$0xff]
    %v1183 = vld [vmem:[#allocation11 + $0x68] sm:$0xff]
    %v1184 = vld [vmem:[#allocation11 + $0x70] sm:$0xff]
    %v1185 = vld [vmem:[#allocation11 + $0x78] sm:$0xff]
    %v1186 = vld [vmem:[#allocation11 + $0x80] sm:$0xff]
    %v1187 = vld [vmem:[#allocation11 + $0x88] sm:$0xff]
    %v1188 = vld [vmem:[#allocation11 + $0x90] sm:$0xff]
    %v1189 = vld [vmem:[#allocation11 + $0x98] sm:$0xff]
    %v1190 = vld [vmem:[#allocation11 + $0xa0] sm:$0xff]
    %v1191 = vld [vmem:[#allocation11 + $0xa8] sm:$0xff]
    %v1192 = vld [vmem:[#allocation11 + $0xb0] sm:$0xff]
    %v1193 = vld [vmem:[#allocation11 + $0xb8] sm:$0xff]
    %v1194 = vld [vmem:[#allocation11 + $0xc0] sm:$0xff]
    %v1195 = vld [vmem:[#allocation11 + $0xc8] sm:$0xff]
    %v1196 = vld [vmem:[#allocation11 + $0xd0] sm:$0xff]
    %v1197 = vld [vmem:[#allocation11 + $0xd8] sm:$0xff]
    %v1198 = vld [vmem:[#allocation11 + $0xe0] sm:$0xff]
    %v1199 = vld [vmem:[#allocation11 + $0xe8] sm:$0xff]
    %v1200 = vld [vmem:[#allocation11 + $0xf0] sm:$0xff]
    %v1201 = vld [vmem:[#allocation11 + $0xf8] sm:$0xff]
    %v1202 = vld [vmem:[%s8] sm:$0x1]
    %v1203 = vld [vmem:[#allocation13] sm:$0xff]
    %v1204 = vld [vmem:[#allocation13 + $0x8] sm:$0xff]
    %v1205 = vld [vmem:[#allocation13 + $0x10] sm:$0xff]
    %v1206 = vld [vmem:[#allocation13 + $0x18] sm:$0xff]
    %v1207 = vld [vmem:[#allocation13 + $0x20] sm:$0xff]
    %v1208 = vld [vmem:[#allocation13 + $0x28] sm:$0xff]
    %v1209 = vld [vmem:[#allocation13 + $0x30] sm:$0xff]
    %v1210 = vld [vmem:[#allocation13 + $0x38] sm:$0xff]
    %v1211 = vld [vmem:[#allocation13 + $0x40] sm:$0xff]
    %v1212 = vld [vmem:[#allocation13 + $0x48] sm:$0xff]
    %v1213 = vld [vmem:[#allocation13 + $0x50] sm:$0xff]
    %v1214 = vld [vmem:[#allocation13 + $0x58] sm:$0xff]
    %v1215 = vld [vmem:[#allocation13 + $0x60] sm:$0xff]
    %v1216 = vld [vmem:[#allocation13 + $0x68] sm:$0xff]
    %v1217 = vld [vmem:[#allocation13 + $0x70] sm:$0xff]
    %v1218 = vld [vmem:[#allocation13 + $0x78] sm:$0xff]
    %v1219 = vld [vmem:[%s10] sm:$0x1]
    %v1221 = vlaneseq
    %v1222 = vshrl.u32 %v1221, 7
    %v1223 = vsub.s32 0, %v1222
    %v1224 = vrot.slane %v1169, %v1223
    %v1225 = vlaneseq
    %v1226 = vshrl.u32 %v1225, 7
    %v1227 = vsub.s32 1, %v1226
    %v1228 = vrot.slane %v1169, %v1227
    %v1231 = vsel %vm144, %v1158, 0
    %1233 = vmatprep.subr.mxu0 0.0
    %1234 = vmatpush1.msra.mxu0 0.0
    %1235 = vmatprep.subr.mxu0 0.0
    %1236 = vmatpush1.msra.mxu0 0.0
    %1237 = vmatprep.subr.mxu0 0.0
    %1238 = vmatpush1.msra.mxu0 0.0
    %1239 = vmatprep.subr.mxu0 0.0
    %1240 = vmatpush1.msra.mxu0 0.0
    %1241 = vmatprep.subr.mxu0 0.0
    %1242 = vmatpush1.msra.mxu0 0.0
    %1243 = vmatprep.subr.mxu0 0.0
    %1244 = vmatpush1.msra.mxu0 0.0
    %1245 = vmatprep.subr.mxu0 0.0
    %1246 = vmatpush1.msra.mxu0 0.0
    %1247 = vmatprep.subr.mxu0 0.0
    %1248 = vmatpush1.msra.mxu0 0.0
    %1249 = vmatprep.subr.mxu0 0.0
    %1250 = vmatpush1.msra.mxu0 0.0
    %1251 = vmatprep.subr.mxu0 0.0
    %1252 = vmatpush1.msra.mxu0 0.0
    %1253 = vmatprep.subr.mxu0 0.0
    %1254 = vmatpush1.msra.mxu0 0.0
    %1255 = vmatprep.subr.mxu0 0.0
    %1256 = vmatpush1.msra.mxu0 0.0
    %v1257 = vand.u32 %v1168, 4294901760
    %1258 = vmatprep.subr.mxu0 %v1257
    %v1259 = vand.u32 %v1167, 4294901760
    %1260 = vmatpush1.msra.mxu0 %v1259
    %v1261 = vand.u32 %v1166, 4294901760
    %1262 = vmatprep.subr.mxu0 %v1261
    %v1263 = vand.u32 %v1165, 4294901760
    %1264 = vmatpush1.msra.mxu0 %v1263
    %v1265 = vand.u32 %v1164, 4294901760
    %1266 = vmatprep.subr.mxu0 %v1265
    %v1267 = vand.u32 %v1163, 4294901760
    %1268 = vmatpush1.msra.mxu0 %v1267
    %v1269 = vand.u32 %v1162, 4294901760
    %1270 = vmatprep.subr.mxu0 %v1269
    %v1271 = vand.u32 %v1161, 4294901760
    %1272 = vmatpush1.msra.mxu0 %v1271
    %1273 = vmatprep.subr.mxu0 0.0
    %1274 = vmatpush2.msra.mxu0 0.0
    %1275 = vmatprep.subr.mxu0 0.0
    %1276 = vmatpush2.msra.mxu0 0.0
    %1277 = vmatprep.subr.mxu0 0.0
    %1278 = vmatpush2.msra.mxu0 0.0
    %1279 = vmatprep.subr.mxu0 0.0
    %1280 = vmatpush2.msra.mxu0 0.0
    %1281 = vmatprep.subr.mxu0 0.0
    %1282 = vmatpush2.msra.mxu0 0.0
    %1283 = vmatprep.subr.mxu0 0.0
    %1284 = vmatpush2.msra.mxu0 0.0
    %1285 = vmatprep.subr.mxu0 0.0
    %1286 = vmatpush2.msra.mxu0 0.0
    %1287 = vmatprep.subr.mxu0 0.0
    %1288 = vmatpush2.msra.mxu0 0.0
    %1289 = vmatprep.subr.mxu0 0.0
    %1290 = vmatpush2.msra.mxu0 0.0
    %1291 = vmatprep.subr.mxu0 0.0
    %1292 = vmatpush2.msra.mxu0 0.0
    %1293 = vmatprep.subr.mxu0 0.0
    %1294 = vmatpush2.msra.mxu0 0.0
    %1295 = vmatprep.subr.mxu0 0.0
    %1296 = vmatpush2.msra.mxu0 0.0
    %1297 = vmatprep.subr.mxu0 0.0
    %1298 = vmatpush2.msra.mxu0 0.0
    %1299 = vmatprep.subr.mxu0 0.0
    %1300 = vmatpush2.msra.mxu0 0.0
    %1301 = vmatprep.subr.mxu0 0.0
    %1302 = vmatpush2.msra.mxu0 0.0
    %1303 = vmatprep.subr.mxu0 0.0
    %1304 = vmatpush2.msra.mxu0 0.0
    %1305 = vmatprep.mubr.f32.mxu0 0.0
    %v1306 = vand.u32 %v1231, 4294901760
    %v1307 = vsub.f32 %v1231, %v1306
    %v1308 = vand.u32 %v1307, 4294901760
    %v1309 = vsub.f32 %v1307, %v1308
    %v1310 = vand.u32 %v1309, 4294901760
    %1311 = vmatmul.mubr.f32.gmra.mxu0 %v1310
    %v1312 = vpop.f32.mrf.mxu0
    %v1313 = vadd.f32 %v1224, %v1312
    %v1314 = vpop.f32.mrf.mxu0
    %v1315 = vadd.f32 %v1228, %v1314
    %1316 = vdwg.mxu0
    %1317 = vmatprep.subr.mxu0 0.0
    %1318 = vmatpush1.msra.mxu0 0.0
    %1319 = vmatprep.subr.mxu0 0.0
    %1320 = vmatpush1.msra.mxu0 0.0
    %1321 = vmatprep.subr.mxu0 0.0
    %1322 = vmatpush1.msra.mxu0 0.0
    %1323 = vmatprep.subr.mxu0 0.0
    %1324 = vmatpush1.msra.mxu0 0.0
    %1325 = vmatprep.subr.mxu0 0.0
    %1326 = vmatpush1.msra.mxu0 0.0
    %1327 = vmatprep.subr.mxu0 0.0
    %1328 = vmatpush1.msra.mxu0 0.0
    %1329 = vmatprep.subr.mxu0 0.0
    %1330 = vmatpush1.msra.mxu0 0.0
    %1331 = vmatprep.subr.mxu0 0.0
    %1332 = vmatpush1.msra.mxu0 0.0
    %1333 = vmatprep.subr.mxu0 0.0
    %1334 = vmatpush1.msra.mxu0 0.0
    %1335 = vmatprep.subr.mxu0 0.0
    %1336 = vmatpush1.msra.mxu0 0.0
    %1337 = vmatprep.subr.mxu0 0.0
    %1338 = vmatpush1.msra.mxu0 0.0
    %1339 = vmatprep.subr.mxu0 0.0
    %1340 = vmatpush1.msra.mxu0 0.0
    %v1341 = vand.u32 %v1168, 4294901760
    %v1342 = vsub.f32 %v1168, %v1341
    %v1343 = vand.u32 %v1342, 4294901760
    %v1344 = vsub.f32 %v1342, %v1343
    %v1345 = vand.u32 %v1344, 4294901760
    %1346 = vmatprep.subr.mxu0 %v1345
    %v1347 = vand.u32 %v1167, 4294901760
    %v1348 = vsub.f32 %v1167, %v1347
    %v1349 = vand.u32 %v1348, 4294901760
    %v1350 = vsub.f32 %v1348, %v1349
    %v1351 = vand.u32 %v1350, 4294901760
    %1352 = vmatpush1.msra.mxu0 %v1351
    %v1353 = vand.u32 %v1166, 4294901760
    %v1354 = vsub.f32 %v1166, %v1353
    %v1355 = vand.u32 %v1354, 4294901760
    %v1356 = vsub.f32 %v1354, %v1355
    %v1357 = vand.u32 %v1356, 4294901760
    %1358 = vmatprep.subr.mxu0 %v1357
    %v1359 = vand.u32 %v1165, 4294901760
    %v1360 = vsub.f32 %v1165, %v1359
    %v1361 = vand.u32 %v1360, 4294901760
    %v1362 = vsub.f32 %v1360, %v1361
    %v1363 = vand.u32 %v1362, 4294901760
    %1364 = vmatpush1.msra.mxu0 %v1363
    %v1365 = vand.u32 %v1164, 4294901760
    %v1366 = vsub.f32 %v1164, %v1365
    %v1367 = vand.u32 %v1366, 4294901760
    %v1368 = vsub.f32 %v1366, %v1367
    %v1369 = vand.u32 %v1368, 4294901760
    %1370 = vmatprep.subr.mxu0 %v1369
    %v1371 = vand.u32 %v1163, 4294901760
    %v1372 = vsub.f32 %v1163, %v1371
    %v1373 = vand.u32 %v1372, 4294901760
    %v1374 = vsub.f32 %v1372, %v1373
    %v1375 = vand.u32 %v1374, 4294901760
    %1376 = vmatpush1.msra.mxu0 %v1375
    %v1377 = vand.u32 %v1162, 4294901760
    %v1378 = vsub.f32 %v1162, %v1377
    %v1379 = vand.u32 %v1378, 4294901760
    %v1380 = vsub.f32 %v1378, %v1379
    %v1381 = vand.u32 %v1380, 4294901760
    %1382 = vmatprep.subr.mxu0 %v1381
    %v1383 = vand.u32 %v1161, 4294901760
    %v1384 = vsub.f32 %v1161, %v1383
    %v1385 = vand.u32 %v1384, 4294901760
    %v1386 = vsub.f32 %v1384, %v1385
    %v1387 = vand.u32 %v1386, 4294901760
    %1388 = vmatpush1.msra.mxu0 %v1387
    %1389 = vmatprep.subr.mxu0 0.0
    %1390 = vmatpush2.msra.mxu0 0.0
    %1391 = vmatprep.subr.mxu0 0.0
    %1392 = vmatpush2.msra.mxu0 0.0
    %1393 = vmatprep.subr.mxu0 0.0
    %1394 = vmatpush2.msra.mxu0 0.0
    %1395 = vmatprep.subr.mxu0 0.0
    %1396 = vmatpush2.msra.mxu0 0.0
    %1397 = vmatprep.subr.mxu0 0.0
    %1398 = vmatpush2.msra.mxu0 0.0
    %1399 = vmatprep.subr.mxu0 0.0
    %1400 = vmatpush2.msra.mxu0 0.0
    %1401 = vmatprep.subr.mxu0 0.0
    %1402 = vmatpush2.msra.mxu0 0.0
    %1403 = vmatprep.subr.mxu0 0.0
    %1404 = vmatpush2.msra.mxu0 0.0
    %1405 = vmatprep.subr.mxu0 0.0
    %1406 = vmatpush2.msra.mxu0 0.0
    %1407 = vmatprep.subr.mxu0 0.0
    %1408 = vmatpush2.msra.mxu0 0.0
    %1409 = vmatprep.subr.mxu0 0.0
    %1410 = vmatpush2.msra.mxu0 0.0
    %1411 = vmatprep.subr.mxu0 0.0
    %1412 = vmatpush2.msra.mxu0 0.0
    %1413 = vmatprep.subr.mxu0 0.0
    %1414 = vmatpush2.msra.mxu0 0.0
    %1415 = vmatprep.subr.mxu0 0.0
    %1416 = vmatpush2.msra.mxu0 0.0
    %1417 = vmatprep.subr.mxu0 0.0
    %1418 = vmatpush2.msra.mxu0 0.0
    %1419 = vmatprep.subr.mxu0 0.0
    %1420 = vmatpush2.msra.mxu0 0.0
    %1421 = vmatprep.mubr.f32.mxu0 0.0
    %v1422 = vand.u32 %v1231, 4294901760
    %1423 = vmatmul.mubr.f32.gmra.mxu0 %v1422
    %v1424 = vpop.f32.mrf.mxu0
    %v1425 = vadd.f32 %v1313, %v1424
    %v1426 = vpop.f32.mrf.mxu0
    %v1427 = vadd.f32 %v1315, %v1426
    %1428 = vdwg.mxu0
    %1429 = vmatprep.subr.mxu0 0.0
    %1430 = vmatpush1.msra.mxu0 0.0
    %1431 = vmatprep.subr.mxu0 0.0
    %1432 = vmatpush1.msra.mxu0 0.0
    %1433 = vmatprep.subr.mxu0 0.0
    %1434 = vmatpush1.msra.mxu0 0.0
    %1435 = vmatprep.subr.mxu0 0.0
    %1436 = vmatpush1.msra.mxu0 0.0
    %1437 = vmatprep.subr.mxu0 0.0
    %1438 = vmatpush1.msra.mxu0 0.0
    %1439 = vmatprep.subr.mxu0 0.0
    %1440 = vmatpush1.msra.mxu0 0.0
    %1441 = vmatprep.subr.mxu0 0.0
    %1442 = vmatpush1.msra.mxu0 0.0
    %1443 = vmatprep.subr.mxu0 0.0
    %1444 = vmatpush1.msra.mxu0 0.0
    %1445 = vmatprep.subr.mxu0 0.0
    %1446 = vmatpush1.msra.mxu0 0.0
    %1447 = vmatprep.subr.mxu0 0.0
    %1448 = vmatpush1.msra.mxu0 0.0
    %1449 = vmatprep.subr.mxu0 0.0
    %1450 = vmatpush1.msra.mxu0 0.0
    %1451 = vmatprep.subr.mxu0 0.0
    %1452 = vmatpush1.msra.mxu0 0.0
    %v1453 = vand.u32 %v1168, 4294901760
    %v1454 = vsub.f32 %v1168, %v1453
    %1455 = vmatprep.subr.mxu0 %v1454
    %v1456 = vand.u32 %v1167, 4294901760
    %v1457 = vsub.f32 %v1167, %v1456
    %1458 = vmatpush1.msra.mxu0 %v1457
    %v1459 = vand.u32 %v1166, 4294901760
    %v1460 = vsub.f32 %v1166, %v1459
    %1461 = vmatprep.subr.mxu0 %v1460
    %v1462 = vand.u32 %v1165, 4294901760
    %v1463 = vsub.f32 %v1165, %v1462
    %1464 = vmatpush1.msra.mxu0 %v1463
    %v1465 = vand.u32 %v1164, 4294901760
    %v1466 = vsub.f32 %v1164, %v1465
    %1467 = vmatprep.subr.mxu0 %v1466
    %v1468 = vand.u32 %v1163, 4294901760
    %v1469 = vsub.f32 %v1163, %v1468
    %1470 = vmatpush1.msra.mxu0 %v1469
    %v1471 = vand.u32 %v1162, 4294901760
    %v1472 = vsub.f32 %v1162, %v1471
    %1473 = vmatprep.subr.mxu0 %v1472
    %v1474 = vand.u32 %v1161, 4294901760
    %v1475 = vsub.f32 %v1161, %v1474
    %1476 = vmatpush1.msra.mxu0 %v1475
    %1477 = vmatprep.subr.mxu0 0.0
    %1478 = vmatpush2.msra.mxu0 0.0
    %1479 = vmatprep.subr.mxu0 0.0
    %1480 = vmatpush2.msra.mxu0 0.0
    %1481 = vmatprep.subr.mxu0 0.0
    %1482 = vmatpush2.msra.mxu0 0.0
    %1483 = vmatprep.subr.mxu0 0.0
    %1484 = vmatpush2.msra.mxu0 0.0
    %1485 = vmatprep.subr.mxu0 0.0
    %1486 = vmatpush2.msra.mxu0 0.0
    %1487 = vmatprep.subr.mxu0 0.0
    %1488 = vmatpush2.msra.mxu0 0.0
    %1489 = vmatprep.subr.mxu0 0.0
    %1490 = vmatpush2.msra.mxu0 0.0
    %1491 = vmatprep.subr.mxu0 0.0
    %1492 = vmatpush2.msra.mxu0 0.0
    %1493 = vmatprep.subr.mxu0 0.0
    %1494 = vmatpush2.msra.mxu0 0.0
    %1495 = vmatprep.subr.mxu0 0.0
    %1496 = vmatpush2.msra.mxu0 0.0
    %1497 = vmatprep.subr.mxu0 0.0
    %1498 = vmatpush2.msra.mxu0 0.0
    %1499 = vmatprep.subr.mxu0 0.0
    %1500 = vmatpush2.msra.mxu0 0.0
    %1501 = vmatprep.subr.mxu0 0.0
    %1502 = vmatpush2.msra.mxu0 0.0
    %1503 = vmatprep.subr.mxu0 0.0
    %1504 = vmatpush2.msra.mxu0 0.0
    %1505 = vmatprep.subr.mxu0 0.0
    %1506 = vmatpush2.msra.mxu0 0.0
    %1507 = vmatprep.subr.mxu0 0.0
    %1508 = vmatpush2.msra.mxu0 0.0
    %1509 = vmatprep.mubr.f32.mxu0 0.0
    %v1510 = vand.u32 %v1231, 4294901760
    %v1511 = vsub.f32 %v1231, %v1510
    %1512 = vmatmul.mubr.f32.gmra.mxu0 %v1511
    %v1513 = vpop.f32.mrf.mxu0
    %v1514 = vadd.f32 %v1425, %v1513
    %v1515 = vpop.f32.mrf.mxu0
    %v1516 = vadd.f32 %v1427, %v1515
    %1517 = vdwg.mxu0
    %1518 = vmatprep.subr.mxu0 0.0
    %1519 = vmatpush1.msra.mxu0 0.0
    %1520 = vmatprep.subr.mxu0 0.0
    %1521 = vmatpush1.msra.mxu0 0.0
    %1522 = vmatprep.subr.mxu0 0.0
    %1523 = vmatpush1.msra.mxu0 0.0
    %1524 = vmatprep.subr.mxu0 0.0
    %1525 = vmatpush1.msra.mxu0 0.0
    %1526 = vmatprep.subr.mxu0 0.0
    %1527 = vmatpush1.msra.mxu0 0.0
    %1528 = vmatprep.subr.mxu0 0.0
    %1529 = vmatpush1.msra.mxu0 0.0
    %1530 = vmatprep.subr.mxu0 0.0
    %1531 = vmatpush1.msra.mxu0 0.0
    %1532 = vmatprep.subr.mxu0 0.0
    %1533 = vmatpush1.msra.mxu0 0.0
    %1534 = vmatprep.subr.mxu0 0.0
    %1535 = vmatpush1.msra.mxu0 0.0
    %1536 = vmatprep.subr.mxu0 0.0
    %1537 = vmatpush1.msra.mxu0 0.0
    %1538 = vmatprep.subr.mxu0 0.0
    %1539 = vmatpush1.msra.mxu0 0.0
    %1540 = vmatprep.subr.mxu0 0.0
    %1541 = vmatpush1.msra.mxu0 0.0
    %v1542 = vand.u32 %v1168, 4294901760
    %1543 = vmatprep.subr.mxu0 %v1542
    %v1544 = vand.u32 %v1167, 4294901760
    %1545 = vmatpush1.msra.mxu0 %v1544
    %v1546 = vand.u32 %v1166, 4294901760
    %1547 = vmatprep.subr.mxu0 %v1546
    %v1548 = vand.u32 %v1165, 4294901760
    %1549 = vmatpush1.msra.mxu0 %v1548
    %v1550 = vand.u32 %v1164, 4294901760
    %1551 = vmatprep.subr.mxu0 %v1550
    %v1552 = vand.u32 %v1163, 4294901760
    %1553 = vmatpush1.msra.mxu0 %v1552
    %v1554 = vand.u32 %v1162, 4294901760
    %1555 = vmatprep.subr.mxu0 %v1554
    %v1556 = vand.u32 %v1161, 4294901760
    %1557 = vmatpush1.msra.mxu0 %v1556
    %1558 = vmatprep.subr.mxu0 0.0
    %1559 = vmatpush2.msra.mxu0 0.0
    %1560 = vmatprep.subr.mxu0 0.0
    %1561 = vmatpush2.msra.mxu0 0.0
    %1562 = vmatprep.subr.mxu0 0.0
    %1563 = vmatpush2.msra.mxu0 0.0
    %1564 = vmatprep.subr.mxu0 0.0
    %1565 = vmatpush2.msra.mxu0 0.0
    %1566 = vmatprep.subr.mxu0 0.0
    %1567 = vmatpush2.msra.mxu0 0.0
    %1568 = vmatprep.subr.mxu0 0.0
    %1569 = vmatpush2.msra.mxu0 0.0
    %1570 = vmatprep.subr.mxu0 0.0
    %1571 = vmatpush2.msra.mxu0 0.0
    %1572 = vmatprep.subr.mxu0 0.0
    %1573 = vmatpush2.msra.mxu0 0.0
    %1574 = vmatprep.subr.mxu0 0.0
    %1575 = vmatpush2.msra.mxu0 0.0
    %1576 = vmatprep.subr.mxu0 0.0
    %1577 = vmatpush2.msra.mxu0 0.0
    %1578 = vmatprep.subr.mxu0 0.0
    %1579 = vmatpush2.msra.mxu0 0.0
    %1580 = vmatprep.subr.mxu0 0.0
    %1581 = vmatpush2.msra.mxu0 0.0
    %1582 = vmatprep.subr.mxu0 0.0
    %1583 = vmatpush2.msra.mxu0 0.0
    %1584 = vmatprep.subr.mxu0 0.0
    %1585 = vmatpush2.msra.mxu0 0.0
    %1586 = vmatprep.subr.mxu0 0.0
    %1587 = vmatpush2.msra.mxu0 0.0
    %1588 = vmatprep.subr.mxu0 0.0
    %1589 = vmatpush2.msra.mxu0 0.0
    %1590 = vmatprep.mubr.f32.mxu0 0.0
    %v1591 = vand.u32 %v1231, 4294901760
    %v1592 = vsub.f32 %v1231, %v1591
    %v1593 = vand.u32 %v1592, 4294901760
    %1594 = vmatmul.mubr.f32.gmra.mxu0 %v1593
    %v1595 = vpop.f32.mrf.mxu0
    %v1596 = vadd.f32 %v1514, %v1595
    %v1597 = vpop.f32.mrf.mxu0
    %v1598 = vadd.f32 %v1516, %v1597
    %1599 = vdwg.mxu0
    %1600 = vmatprep.subr.mxu0 0.0
    %1601 = vmatpush1.msra.mxu0 0.0
    %1602 = vmatprep.subr.mxu0 0.0
    %1603 = vmatpush1.msra.mxu0 0.0
    %1604 = vmatprep.subr.mxu0 0.0
    %1605 = vmatpush1.msra.mxu0 0.0
    %1606 = vmatprep.subr.mxu0 0.0
    %1607 = vmatpush1.msra.mxu0 0.0
    %1608 = vmatprep.subr.mxu0 0.0
    %1609 = vmatpush1.msra.mxu0 0.0
    %1610 = vmatprep.subr.mxu0 0.0
    %1611 = vmatpush1.msra.mxu0 0.0
    %1612 = vmatprep.subr.mxu0 0.0
    %1613 = vmatpush1.msra.mxu0 0.0
    %1614 = vmatprep.subr.mxu0 0.0
    %1615 = vmatpush1.msra.mxu0 0.0
    %1616 = vmatprep.subr.mxu0 0.0
    %1617 = vmatpush1.msra.mxu0 0.0
    %1618 = vmatprep.subr.mxu0 0.0
    %1619 = vmatpush1.msra.mxu0 0.0
    %1620 = vmatprep.subr.mxu0 0.0
    %1621 = vmatpush1.msra.mxu0 0.0
    %1622 = vmatprep.subr.mxu0 0.0
    %1623 = vmatpush1.msra.mxu0 0.0
    %v1624 = vand.u32 %v1168, 4294901760
    %v1625 = vsub.f32 %v1168, %v1624
    %v1626 = vand.u32 %v1625, 4294901760
    %1627 = vmatprep.subr.mxu0 %v1626
    %v1628 = vand.u32 %v1167, 4294901760
    %v1629 = vsub.f32 %v1167, %v1628
    %v1630 = vand.u32 %v1629, 4294901760
    %1631 = vmatpush1.msra.mxu0 %v1630
    %v1632 = vand.u32 %v1166, 4294901760
    %v1633 = vsub.f32 %v1166, %v1632
    %v1634 = vand.u32 %v1633, 4294901760
    %1635 = vmatprep.subr.mxu0 %v1634
    %v1636 = vand.u32 %v1165, 4294901760
    %v1637 = vsub.f32 %v1165, %v1636
    %v1638 = vand.u32 %v1637, 4294901760
    %1639 = vmatpush1.msra.mxu0 %v1638
    %v1640 = vand.u32 %v1164, 4294901760
    %v1641 = vsub.f32 %v1164, %v1640
    %v1642 = vand.u32 %v1641, 4294901760
    %1643 = vmatprep.subr.mxu0 %v1642
    %v1644 = vand.u32 %v1163, 4294901760
    %v1645 = vsub.f32 %v1163, %v1644
    %v1646 = vand.u32 %v1645, 4294901760
    %1647 = vmatpush1.msra.mxu0 %v1646
    %v1648 = vand.u32 %v1162, 4294901760
    %v1649 = vsub.f32 %v1162, %v1648
    %v1650 = vand.u32 %v1649, 4294901760
    %1651 = vmatprep.subr.mxu0 %v1650
    %v1652 = vand.u32 %v1161, 4294901760
    %v1653 = vsub.f32 %v1161, %v1652
    %v1654 = vand.u32 %v1653, 4294901760
    %1655 = vmatpush1.msra.mxu0 %v1654
    %1656 = vmatprep.subr.mxu0 0.0
    %1657 = vmatpush2.msra.mxu0 0.0
    %1658 = vmatprep.subr.mxu0 0.0
    %1659 = vmatpush2.msra.mxu0 0.0
    %1660 = vmatprep.subr.mxu0 0.0
    %1661 = vmatpush2.msra.mxu0 0.0
    %1662 = vmatprep.subr.mxu0 0.0
    %1663 = vmatpush2.msra.mxu0 0.0
    %1664 = vmatprep.subr.mxu0 0.0
    %1665 = vmatpush2.msra.mxu0 0.0
    %1666 = vmatprep.subr.mxu0 0.0
    %1667 = vmatpush2.msra.mxu0 0.0
    %1668 = vmatprep.subr.mxu0 0.0
    %1669 = vmatpush2.msra.mxu0 0.0
    %1670 = vmatprep.subr.mxu0 0.0
    %1671 = vmatpush2.msra.mxu0 0.0
    %1672 = vmatprep.subr.mxu0 0.0
    %1673 = vmatpush2.msra.mxu0 0.0
    %1674 = vmatprep.subr.mxu0 0.0
    %1675 = vmatpush2.msra.mxu0 0.0
    %1676 = vmatprep.subr.mxu0 0.0
    %1677 = vmatpush2.msra.mxu0 0.0
    %1678 = vmatprep.subr.mxu0 0.0
    %1679 = vmatpush2.msra.mxu0 0.0
    %1680 = vmatprep.subr.mxu0 0.0
    %1681 = vmatpush2.msra.mxu0 0.0
    %1682 = vmatprep.subr.mxu0 0.0
    %1683 = vmatpush2.msra.mxu0 0.0
    %1684 = vmatprep.subr.mxu0 0.0
    %1685 = vmatpush2.msra.mxu0 0.0
    %1686 = vmatprep.subr.mxu0 0.0
    %1687 = vmatpush2.msra.mxu0 0.0
    %1688 = vmatprep.mubr.f32.mxu0 0.0
    %v1689 = vand.u32 %v1231, 4294901760
    %1690 = vmatmul.mubr.f32.gmra.mxu0 %v1689
    %v1691 = vpop.f32.mrf.mxu0
    %v1692 = vadd.f32 %v1596, %v1691
    %v1693 = vpop.f32.mrf.mxu0
    %v1694 = vadd.f32 %v1598, %v1693
    %1695 = vdwg.mxu0
    %1696 = vmatprep.subr.mxu0 0.0
    %1697 = vmatpush1.msra.mxu0 0.0
    %1698 = vmatprep.subr.mxu0 0.0
    %1699 = vmatpush1.msra.mxu0 0.0
    %1700 = vmatprep.subr.mxu0 0.0
    %1701 = vmatpush1.msra.mxu0 0.0
    %1702 = vmatprep.subr.mxu0 0.0
    %1703 = vmatpush1.msra.mxu0 0.0
    %1704 = vmatprep.subr.mxu0 0.0
    %1705 = vmatpush1.msra.mxu0 0.0
    %1706 = vmatprep.subr.mxu0 0.0
    %1707 = vmatpush1.msra.mxu0 0.0
    %1708 = vmatprep.subr.mxu0 0.0
    %1709 = vmatpush1.msra.mxu0 0.0
    %1710 = vmatprep.subr.mxu0 0.0
    %1711 = vmatpush1.msra.mxu0 0.0
    %1712 = vmatprep.subr.mxu0 0.0
    %1713 = vmatpush1.msra.mxu0 0.0
    %1714 = vmatprep.subr.mxu0 0.0
    %1715 = vmatpush1.msra.mxu0 0.0
    %1716 = vmatprep.subr.mxu0 0.0
    %1717 = vmatpush1.msra.mxu0 0.0
    %1718 = vmatprep.subr.mxu0 0.0
    %1719 = vmatpush1.msra.mxu0 0.0
    %v1720 = vand.u32 %v1168, 4294901760
    %1721 = vmatprep.subr.mxu0 %v1720
    %v1722 = vand.u32 %v1167, 4294901760
    %1723 = vmatpush1.msra.mxu0 %v1722
    %v1724 = vand.u32 %v1166, 4294901760
    %1725 = vmatprep.subr.mxu0 %v1724
    %v1726 = vand.u32 %v1165, 4294901760
    %1727 = vmatpush1.msra.mxu0 %v1726
    %v1728 = vand.u32 %v1164, 4294901760
    %1729 = vmatprep.subr.mxu0 %v1728
    %v1730 = vand.u32 %v1163, 4294901760
    %1731 = vmatpush1.msra.mxu0 %v1730
    %v1732 = vand.u32 %v1162, 4294901760
    %1733 = vmatprep.subr.mxu0 %v1732
    %v1734 = vand.u32 %v1161, 4294901760
    %1735 = vmatpush1.msra.mxu0 %v1734
    %1736 = vmatprep.subr.mxu0 0.0
    %1737 = vmatpush2.msra.mxu0 0.0
    %1738 = vmatprep.subr.mxu0 0.0
    %1739 = vmatpush2.msra.mxu0 0.0
    %1740 = vmatprep.subr.mxu0 0.0
    %1741 = vmatpush2.msra.mxu0 0.0
    %1742 = vmatprep.subr.mxu0 0.0
    %1743 = vmatpush2.msra.mxu0 0.0
    %1744 = vmatprep.subr.mxu0 0.0
    %1745 = vmatpush2.msra.mxu0 0.0
    %1746 = vmatprep.subr.mxu0 0.0
    %1747 = vmatpush2.msra.mxu0 0.0
    %1748 = vmatprep.subr.mxu0 0.0
    %1749 = vmatpush2.msra.mxu0 0.0
    %1750 = vmatprep.subr.mxu0 0.0
    %1751 = vmatpush2.msra.mxu0 0.0
    %1752 = vmatprep.subr.mxu0 0.0
    %1753 = vmatpush2.msra.mxu0 0.0
    %1754 = vmatprep.subr.mxu0 0.0
    %1755 = vmatpush2.msra.mxu0 0.0
    %1756 = vmatprep.subr.mxu0 0.0
    %1757 = vmatpush2.msra.mxu0 0.0
    %1758 = vmatprep.subr.mxu0 0.0
    %1759 = vmatpush2.msra.mxu0 0.0
    %1760 = vmatprep.subr.mxu0 0.0
    %1761 = vmatpush2.msra.mxu0 0.0
    %1762 = vmatprep.subr.mxu0 0.0
    %1763 = vmatpush2.msra.mxu0 0.0
    %1764 = vmatprep.subr.mxu0 0.0
    %1765 = vmatpush2.msra.mxu0 0.0
    %1766 = vmatprep.subr.mxu0 0.0
    %1767 = vmatpush2.msra.mxu0 0.0
    %1768 = vmatprep.mubr.f32.mxu0 0.0
    %v1769 = vand.u32 %v1231, 4294901760
    %1770 = vmatmul.mubr.f32.gmra.mxu0 %v1769
    %v1771 = vpop.f32.mrf.mxu0
    %v1772 = vadd.f32 %v1692, %v1771
    %v1773 = vpop.f32.mrf.mxu0
    %v1774 = vadd.f32 %v1694, %v1773
    %1775 = vdwg.mxu0
    %v1776 = vmax.f32 %v1772, 0.0
    %v1777 = vmax.f32 %v1774, 0.0
    %v1779 = vlaneseq
    %v1780 = vshrl.u32 %v1779, 7
    %v1781 = vsub.s32 0, %v1780
    %v1782 = vrot.slane %v1202, %v1781
    %1784 = vmatprep.subr.mxu0 0.0
    %v1785 = vand.u32 %v1185, 4294901760
    %1786 = vmatpush1.msra.mxu0 %v1785
    %1787 = vmatprep.subr.mxu0 0.0
    %v1788 = vand.u32 %v1184, 4294901760
    %1789 = vmatpush1.msra.mxu0 %v1788
    %1790 = vmatprep.subr.mxu0 0.0
    %v1791 = vand.u32 %v1183, 4294901760
    %1792 = vmatpush1.msra.mxu0 %v1791
    %1793 = vmatprep.subr.mxu0 0.0
    %v1794 = vand.u32 %v1182, 4294901760
    %1795 = vmatpush1.msra.mxu0 %v1794
    %1796 = vmatprep.subr.mxu0 0.0
    %v1797 = vand.u32 %v1181, 4294901760
    %1798 = vmatpush1.msra.mxu0 %v1797
    %1799 = vmatprep.subr.mxu0 0.0
    %v1800 = vand.u32 %v1180, 4294901760
    %1801 = vmatpush1.msra.mxu0 %v1800
    %1802 = vmatprep.subr.mxu0 0.0
    %v1803 = vand.u32 %v1179, 4294901760
    %1804 = vmatpush1.msra.mxu0 %v1803
    %1805 = vmatprep.subr.mxu0 0.0
    %v1806 = vand.u32 %v1178, 4294901760
    %1807 = vmatpush1.msra.mxu0 %v1806
    %1808 = vmatprep.subr.mxu0 0.0
    %v1809 = vand.u32 %v1177, 4294901760
    %1810 = vmatpush1.msra.mxu0 %v1809
    %1811 = vmatprep.subr.mxu0 0.0
    %v1812 = vand.u32 %v1176, 4294901760
    %1813 = vmatpush1.msra.mxu0 %v1812
    %1814 = vmatprep.subr.mxu0 0.0
    %v1815 = vand.u32 %v1175, 4294901760
    %1816 = vmatpush1.msra.mxu0 %v1815
    %1817 = vmatprep.subr.mxu0 0.0
    %v1818 = vand.u32 %v1174, 4294901760
    %1819 = vmatpush1.msra.mxu0 %v1818
    %1820 = vmatprep.subr.mxu0 0.0
    %v1821 = vand.u32 %v1173, 4294901760
    %1822 = vmatpush1.msra.mxu0 %v1821
    %1823 = vmatprep.subr.mxu0 0.0
    %v1824 = vand.u32 %v1172, 4294901760
    %1825 = vmatpush1.msra.mxu0 %v1824
    %1826 = vmatprep.subr.mxu0 0.0
    %v1827 = vand.u32 %v1171, 4294901760
    %1828 = vmatpush1.msra.mxu0 %v1827
    %1829 = vmatprep.subr.mxu0 0.0
    %v1830 = vand.u32 %v1170, 4294901760
    %1831 = vmatpush1.msra.mxu0 %v1830
    %1832 = vmatprep.subr.mxu0 0.0
    %v1833 = vand.u32 %v1201, 4294901760
    %1834 = vmatpush2.msra.mxu0 %v1833
    %1835 = vmatprep.subr.mxu0 0.0
    %v1836 = vand.u32 %v1200, 4294901760
    %1837 = vmatpush2.msra.mxu0 %v1836
    %1838 = vmatprep.subr.mxu0 0.0
    %v1839 = vand.u32 %v1199, 4294901760
    %1840 = vmatpush2.msra.mxu0 %v1839
    %1841 = vmatprep.subr.mxu0 0.0
    %v1842 = vand.u32 %v1198, 4294901760
    %1843 = vmatpush2.msra.mxu0 %v1842
    %1844 = vmatprep.subr.mxu0 0.0
    %v1845 = vand.u32 %v1197, 4294901760
    %1846 = vmatpush2.msra.mxu0 %v1845
    %1847 = vmatprep.subr.mxu0 0.0
    %v1848 = vand.u32 %v1196, 4294901760
    %1849 = vmatpush2.msra.mxu0 %v1848
    %1850 = vmatprep.subr.mxu0 0.0
    %v1851 = vand.u32 %v1195, 4294901760
    %1852 = vmatpush2.msra.mxu0 %v1851
    %1853 = vmatprep.subr.mxu0 0.0
    %v1854 = vand.u32 %v1194, 4294901760
    %1855 = vmatpush2.msra.mxu0 %v1854
    %1856 = vmatprep.subr.mxu0 0.0
    %v1857 = vand.u32 %v1193, 4294901760
    %1858 = vmatpush2.msra.mxu0 %v1857
    %1859 = vmatprep.subr.mxu0 0.0
    %v1860 = vand.u32 %v1192, 4294901760
    %1861 = vmatpush2.msra.mxu0 %v1860
    %1862 = vmatprep.subr.mxu0 0.0
    %v1863 = vand.u32 %v1191, 4294901760
    %1864 = vmatpush2.msra.mxu0 %v1863
    %1865 = vmatprep.subr.mxu0 0.0
    %v1866 = vand.u32 %v1190, 4294901760
    %1867 = vmatpush2.msra.mxu0 %v1866
    %1868 = vmatprep.subr.mxu0 0.0
    %v1869 = vand.u32 %v1189, 4294901760
    %1870 = vmatpush2.msra.mxu0 %v1869
    %1871 = vmatprep.subr.mxu0 0.0
    %v1872 = vand.u32 %v1188, 4294901760
    %1873 = vmatpush2.msra.mxu0 %v1872
    %1874 = vmatprep.subr.mxu0 0.0
    %v1875 = vand.u32 %v1187, 4294901760
    %1876 = vmatpush2.msra.mxu0 %v1875
    %1877 = vmatprep.subr.mxu0 0.0
    %v1878 = vand.u32 %v1186, 4294901760
    %1879 = vmatpush2.msra.mxu0 %v1878
    %v1880 = vand.u32 %v1777, 4294901760
    %v1881 = vsub.f32 %v1777, %v1880
    %v1882 = vand.u32 %v1881, 4294901760
    %v1883 = vsub.f32 %v1881, %v1882
    %v1884 = vand.u32 %v1883, 4294901760
    %1885 = vmatprep.mubr.f32.mxu0 %v1884
    %v1886 = vand.u32 %v1776, 4294901760
    %v1887 = vsub.f32 %v1776, %v1886
    %v1888 = vand.u32 %v1887, 4294901760
    %v1889 = vsub.f32 %v1887, %v1888
    %v1890 = vand.u32 %v1889, 4294901760
    %1891 = vmatmul.mubr.f32.gmra.mxu0 %v1890
    %v1892 = vpop.f32.mrf.mxu0
    %v1893 = vadd.f32 %v1782, %v1892
    %v1894 = vpop.f32.mrf.mxu0
    %1895 = vdwg.mxu0
    %1896 = vmatprep.subr.mxu0 0.0
    %v1897 = vand.u32 %v1185, 4294901760
    %v1898 = vsub.f32 %v1185, %v1897
    %v1899 = vand.u32 %v1898, 4294901760
    %v1900 = vsub.f32 %v1898, %v1899
    %v1901 = vand.u32 %v1900, 4294901760
    %1902 = vmatpush1.msra.mxu0 %v1901
    %1903 = vmatprep.subr.mxu0 0.0
    %v1904 = vand.u32 %v1184, 4294901760
    %v1905 = vsub.f32 %v1184, %v1904
    %v1906 = vand.u32 %v1905, 4294901760
    %v1907 = vsub.f32 %v1905, %v1906
    %v1908 = vand.u32 %v1907, 4294901760
    %1909 = vmatpush1.msra.mxu0 %v1908
    %1910 = vmatprep.subr.mxu0 0.0
    %v1911 = vand.u32 %v1183, 4294901760
    %v1912 = vsub.f32 %v1183, %v1911
    %v1913 = vand.u32 %v1912, 4294901760
    %v1914 = vsub.f32 %v1912, %v1913
    %v1915 = vand.u32 %v1914, 4294901760
    %1916 = vmatpush1.msra.mxu0 %v1915
    %1917 = vmatprep.subr.mxu0 0.0
    %v1918 = vand.u32 %v1182, 4294901760
    %v1919 = vsub.f32 %v1182, %v1918
    %v1920 = vand.u32 %v1919, 4294901760
    %v1921 = vsub.f32 %v1919, %v1920
    %v1922 = vand.u32 %v1921, 4294901760
    %1923 = vmatpush1.msra.mxu0 %v1922
    %1924 = vmatprep.subr.mxu0 0.0
    %v1925 = vand.u32 %v1181, 4294901760
    %v1926 = vsub.f32 %v1181, %v1925
    %v1927 = vand.u32 %v1926, 4294901760
    %v1928 = vsub.f32 %v1926, %v1927
    %v1929 = vand.u32 %v1928, 4294901760
    %1930 = vmatpush1.msra.mxu0 %v1929
    %1931 = vmatprep.subr.mxu0 0.0
    %v1932 = vand.u32 %v1180, 4294901760
    %v1933 = vsub.f32 %v1180, %v1932
    %v1934 = vand.u32 %v1933, 4294901760
    %v1935 = vsub.f32 %v1933, %v1934
    %v1936 = vand.u32 %v1935, 4294901760
    %1937 = vmatpush1.msra.mxu0 %v1936
    %1938 = vmatprep.subr.mxu0 0.0
    %v1939 = vand.u32 %v1179, 4294901760
    %v1940 = vsub.f32 %v1179, %v1939
    %v1941 = vand.u32 %v1940, 4294901760
    %v1942 = vsub.f32 %v1940, %v1941
    %v1943 = vand.u32 %v1942, 4294901760
    %1944 = vmatpush1.msra.mxu0 %v1943
    %1945 = vmatprep.subr.mxu0 0.0
    %v1946 = vand.u32 %v1178, 4294901760
    %v1947 = vsub.f32 %v1178, %v1946
    %v1948 = vand.u32 %v1947, 4294901760
    %v1949 = vsub.f32 %v1947, %v1948
    %v1950 = vand.u32 %v1949, 4294901760
    %1951 = vmatpush1.msra.mxu0 %v1950
    %1952 = vmatprep.subr.mxu0 0.0
    %v1953 = vand.u32 %v1177, 4294901760
    %v1954 = vsub.f32 %v1177, %v1953
    %v1955 = vand.u32 %v1954, 4294901760
    %v1956 = vsub.f32 %v1954, %v1955
    %v1957 = vand.u32 %v1956, 4294901760
    %1958 = vmatpush1.msra.mxu0 %v1957
    %1959 = vmatprep.subr.mxu0 0.0
    %v1960 = vand.u32 %v1176, 4294901760
    %v1961 = vsub.f32 %v1176, %v1960
    %v1962 = vand.u32 %v1961, 4294901760
    %v1963 = vsub.f32 %v1961, %v1962
    %v1964 = vand.u32 %v1963, 4294901760
    %1965 = vmatpush1.msra.mxu0 %v1964
    %1966 = vmatprep.subr.mxu0 0.0
    %v1967 = vand.u32 %v1175, 4294901760
    %v1968 = vsub.f32 %v1175, %v1967
    %v1969 = vand.u32 %v1968, 4294901760
    %v1970 = vsub.f32 %v1968, %v1969
    %v1971 = vand.u32 %v1970, 4294901760
    %1972 = vmatpush1.msra.mxu0 %v1971
    %1973 = vmatprep.subr.mxu0 0.0
    %v1974 = vand.u32 %v1174, 4294901760
    %v1975 = vsub.f32 %v1174, %v1974
    %v1976 = vand.u32 %v1975, 4294901760
    %v1977 = vsub.f32 %v1975, %v1976
    %v1978 = vand.u32 %v1977, 4294901760
    %1979 = vmatpush1.msra.mxu0 %v1978
    %1980 = vmatprep.subr.mxu0 0.0
    %v1981 = vand.u32 %v1173, 4294901760
    %v1982 = vsub.f32 %v1173, %v1981
    %v1983 = vand.u32 %v1982, 4294901760
    %v1984 = vsub.f32 %v1982, %v1983
    %v1985 = vand.u32 %v1984, 4294901760
    %1986 = vmatpush1.msra.mxu0 %v1985
    %1987 = vmatprep.subr.mxu0 0.0
    %v1988 = vand.u32 %v1172, 4294901760
    %v1989 = vsub.f32 %v1172, %v1988
    %v1990 = vand.u32 %v1989, 4294901760
    %v1991 = vsub.f32 %v1989, %v1990
    %v1992 = vand.u32 %v1991, 4294901760
    %1993 = vmatpush1.msra.mxu0 %v1992
    %1994 = vmatprep.subr.mxu0 0.0
    %v1995 = vand.u32 %v1171, 4294901760
    %v1996 = vsub.f32 %v1171, %v1995
    %v1997 = vand.u32 %v1996, 4294901760
    %v1998 = vsub.f32 %v1996, %v1997
    %v1999 = vand.u32 %v1998, 4294901760
    %2000 = vmatpush1.msra.mxu0 %v1999
    %2001 = vmatprep.subr.mxu0 0.0
    %v2002 = vand.u32 %v1170, 4294901760
    %v2003 = vsub.f32 %v1170, %v2002
    %v2004 = vand.u32 %v2003, 4294901760
    %v2005 = vsub.f32 %v2003, %v2004
    %v2006 = vand.u32 %v2005, 4294901760
    %2007 = vmatpush1.msra.mxu0 %v2006
    %2008 = vmatprep.subr.mxu0 0.0
    %v2009 = vand.u32 %v1201, 4294901760
    %v2010 = vsub.f32 %v1201, %v2009
    %v2011 = vand.u32 %v2010, 4294901760
    %v2012 = vsub.f32 %v2010, %v2011
    %v2013 = vand.u32 %v2012, 4294901760
    %2014 = vmatpush2.msra.mxu0 %v2013
    %2015 = vmatprep.subr.mxu0 0.0
    %v2016 = vand.u32 %v1200, 4294901760
    %v2017 = vsub.f32 %v1200, %v2016
    %v2018 = vand.u32 %v2017, 4294901760
    %v2019 = vsub.f32 %v2017, %v2018
    %v2020 = vand.u32 %v2019, 4294901760
    %2021 = vmatpush2.msra.mxu0 %v2020
    %2022 = vmatprep.subr.mxu0 0.0
    %v2023 = vand.u32 %v1199, 4294901760
    %v2024 = vsub.f32 %v1199, %v2023
    %v2025 = vand.u32 %v2024, 4294901760
    %v2026 = vsub.f32 %v2024, %v2025
    %v2027 = vand.u32 %v2026, 4294901760
    %2028 = vmatpush2.msra.mxu0 %v2027
    %2029 = vmatprep.subr.mxu0 0.0
    %v2030 = vand.u32 %v1198, 4294901760
    %v2031 = vsub.f32 %v1198, %v2030
    %v2032 = vand.u32 %v2031, 4294901760
    %v2033 = vsub.f32 %v2031, %v2032
    %v2034 = vand.u32 %v2033, 4294901760
    %2035 = vmatpush2.msra.mxu0 %v2034
    %2036 = vmatprep.subr.mxu0 0.0
    %v2037 = vand.u32 %v1197, 4294901760
    %v2038 = vsub.f32 %v1197, %v2037
    %v2039 = vand.u32 %v2038, 4294901760
    %v2040 = vsub.f32 %v2038, %v2039
    %v2041 = vand.u32 %v2040, 4294901760
    %2042 = vmatpush2.msra.mxu0 %v2041
    %2043 = vmatprep.subr.mxu0 0.0
    %v2044 = vand.u32 %v1196, 4294901760
    %v2045 = vsub.f32 %v1196, %v2044
    %v2046 = vand.u32 %v2045, 4294901760
    %v2047 = vsub.f32 %v2045, %v2046
    %v2048 = vand.u32 %v2047, 4294901760
    %2049 = vmatpush2.msra.mxu0 %v2048
    %2050 = vmatprep.subr.mxu0 0.0
    %v2051 = vand.u32 %v1195, 4294901760
    %v2052 = vsub.f32 %v1195, %v2051
    %v2053 = vand.u32 %v2052, 4294901760
    %v2054 = vsub.f32 %v2052, %v2053
    %v2055 = vand.u32 %v2054, 4294901760
    %2056 = vmatpush2.msra.mxu0 %v2055
    %2057 = vmatprep.subr.mxu0 0.0
    %v2058 = vand.u32 %v1194, 4294901760
    %v2059 = vsub.f32 %v1194, %v2058
    %v2060 = vand.u32 %v2059, 4294901760
    %v2061 = vsub.f32 %v2059, %v2060
    %v2062 = vand.u32 %v2061, 4294901760
    %2063 = vmatpush2.msra.mxu0 %v2062
    %2064 = vmatprep.subr.mxu0 0.0
    %v2065 = vand.u32 %v1193, 4294901760
    %v2066 = vsub.f32 %v1193, %v2065
    %v2067 = vand.u32 %v2066, 4294901760
    %v2068 = vsub.f32 %v2066, %v2067
    %v2069 = vand.u32 %v2068, 4294901760
    %2070 = vmatpush2.msra.mxu0 %v2069
    %2071 = vmatprep.subr.mxu0 0.0
    %v2072 = vand.u32 %v1192, 4294901760
    %v2073 = vsub.f32 %v1192, %v2072
    %v2074 = vand.u32 %v2073, 4294901760
    %v2075 = vsub.f32 %v2073, %v2074
    %v2076 = vand.u32 %v2075, 4294901760
    %2077 = vmatpush2.msra.mxu0 %v2076
    %2078 = vmatprep.subr.mxu0 0.0
    %v2079 = vand.u32 %v1191, 4294901760
    %v2080 = vsub.f32 %v1191, %v2079
    %v2081 = vand.u32 %v2080, 4294901760
    %v2082 = vsub.f32 %v2080, %v2081
    %v2083 = vand.u32 %v2082, 4294901760
    %2084 = vmatpush2.msra.mxu0 %v2083
    %2085 = vmatprep.subr.mxu0 0.0
    %v2086 = vand.u32 %v1190, 4294901760
    %v2087 = vsub.f32 %v1190, %v2086
    %v2088 = vand.u32 %v2087, 4294901760
    %v2089 = vsub.f32 %v2087, %v2088
    %v2090 = vand.u32 %v2089, 4294901760
    %2091 = vmatpush2.msra.mxu0 %v2090
    %2092 = vmatprep.subr.mxu0 0.0
    %v2093 = vand.u32 %v1189, 4294901760
    %v2094 = vsub.f32 %v1189, %v2093
    %v2095 = vand.u32 %v2094, 4294901760
    %v2096 = vsub.f32 %v2094, %v2095
    %v2097 = vand.u32 %v2096, 4294901760
    %2098 = vmatpush2.msra.mxu0 %v2097
    %2099 = vmatprep.subr.mxu0 0.0
    %v2100 = vand.u32 %v1188, 4294901760
    %v2101 = vsub.f32 %v1188, %v2100
    %v2102 = vand.u32 %v2101, 4294901760
    %v2103 = vsub.f32 %v2101, %v2102
    %v2104 = vand.u32 %v2103, 4294901760
    %2105 = vmatpush2.msra.mxu0 %v2104
    %2106 = vmatprep.subr.mxu0 0.0
    %v2107 = vand.u32 %v1187, 4294901760
    %v2108 = vsub.f32 %v1187, %v2107
    %v2109 = vand.u32 %v2108, 4294901760
    %v2110 = vsub.f32 %v2108, %v2109
    %v2111 = vand.u32 %v2110, 4294901760
    %2112 = vmatpush2.msra.mxu0 %v2111
    %2113 = vmatprep.subr.mxu0 0.0
    %v2114 = vand.u32 %v1186, 4294901760
    %v2115 = vsub.f32 %v1186, %v2114
    %v2116 = vand.u32 %v2115, 4294901760
    %v2117 = vsub.f32 %v2115, %v2116
    %v2118 = vand.u32 %v2117, 4294901760
    %2119 = vmatpush2.msra.mxu0 %v2118
    %v2120 = vand.u32 %v1777, 4294901760
    %2121 = vmatprep.mubr.f32.mxu0 %v2120
    %v2122 = vand.u32 %v1776, 4294901760
    %2123 = vmatmul.mubr.f32.gmra.mxu0 %v2122
    %v2124 = vpop.f32.mrf.mxu0
    %v2125 = vadd.f32 %v1893, %v2124
    %v2126 = vpop.f32.mrf.mxu0
    %2127 = vdwg.mxu0
    %2128 = vmatprep.subr.mxu0 0.0
    %v2129 = vand.u32 %v1185, 4294901760
    %v2130 = vsub.f32 %v1185, %v2129
    %2131 = vmatpush1.msra.mxu0 %v2130
    %2132 = vmatprep.subr.mxu0 0.0
    %v2133 = vand.u32 %v1184, 4294901760
    %v2134 = vsub.f32 %v1184, %v2133
    %2135 = vmatpush1.msra.mxu0 %v2134
    %2136 = vmatprep.subr.mxu0 0.0
    %v2137 = vand.u32 %v1183, 4294901760
    %v2138 = vsub.f32 %v1183, %v2137
    %2139 = vmatpush1.msra.mxu0 %v2138
    %2140 = vmatprep.subr.mxu0 0.0
    %v2141 = vand.u32 %v1182, 4294901760
    %v2142 = vsub.f32 %v1182, %v2141
    %2143 = vmatpush1.msra.mxu0 %v2142
    %2144 = vmatprep.subr.mxu0 0.0
    %v2145 = vand.u32 %v1181, 4294901760
    %v2146 = vsub.f32 %v1181, %v2145
    %2147 = vmatpush1.msra.mxu0 %v2146
    %2148 = vmatprep.subr.mxu0 0.0
    %v2149 = vand.u32 %v1180, 4294901760
    %v2150 = vsub.f32 %v1180, %v2149
    %2151 = vmatpush1.msra.mxu0 %v2150
    %2152 = vmatprep.subr.mxu0 0.0
    %v2153 = vand.u32 %v1179, 4294901760
    %v2154 = vsub.f32 %v1179, %v2153
    %2155 = vmatpush1.msra.mxu0 %v2154
    %2156 = vmatprep.subr.mxu0 0.0
    %v2157 = vand.u32 %v1178, 4294901760
    %v2158 = vsub.f32 %v1178, %v2157
    %2159 = vmatpush1.msra.mxu0 %v2158
    %2160 = vmatprep.subr.mxu0 0.0
    %v2161 = vand.u32 %v1177, 4294901760
    %v2162 = vsub.f32 %v1177, %v2161
    %2163 = vmatpush1.msra.mxu0 %v2162
    %2164 = vmatprep.subr.mxu0 0.0
    %v2165 = vand.u32 %v1176, 4294901760
    %v2166 = vsub.f32 %v1176, %v2165
    %2167 = vmatpush1.msra.mxu0 %v2166
    %2168 = vmatprep.subr.mxu0 0.0
    %v2169 = vand.u32 %v1175, 4294901760
    %v2170 = vsub.f32 %v1175, %v2169
    %2171 = vmatpush1.msra.mxu0 %v2170
    %2172 = vmatprep.subr.mxu0 0.0
    %v2173 = vand.u32 %v1174, 4294901760
    %v2174 = vsub.f32 %v1174, %v2173
    %2175 = vmatpush1.msra.mxu0 %v2174
    %2176 = vmatprep.subr.mxu0 0.0
    %v2177 = vand.u32 %v1173, 4294901760
    %v2178 = vsub.f32 %v1173, %v2177
    %2179 = vmatpush1.msra.mxu0 %v2178
    %2180 = vmatprep.subr.mxu0 0.0
    %v2181 = vand.u32 %v1172, 4294901760
    %v2182 = vsub.f32 %v1172, %v2181
    %2183 = vmatpush1.msra.mxu0 %v2182
    %2184 = vmatprep.subr.mxu0 0.0
    %v2185 = vand.u32 %v1171, 4294901760
    %v2186 = vsub.f32 %v1171, %v2185
    %2187 = vmatpush1.msra.mxu0 %v2186
    %2188 = vmatprep.subr.mxu0 0.0
    %v2189 = vand.u32 %v1170, 4294901760
    %v2190 = vsub.f32 %v1170, %v2189
    %2191 = vmatpush1.msra.mxu0 %v2190
    %2192 = vmatprep.subr.mxu0 0.0
    %v2193 = vand.u32 %v1201, 4294901760
    %v2194 = vsub.f32 %v1201, %v2193
    %2195 = vmatpush2.msra.mxu0 %v2194
    %2196 = vmatprep.subr.mxu0 0.0
    %v2197 = vand.u32 %v1200, 4294901760
    %v2198 = vsub.f32 %v1200, %v2197
    %2199 = vmatpush2.msra.mxu0 %v2198
    %2200 = vmatprep.subr.mxu0 0.0
    %v2201 = vand.u32 %v1199, 4294901760
    %v2202 = vsub.f32 %v1199, %v2201
    %2203 = vmatpush2.msra.mxu0 %v2202
    %2204 = vmatprep.subr.mxu0 0.0
    %v2205 = vand.u32 %v1198, 4294901760
    %v2206 = vsub.f32 %v1198, %v2205
    %2207 = vmatpush2.msra.mxu0 %v2206
    %2208 = vmatprep.subr.mxu0 0.0
    %v2209 = vand.u32 %v1197, 4294901760
    %v2210 = vsub.f32 %v1197, %v2209
    %2211 = vmatpush2.msra.mxu0 %v2210
    %2212 = vmatprep.subr.mxu0 0.0
    %v2213 = vand.u32 %v1196, 4294901760
    %v2214 = vsub.f32 %v1196, %v2213
    %2215 = vmatpush2.msra.mxu0 %v2214
    %2216 = vmatprep.subr.mxu0 0.0
    %v2217 = vand.u32 %v1195, 4294901760
    %v2218 = vsub.f32 %v1195, %v2217
    %2219 = vmatpush2.msra.mxu0 %v2218
    %2220 = vmatprep.subr.mxu0 0.0
    %v2221 = vand.u32 %v1194, 4294901760
    %v2222 = vsub.f32 %v1194, %v2221
    %2223 = vmatpush2.msra.mxu0 %v2222
    %2224 = vmatprep.subr.mxu0 0.0
    %v2225 = vand.u32 %v1193, 4294901760
    %v2226 = vsub.f32 %v1193, %v2225
    %2227 = vmatpush2.msra.mxu0 %v2226
    %2228 = vmatprep.subr.mxu0 0.0
    %v2229 = vand.u32 %v1192, 4294901760
    %v2230 = vsub.f32 %v1192, %v2229
    %2231 = vmatpush2.msra.mxu0 %v2230
    %2232 = vmatprep.subr.mxu0 0.0
    %v2233 = vand.u32 %v1191, 4294901760
    %v2234 = vsub.f32 %v1191, %v2233
    %2235 = vmatpush2.msra.mxu0 %v2234
    %2236 = vmatprep.subr.mxu0 0.0
    %v2237 = vand.u32 %v1190, 4294901760
    %v2238 = vsub.f32 %v1190, %v2237
    %2239 = vmatpush2.msra.mxu0 %v2238
    %2240 = vmatprep.subr.mxu0 0.0
    %v2241 = vand.u32 %v1189, 4294901760
    %v2242 = vsub.f32 %v1189, %v2241
    %2243 = vmatpush2.msra.mxu0 %v2242
    %2244 = vmatprep.subr.mxu0 0.0
    %v2245 = vand.u32 %v1188, 4294901760
    %v2246 = vsub.f32 %v1188, %v2245
    %2247 = vmatpush2.msra.mxu0 %v2246
    %2248 = vmatprep.subr.mxu0 0.0
    %v2249 = vand.u32 %v1187, 4294901760
    %v2250 = vsub.f32 %v1187, %v2249
    %2251 = vmatpush2.msra.mxu0 %v2250
    %2252 = vmatprep.subr.mxu0 0.0
    %v2253 = vand.u32 %v1186, 4294901760
    %v2254 = vsub.f32 %v1186, %v2253
    %2255 = vmatpush2.msra.mxu0 %v2254
    %v2256 = vand.u32 %v1777, 4294901760
    %v2257 = vsub.f32 %v1777, %v2256
    %2258 = vmatprep.mubr.f32.mxu0 %v2257
    %v2259 = vand.u32 %v1776, 4294901760
    %v2260 = vsub.f32 %v1776, %v2259
    %2261 = vmatmul.mubr.f32.gmra.mxu0 %v2260
    %v2262 = vpop.f32.mrf.mxu0
    %v2263 = vadd.f32 %v2125, %v2262
    %v2264 = vpop.f32.mrf.mxu0
    %2265 = vdwg.mxu0
    %2266 = vmatprep.subr.mxu0 0.0
    %v2267 = vand.u32 %v1185, 4294901760
    %2268 = vmatpush1.msra.mxu0 %v2267
    %2269 = vmatprep.subr.mxu0 0.0
    %v2270 = vand.u32 %v1184, 4294901760
    %2271 = vmatpush1.msra.mxu0 %v2270
    %2272 = vmatprep.subr.mxu0 0.0
    %v2273 = vand.u32 %v1183, 4294901760
    %2274 = vmatpush1.msra.mxu0 %v2273
    %2275 = vmatprep.subr.mxu0 0.0
    %v2276 = vand.u32 %v1182, 4294901760
    %2277 = vmatpush1.msra.mxu0 %v2276
    %2278 = vmatprep.subr.mxu0 0.0
    %v2279 = vand.u32 %v1181, 4294901760
    %2280 = vmatpush1.msra.mxu0 %v2279
    %2281 = vmatprep.subr.mxu0 0.0
    %v2282 = vand.u32 %v1180, 4294901760
    %2283 = vmatpush1.msra.mxu0 %v2282
    %2284 = vmatprep.subr.mxu0 0.0
    %v2285 = vand.u32 %v1179, 4294901760
    %2286 = vmatpush1.msra.mxu0 %v2285
    %2287 = vmatprep.subr.mxu0 0.0
    %v2288 = vand.u32 %v1178, 4294901760
    %2289 = vmatpush1.msra.mxu0 %v2288
    %2290 = vmatprep.subr.mxu0 0.0
    %v2291 = vand.u32 %v1177, 4294901760
    %2292 = vmatpush1.msra.mxu0 %v2291
    %2293 = vmatprep.subr.mxu0 0.0
    %v2294 = vand.u32 %v1176, 4294901760
    %2295 = vmatpush1.msra.mxu0 %v2294
    %2296 = vmatprep.subr.mxu0 0.0
    %v2297 = vand.u32 %v1175, 4294901760
    %2298 = vmatpush1.msra.mxu0 %v2297
    %2299 = vmatprep.subr.mxu0 0.0
    %v2300 = vand.u32 %v1174, 4294901760
    %2301 = vmatpush1.msra.mxu0 %v2300
    %2302 = vmatprep.subr.mxu0 0.0
    %v2303 = vand.u32 %v1173, 4294901760
    %2304 = vmatpush1.msra.mxu0 %v2303
    %2305 = vmatprep.subr.mxu0 0.0
    %v2306 = vand.u32 %v1172, 4294901760
    %2307 = vmatpush1.msra.mxu0 %v2306
    %2308 = vmatprep.subr.mxu0 0.0
    %v2309 = vand.u32 %v1171, 4294901760
    %2310 = vmatpush1.msra.mxu0 %v2309
    %2311 = vmatprep.subr.mxu0 0.0
    %v2312 = vand.u32 %v1170, 4294901760
    %2313 = vmatpush1.msra.mxu0 %v2312
    %2314 = vmatprep.subr.mxu0 0.0
    %v2315 = vand.u32 %v1201, 4294901760
    %2316 = vmatpush2.msra.mxu0 %v2315
    %2317 = vmatprep.subr.mxu0 0.0
    %v2318 = vand.u32 %v1200, 4294901760
    %2319 = vmatpush2.msra.mxu0 %v2318
    %2320 = vmatprep.subr.mxu0 0.0
    %v2321 = vand.u32 %v1199, 4294901760
    %2322 = vmatpush2.msra.mxu0 %v2321
    %2323 = vmatprep.subr.mxu0 0.0
    %v2324 = vand.u32 %v1198, 4294901760
    %2325 = vmatpush2.msra.mxu0 %v2324
    %2326 = vmatprep.subr.mxu0 0.0
    %v2327 = vand.u32 %v1197, 4294901760
    %2328 = vmatpush2.msra.mxu0 %v2327
    %2329 = vmatprep.subr.mxu0 0.0
    %v2330 = vand.u32 %v1196, 4294901760
    %2331 = vmatpush2.msra.mxu0 %v2330
    %2332 = vmatprep.subr.mxu0 0.0
    %v2333 = vand.u32 %v1195, 4294901760
    %2334 = vmatpush2.msra.mxu0 %v2333
    %2335 = vmatprep.subr.mxu0 0.0
    %v2336 = vand.u32 %v1194, 4294901760
    %2337 = vmatpush2.msra.mxu0 %v2336
    %2338 = vmatprep.subr.mxu0 0.0
    %v2339 = vand.u32 %v1193, 4294901760
    %2340 = vmatpush2.msra.mxu0 %v2339
    %2341 = vmatprep.subr.mxu0 0.0
    %v2342 = vand.u32 %v1192, 4294901760
    %2343 = vmatpush2.msra.mxu0 %v2342
    %2344 = vmatprep.subr.mxu0 0.0
    %v2345 = vand.u32 %v1191, 4294901760
    %2346 = vmatpush2.msra.mxu0 %v2345
    %2347 = vmatprep.subr.mxu0 0.0
    %v2348 = vand.u32 %v1190, 4294901760
    %2349 = vmatpush2.msra.mxu0 %v2348
    %2350 = vmatprep.subr.mxu0 0.0
    %v2351 = vand.u32 %v1189, 4294901760
    %2352 = vmatpush2.msra.mxu0 %v2351
    %2353 = vmatprep.subr.mxu0 0.0
    %v2354 = vand.u32 %v1188, 4294901760
    %2355 = vmatpush2.msra.mxu0 %v2354
    %2356 = vmatprep.subr.mxu0 0.0
    %v2357 = vand.u32 %v1187, 4294901760
    %2358 = vmatpush2.msra.mxu0 %v2357
    %2359 = vmatprep.subr.mxu0 0.0
    %v2360 = vand.u32 %v1186, 4294901760
    %2361 = vmatpush2.msra.mxu0 %v2360
    %v2362 = vand.u32 %v1777, 4294901760
    %v2363 = vsub.f32 %v1777, %v2362
    %v2364 = vand.u32 %v2363, 4294901760
    %2365 = vmatprep.mubr.f32.mxu0 %v2364
    %v2366 = vand.u32 %v1776, 4294901760
    %v2367 = vsub.f32 %v1776, %v2366
    %v2368 = vand.u32 %v2367, 4294901760
    %2369 = vmatmul.mubr.f32.gmra.mxu0 %v2368
    %v2370 = vpop.f32.mrf.mxu0
    %v2371 = vadd.f32 %v2263, %v2370
    %v2372 = vpop.f32.mrf.mxu0
    %2373 = vdwg.mxu0
    %2374 = vmatprep.subr.mxu0 0.0
    %v2375 = vand.u32 %v1185, 4294901760
    %v2376 = vsub.f32 %v1185, %v2375
    %v2377 = vand.u32 %v2376, 4294901760
    %2378 = vmatpush1.msra.mxu0 %v2377
    %2379 = vmatprep.subr.mxu0 0.0
    %v2380 = vand.u32 %v1184, 4294901760
    %v2381 = vsub.f32 %v1184, %v2380
    %v2382 = vand.u32 %v2381, 4294901760
    %2383 = vmatpush1.msra.mxu0 %v2382
    %2384 = vmatprep.subr.mxu0 0.0
    %v2385 = vand.u32 %v1183, 4294901760
    %v2386 = vsub.f32 %v1183, %v2385
    %v2387 = vand.u32 %v2386, 4294901760
    %2388 = vmatpush1.msra.mxu0 %v2387
    %2389 = vmatprep.subr.mxu0 0.0
    %v2390 = vand.u32 %v1182, 4294901760
    %v2391 = vsub.f32 %v1182, %v2390
    %v2392 = vand.u32 %v2391, 4294901760
    %2393 = vmatpush1.msra.mxu0 %v2392
    %2394 = vmatprep.subr.mxu0 0.0
    %v2395 = vand.u32 %v1181, 4294901760
    %v2396 = vsub.f32 %v1181, %v2395
    %v2397 = vand.u32 %v2396, 4294901760
    %2398 = vmatpush1.msra.mxu0 %v2397
    %2399 = vmatprep.subr.mxu0 0.0
    %v2400 = vand.u32 %v1180, 4294901760
    %v2401 = vsub.f32 %v1180, %v2400
    %v2402 = vand.u32 %v2401, 4294901760
    %2403 = vmatpush1.msra.mxu0 %v2402
    %2404 = vmatprep.subr.mxu0 0.0
    %v2405 = vand.u32 %v1179, 4294901760
    %v2406 = vsub.f32 %v1179, %v2405
    %v2407 = vand.u32 %v2406, 4294901760
    %2408 = vmatpush1.msra.mxu0 %v2407
    %2409 = vmatprep.subr.mxu0 0.0
    %v2410 = vand.u32 %v1178, 4294901760
    %v2411 = vsub.f32 %v1178, %v2410
    %v2412 = vand.u32 %v2411, 4294901760
    %2413 = vmatpush1.msra.mxu0 %v2412
    %2414 = vmatprep.subr.mxu0 0.0
    %v2415 = vand.u32 %v1177, 4294901760
    %v2416 = vsub.f32 %v1177, %v2415
    %v2417 = vand.u32 %v2416, 4294901760
    %2418 = vmatpush1.msra.mxu0 %v2417
    %2419 = vmatprep.subr.mxu0 0.0
    %v2420 = vand.u32 %v1176, 4294901760
    %v2421 = vsub.f32 %v1176, %v2420
    %v2422 = vand.u32 %v2421, 4294901760
    %2423 = vmatpush1.msra.mxu0 %v2422
    %2424 = vmatprep.subr.mxu0 0.0
    %v2425 = vand.u32 %v1175, 4294901760
    %v2426 = vsub.f32 %v1175, %v2425
    %v2427 = vand.u32 %v2426, 4294901760
    %2428 = vmatpush1.msra.mxu0 %v2427
    %2429 = vmatprep.subr.mxu0 0.0
    %v2430 = vand.u32 %v1174, 4294901760
    %v2431 = vsub.f32 %v1174, %v2430
    %v2432 = vand.u32 %v2431, 4294901760
    %2433 = vmatpush1.msra.mxu0 %v2432
    %2434 = vmatprep.subr.mxu0 0.0
    %v2435 = vand.u32 %v1173, 4294901760
    %v2436 = vsub.f32 %v1173, %v2435
    %v2437 = vand.u32 %v2436, 4294901760
    %2438 = vmatpush1.msra.mxu0 %v2437
    %2439 = vmatprep.subr.mxu0 0.0
    %v2440 = vand.u32 %v1172, 4294901760
    %v2441 = vsub.f32 %v1172, %v2440
    %v2442 = vand.u32 %v2441, 4294901760
    %2443 = vmatpush1.msra.mxu0 %v2442
    %2444 = vmatprep.subr.mxu0 0.0
    %v2445 = vand.u32 %v1171, 4294901760
    %v2446 = vsub.f32 %v1171, %v2445
    %v2447 = vand.u32 %v2446, 4294901760
    %2448 = vmatpush1.msra.mxu0 %v2447
    %2449 = vmatprep.subr.mxu0 0.0
    %v2450 = vand.u32 %v1170, 4294901760
    %v2451 = vsub.f32 %v1170, %v2450
    %v2452 = vand.u32 %v2451, 4294901760
    %2453 = vmatpush1.msra.mxu0 %v2452
    %2454 = vmatprep.subr.mxu0 0.0
    %v2455 = vand.u32 %v1201, 4294901760
    %v2456 = vsub.f32 %v1201, %v2455
    %v2457 = vand.u32 %v2456, 4294901760
    %2458 = vmatpush2.msra.mxu0 %v2457
    %2459 = vmatprep.subr.mxu0 0.0
    %v2460 = vand.u32 %v1200, 4294901760
    %v2461 = vsub.f32 %v1200, %v2460
    %v2462 = vand.u32 %v2461, 4294901760
    %2463 = vmatpush2.msra.mxu0 %v2462
    %2464 = vmatprep.subr.mxu0 0.0
    %v2465 = vand.u32 %v1199, 4294901760
    %v2466 = vsub.f32 %v1199, %v2465
    %v2467 = vand.u32 %v2466, 4294901760
    %2468 = vmatpush2.msra.mxu0 %v2467
    %2469 = vmatprep.subr.mxu0 0.0
    %v2470 = vand.u32 %v1198, 4294901760
    %v2471 = vsub.f32 %v1198, %v2470
    %v2472 = vand.u32 %v2471, 4294901760
    %2473 = vmatpush2.msra.mxu0 %v2472
    %2474 = vmatprep.subr.mxu0 0.0
    %v2475 = vand.u32 %v1197, 4294901760
    %v2476 = vsub.f32 %v1197, %v2475
    %v2477 = vand.u32 %v2476, 4294901760
    %2478 = vmatpush2.msra.mxu0 %v2477
    %2479 = vmatprep.subr.mxu0 0.0
    %v2480 = vand.u32 %v1196, 4294901760
    %v2481 = vsub.f32 %v1196, %v2480
    %v2482 = vand.u32 %v2481, 4294901760
    %2483 = vmatpush2.msra.mxu0 %v2482
    %2484 = vmatprep.subr.mxu0 0.0
    %v2485 = vand.u32 %v1195, 4294901760
    %v2486 = vsub.f32 %v1195, %v2485
    %v2487 = vand.u32 %v2486, 4294901760
    %2488 = vmatpush2.msra.mxu0 %v2487
    %2489 = vmatprep.subr.mxu0 0.0
    %v2490 = vand.u32 %v1194, 4294901760
    %v2491 = vsub.f32 %v1194, %v2490
    %v2492 = vand.u32 %v2491, 4294901760
    %2493 = vmatpush2.msra.mxu0 %v2492
    %2494 = vmatprep.subr.mxu0 0.0
    %v2495 = vand.u32 %v1193, 4294901760
    %v2496 = vsub.f32 %v1193, %v2495
    %v2497 = vand.u32 %v2496, 4294901760
    %2498 = vmatpush2.msra.mxu0 %v2497
    %2499 = vmatprep.subr.mxu0 0.0
    %v2500 = vand.u32 %v1192, 4294901760
    %v2501 = vsub.f32 %v1192, %v2500
    %v2502 = vand.u32 %v2501, 4294901760
    %2503 = vmatpush2.msra.mxu0 %v2502
    %2504 = vmatprep.subr.mxu0 0.0
    %v2505 = vand.u32 %v1191, 4294901760
    %v2506 = vsub.f32 %v1191, %v2505
    %v2507 = vand.u32 %v2506, 4294901760
    %2508 = vmatpush2.msra.mxu0 %v2507
    %2509 = vmatprep.subr.mxu0 0.0
    %v2510 = vand.u32 %v1190, 4294901760
    %v2511 = vsub.f32 %v1190, %v2510
    %v2512 = vand.u32 %v2511, 4294901760
    %2513 = vmatpush2.msra.mxu0 %v2512
    %2514 = vmatprep.subr.mxu0 0.0
    %v2515 = vand.u32 %v1189, 4294901760
    %v2516 = vsub.f32 %v1189, %v2515
    %v2517 = vand.u32 %v2516, 4294901760
    %2518 = vmatpush2.msra.mxu0 %v2517
    %2519 = vmatprep.subr.mxu0 0.0
    %v2520 = vand.u32 %v1188, 4294901760
    %v2521 = vsub.f32 %v1188, %v2520
    %v2522 = vand.u32 %v2521, 4294901760
    %2523 = vmatpush2.msra.mxu0 %v2522
    %2524 = vmatprep.subr.mxu0 0.0
    %v2525 = vand.u32 %v1187, 4294901760
    %v2526 = vsub.f32 %v1187, %v2525
    %v2527 = vand.u32 %v2526, 4294901760
    %2528 = vmatpush2.msra.mxu0 %v2527
    %2529 = vmatprep.subr.mxu0 0.0
    %v2530 = vand.u32 %v1186, 4294901760
    %v2531 = vsub.f32 %v1186, %v2530
    %v2532 = vand.u32 %v2531, 4294901760
    %2533 = vmatpush2.msra.mxu0 %v2532
    %v2534 = vand.u32 %v1777, 4294901760
    %2535 = vmatprep.mubr.f32.mxu0 %v2534
    %v2536 = vand.u32 %v1776, 4294901760
    %2537 = vmatmul.mubr.f32.gmra.mxu0 %v2536
    %v2538 = vpop.f32.mrf.mxu0
    %v2539 = vadd.f32 %v2371, %v2538
    %v2540 = vpop.f32.mrf.mxu0
    %2541 = vdwg.mxu0
    %2542 = vmatprep.subr.mxu0 0.0
    %v2543 = vand.u32 %v1185, 4294901760
    %2544 = vmatpush1.msra.mxu0 %v2543
    %2545 = vmatprep.subr.mxu0 0.0
    %v2546 = vand.u32 %v1184, 4294901760
    %2547 = vmatpush1.msra.mxu0 %v2546
    %2548 = vmatprep.subr.mxu0 0.0
    %v2549 = vand.u32 %v1183, 4294901760
    %2550 = vmatpush1.msra.mxu0 %v2549
    %2551 = vmatprep.subr.mxu0 0.0
    %v2552 = vand.u32 %v1182, 4294901760
    %2553 = vmatpush1.msra.mxu0 %v2552
    %2554 = vmatprep.subr.mxu0 0.0
    %v2555 = vand.u32 %v1181, 4294901760
    %2556 = vmatpush1.msra.mxu0 %v2555
    %2557 = vmatprep.subr.mxu0 0.0
    %v2558 = vand.u32 %v1180, 4294901760
    %2559 = vmatpush1.msra.mxu0 %v2558
    %2560 = vmatprep.subr.mxu0 0.0
    %v2561 = vand.u32 %v1179, 4294901760
    %2562 = vmatpush1.msra.mxu0 %v2561
    %2563 = vmatprep.subr.mxu0 0.0
    %v2564 = vand.u32 %v1178, 4294901760
    %2565 = vmatpush1.msra.mxu0 %v2564
    %2566 = vmatprep.subr.mxu0 0.0
    %v2567 = vand.u32 %v1177, 4294901760
    %2568 = vmatpush1.msra.mxu0 %v2567
    %2569 = vmatprep.subr.mxu0 0.0
    %v2570 = vand.u32 %v1176, 4294901760
    %2571 = vmatpush1.msra.mxu0 %v2570
    %2572 = vmatprep.subr.mxu0 0.0
    %v2573 = vand.u32 %v1175, 4294901760
    %2574 = vmatpush1.msra.mxu0 %v2573
    %2575 = vmatprep.subr.mxu0 0.0
    %v2576 = vand.u32 %v1174, 4294901760
    %2577 = vmatpush1.msra.mxu0 %v2576
    %2578 = vmatprep.subr.mxu0 0.0
    %v2579 = vand.u32 %v1173, 4294901760
    %2580 = vmatpush1.msra.mxu0 %v2579
    %2581 = vmatprep.subr.mxu0 0.0
    %v2582 = vand.u32 %v1172, 4294901760
    %2583 = vmatpush1.msra.mxu0 %v2582
    %2584 = vmatprep.subr.mxu0 0.0
    %v2585 = vand.u32 %v1171, 4294901760
    %2586 = vmatpush1.msra.mxu0 %v2585
    %2587 = vmatprep.subr.mxu0 0.0
    %v2588 = vand.u32 %v1170, 4294901760
    %2589 = vmatpush1.msra.mxu0 %v2588
    %2590 = vmatprep.subr.mxu0 0.0
    %v2591 = vand.u32 %v1201, 4294901760
    %2592 = vmatpush2.msra.mxu0 %v2591
    %2593 = vmatprep.subr.mxu0 0.0
    %v2594 = vand.u32 %v1200, 4294901760
    %2595 = vmatpush2.msra.mxu0 %v2594
    %2596 = vmatprep.subr.mxu0 0.0
    %v2597 = vand.u32 %v1199, 4294901760
    %2598 = vmatpush2.msra.mxu0 %v2597
    %2599 = vmatprep.subr.mxu0 0.0
    %v2600 = vand.u32 %v1198, 4294901760
    %2601 = vmatpush2.msra.mxu0 %v2600
    %2602 = vmatprep.subr.mxu0 0.0
    %v2603 = vand.u32 %v1197, 4294901760
    %2604 = vmatpush2.msra.mxu0 %v2603
    %2605 = vmatprep.subr.mxu0 0.0
    %v2606 = vand.u32 %v1196, 4294901760
    %2607 = vmatpush2.msra.mxu0 %v2606
    %2608 = vmatprep.subr.mxu0 0.0
    %v2609 = vand.u32 %v1195, 4294901760
    %2610 = vmatpush2.msra.mxu0 %v2609
    %2611 = vmatprep.subr.mxu0 0.0
    %v2612 = vand.u32 %v1194, 4294901760
    %2613 = vmatpush2.msra.mxu0 %v2612
    %2614 = vmatprep.subr.mxu0 0.0
    %v2615 = vand.u32 %v1193, 4294901760
    %2616 = vmatpush2.msra.mxu0 %v2615
    %2617 = vmatprep.subr.mxu0 0.0
    %v2618 = vand.u32 %v1192, 4294901760
    %2619 = vmatpush2.msra.mxu0 %v2618
    %2620 = vmatprep.subr.mxu0 0.0
    %v2621 = vand.u32 %v1191, 4294901760
    %2622 = vmatpush2.msra.mxu0 %v2621
    %2623 = vmatprep.subr.mxu0 0.0
    %v2624 = vand.u32 %v1190, 4294901760
    %2625 = vmatpush2.msra.mxu0 %v2624
    %2626 = vmatprep.subr.mxu0 0.0
    %v2627 = vand.u32 %v1189, 4294901760
    %2628 = vmatpush2.msra.mxu0 %v2627
    %2629 = vmatprep.subr.mxu0 0.0
    %v2630 = vand.u32 %v1188, 4294901760
    %2631 = vmatpush2.msra.mxu0 %v2630
    %2632 = vmatprep.subr.mxu0 0.0
    %v2633 = vand.u32 %v1187, 4294901760
    %2634 = vmatpush2.msra.mxu0 %v2633
    %2635 = vmatprep.subr.mxu0 0.0
    %v2636 = vand.u32 %v1186, 4294901760
    %2637 = vmatpush2.msra.mxu0 %v2636
    %v2638 = vand.u32 %v1777, 4294901760
    %2639 = vmatprep.mubr.f32.mxu0 %v2638
    %v2640 = vand.u32 %v1776, 4294901760
    %2641 = vmatmul.mubr.f32.gmra.mxu0 %v2640
    %v2642 = vpop.f32.mrf.mxu0
    %v2643 = vadd.f32 %v2539, %v2642
    %v2644 = vpop.f32.mrf.mxu0
    %2645 = vdwg.mxu0
    %v2646 = vmax.f32 %v2643, 0.0
    %v2648 = vlaneseq
    %v2649 = vshrl.u32 %v2648, 7
    %v2650 = vsub.s32 0, %v2649
    %v2651 = vrot.slane %v1219, %v2650
    %2653 = vmatprep.subr.mxu0 0.0
    %v2654 = vand.u32 %v1218, 4294901760
    %2655 = vmatpush1.msra.mxu0 %v2654
    %2656 = vmatprep.subr.mxu0 0.0
    %v2657 = vand.u32 %v1217, 4294901760
    %2658 = vmatpush1.msra.mxu0 %v2657
    %2659 = vmatprep.subr.mxu0 0.0
    %v2660 = vand.u32 %v1216, 4294901760
    %2661 = vmatpush1.msra.mxu0 %v2660
    %2662 = vmatprep.subr.mxu0 0.0
    %v2663 = vand.u32 %v1215, 4294901760
    %2664 = vmatpush1.msra.mxu0 %v2663
    %2665 = vmatprep.subr.mxu0 0.0
    %v2666 = vand.u32 %v1214, 4294901760
    %2667 = vmatpush1.msra.mxu0 %v2666
    %2668 = vmatprep.subr.mxu0 0.0
    %v2669 = vand.u32 %v1213, 4294901760
    %2670 = vmatpush1.msra.mxu0 %v2669
    %2671 = vmatprep.subr.mxu0 0.0
    %v2672 = vand.u32 %v1212, 4294901760
    %2673 = vmatpush1.msra.mxu0 %v2672
    %2674 = vmatprep.subr.mxu0 0.0
    %v2675 = vand.u32 %v1211, 4294901760
    %2676 = vmatpush1.msra.mxu0 %v2675
    %2677 = vmatprep.subr.mxu0 0.0
    %v2678 = vand.u32 %v1210, 4294901760
    %2679 = vmatpush1.msra.mxu0 %v2678
    %2680 = vmatprep.subr.mxu0 0.0
    %v2681 = vand.u32 %v1209, 4294901760
    %2682 = vmatpush1.msra.mxu0 %v2681
    %2683 = vmatprep.subr.mxu0 0.0
    %v2684 = vand.u32 %v1208, 4294901760
    %2685 = vmatpush1.msra.mxu0 %v2684
    %2686 = vmatprep.subr.mxu0 0.0
    %v2687 = vand.u32 %v1207, 4294901760
    %2688 = vmatpush1.msra.mxu0 %v2687
    %2689 = vmatprep.subr.mxu0 0.0
    %v2690 = vand.u32 %v1206, 4294901760
    %2691 = vmatpush1.msra.mxu0 %v2690
    %2692 = vmatprep.subr.mxu0 0.0
    %v2693 = vand.u32 %v1205, 4294901760
    %2694 = vmatpush1.msra.mxu0 %v2693
    %2695 = vmatprep.subr.mxu0 0.0
    %v2696 = vand.u32 %v1204, 4294901760
    %2697 = vmatpush1.msra.mxu0 %v2696
    %2698 = vmatprep.subr.mxu0 0.0
    %v2699 = vand.u32 %v1203, 4294901760
    %2700 = vmatpush1.msra.mxu0 %v2699
    %2701 = vmatprep.subr.mxu0 0.0
    %2702 = vmatpush2.msra.mxu0 0.0
    %2703 = vmatprep.subr.mxu0 0.0
    %2704 = vmatpush2.msra.mxu0 0.0
    %2705 = vmatprep.subr.mxu0 0.0
    %2706 = vmatpush2.msra.mxu0 0.0
    %2707 = vmatprep.subr.mxu0 0.0
    %2708 = vmatpush2.msra.mxu0 0.0
    %2709 = vmatprep.subr.mxu0 0.0
    %2710 = vmatpush2.msra.mxu0 0.0
    %2711 = vmatprep.subr.mxu0 0.0
    %2712 = vmatpush2.msra.mxu0 0.0
    %2713 = vmatprep.subr.mxu0 0.0
    %2714 = vmatpush2.msra.mxu0 0.0
    %2715 = vmatprep.subr.mxu0 0.0
    %2716 = vmatpush2.msra.mxu0 0.0
    %2717 = vmatprep.subr.mxu0 0.0
    %2718 = vmatpush2.msra.mxu0 0.0
    %2719 = vmatprep.subr.mxu0 0.0
    %2720 = vmatpush2.msra.mxu0 0.0
    %2721 = vmatprep.subr.mxu0 0.0
    %2722 = vmatpush2.msra.mxu0 0.0
    %2723 = vmatprep.subr.mxu0 0.0
    %2724 = vmatpush2.msra.mxu0 0.0
    %2725 = vmatprep.subr.mxu0 0.0
    %2726 = vmatpush2.msra.mxu0 0.0
    %2727 = vmatprep.subr.mxu0 0.0
    %2728 = vmatpush2.msra.mxu0 0.0
    %2729 = vmatprep.subr.mxu0 0.0
    %2730 = vmatpush2.msra.mxu0 0.0
    %2731 = vmatprep.subr.mxu0 0.0
    %2732 = vmatpush2.msra.mxu0 0.0
    %2733 = vmatprep.mubr.f32.mxu0 0.0
    %v2734 = vand.u32 %v2646, 4294901760
    %v2735 = vsub.f32 %v2646, %v2734
    %v2736 = vand.u32 %v2735, 4294901760
    %v2737 = vsub.f32 %v2735, %v2736
    %v2738 = vand.u32 %v2737, 4294901760
    %2739 = vmatmul.mubr.f32.gmra.mxu0 %v2738
    %v2740 = vpop.f32.mrf.mxu0
    %v2741 = vadd.f32 %v2651, %v2740
    %v2742 = vpop.f32.mrf.mxu0
    %2743 = vdwg.mxu0
    %2744 = vmatprep.subr.mxu0 0.0
    %v2745 = vand.u32 %v1218, 4294901760
    %v2746 = vsub.f32 %v1218, %v2745
    %v2747 = vand.u32 %v2746, 4294901760
    %v2748 = vsub.f32 %v2746, %v2747
    %v2749 = vand.u32 %v2748, 4294901760
    %2750 = vmatpush1.msra.mxu0 %v2749
    %2751 = vmatprep.subr.mxu0 0.0
    %v2752 = vand.u32 %v1217, 4294901760
    %v2753 = vsub.f32 %v1217, %v2752
    %v2754 = vand.u32 %v2753, 4294901760
    %v2755 = vsub.f32 %v2753, %v2754
    %v2756 = vand.u32 %v2755, 4294901760
    %2757 = vmatpush1.msra.mxu0 %v2756
    %2758 = vmatprep.subr.mxu0 0.0
    %v2759 = vand.u32 %v1216, 4294901760
    %v2760 = vsub.f32 %v1216, %v2759
    %v2761 = vand.u32 %v2760, 4294901760
    %v2762 = vsub.f32 %v2760, %v2761
    %v2763 = vand.u32 %v2762, 4294901760
    %2764 = vmatpush1.msra.mxu0 %v2763
    %2765 = vmatprep.subr.mxu0 0.0
    %v2766 = vand.u32 %v1215, 4294901760
    %v2767 = vsub.f32 %v1215, %v2766
    %v2768 = vand.u32 %v2767, 4294901760
    %v2769 = vsub.f32 %v2767, %v2768
    %v2770 = vand.u32 %v2769, 4294901760
    %2771 = vmatpush1.msra.mxu0 %v2770
    %2772 = vmatprep.subr.mxu0 0.0
    %v2773 = vand.u32 %v1214, 4294901760
    %v2774 = vsub.f32 %v1214, %v2773
    %v2775 = vand.u32 %v2774, 4294901760
    %v2776 = vsub.f32 %v2774, %v2775
    %v2777 = vand.u32 %v2776, 4294901760
    %2778 = vmatpush1.msra.mxu0 %v2777
    %2779 = vmatprep.subr.mxu0 0.0
    %v2780 = vand.u32 %v1213, 4294901760
    %v2781 = vsub.f32 %v1213, %v2780
    %v2782 = vand.u32 %v2781, 4294901760
    %v2783 = vsub.f32 %v2781, %v2782
    %v2784 = vand.u32 %v2783, 4294901760
    %2785 = vmatpush1.msra.mxu0 %v2784
    %2786 = vmatprep.subr.mxu0 0.0
    %v2787 = vand.u32 %v1212, 4294901760
    %v2788 = vsub.f32 %v1212, %v2787
    %v2789 = vand.u32 %v2788, 4294901760
    %v2790 = vsub.f32 %v2788, %v2789
    %v2791 = vand.u32 %v2790, 4294901760
    %2792 = vmatpush1.msra.mxu0 %v2791
    %2793 = vmatprep.subr.mxu0 0.0
    %v2794 = vand.u32 %v1211, 4294901760
    %v2795 = vsub.f32 %v1211, %v2794
    %v2796 = vand.u32 %v2795, 4294901760
    %v2797 = vsub.f32 %v2795, %v2796
    %v2798 = vand.u32 %v2797, 4294901760
    %2799 = vmatpush1.msra.mxu0 %v2798
    %2800 = vmatprep.subr.mxu0 0.0
    %v2801 = vand.u32 %v1210, 4294901760
    %v2802 = vsub.f32 %v1210, %v2801
    %v2803 = vand.u32 %v2802, 4294901760
    %v2804 = vsub.f32 %v2802, %v2803
    %v2805 = vand.u32 %v2804, 4294901760
    %2806 = vmatpush1.msra.mxu0 %v2805
    %2807 = vmatprep.subr.mxu0 0.0
    %v2808 = vand.u32 %v1209, 4294901760
    %v2809 = vsub.f32 %v1209, %v2808
    %v2810 = vand.u32 %v2809, 4294901760
    %v2811 = vsub.f32 %v2809, %v2810
    %v2812 = vand.u32 %v2811, 4294901760
    %2813 = vmatpush1.msra.mxu0 %v2812
    %2814 = vmatprep.subr.mxu0 0.0
    %v2815 = vand.u32 %v1208, 4294901760
    %v2816 = vsub.f32 %v1208, %v2815
    %v2817 = vand.u32 %v2816, 4294901760
    %v2818 = vsub.f32 %v2816, %v2817
    %v2819 = vand.u32 %v2818, 4294901760
    %2820 = vmatpush1.msra.mxu0 %v2819
    %2821 = vmatprep.subr.mxu0 0.0
    %v2822 = vand.u32 %v1207, 4294901760
    %v2823 = vsub.f32 %v1207, %v2822
    %v2824 = vand.u32 %v2823, 4294901760
    %v2825 = vsub.f32 %v2823, %v2824
    %v2826 = vand.u32 %v2825, 4294901760
    %2827 = vmatpush1.msra.mxu0 %v2826
    %2828 = vmatprep.subr.mxu0 0.0
    %v2829 = vand.u32 %v1206, 4294901760
    %v2830 = vsub.f32 %v1206, %v2829
    %v2831 = vand.u32 %v2830, 4294901760
    %v2832 = vsub.f32 %v2830, %v2831
    %v2833 = vand.u32 %v2832, 4294901760
    %2834 = vmatpush1.msra.mxu0 %v2833
    %2835 = vmatprep.subr.mxu0 0.0
    %v2836 = vand.u32 %v1205, 4294901760
    %v2837 = vsub.f32 %v1205, %v2836
    %v2838 = vand.u32 %v2837, 4294901760
    %v2839 = vsub.f32 %v2837, %v2838
    %v2840 = vand.u32 %v2839, 4294901760
    %2841 = vmatpush1.msra.mxu0 %v2840
    %2842 = vmatprep.subr.mxu0 0.0
    %v2843 = vand.u32 %v1204, 4294901760
    %v2844 = vsub.f32 %v1204, %v2843
    %v2845 = vand.u32 %v2844, 4294901760
    %v2846 = vsub.f32 %v2844, %v2845
    %v2847 = vand.u32 %v2846, 4294901760
    %2848 = vmatpush1.msra.mxu0 %v2847
    %2849 = vmatprep.subr.mxu0 0.0
    %v2850 = vand.u32 %v1203, 4294901760
    %v2851 = vsub.f32 %v1203, %v2850
    %v2852 = vand.u32 %v2851, 4294901760
    %v2853 = vsub.f32 %v2851, %v2852
    %v2854 = vand.u32 %v2853, 4294901760
    %2855 = vmatpush1.msra.mxu0 %v2854
    %2856 = vmatprep.subr.mxu0 0.0
    %2857 = vmatpush2.msra.mxu0 0.0
    %2858 = vmatprep.subr.mxu0 0.0
    %2859 = vmatpush2.msra.mxu0 0.0
    %2860 = vmatprep.subr.mxu0 0.0
    %2861 = vmatpush2.msra.mxu0 0.0
    %2862 = vmatprep.subr.mxu0 0.0
    %2863 = vmatpush2.msra.mxu0 0.0
    %2864 = vmatprep.subr.mxu0 0.0
    %2865 = vmatpush2.msra.mxu0 0.0
    %2866 = vmatprep.subr.mxu0 0.0
    %2867 = vmatpush2.msra.mxu0 0.0
    %2868 = vmatprep.subr.mxu0 0.0
    %2869 = vmatpush2.msra.mxu0 0.0
    %2870 = vmatprep.subr.mxu0 0.0
    %2871 = vmatpush2.msra.mxu0 0.0
    %2872 = vmatprep.subr.mxu0 0.0
    %2873 = vmatpush2.msra.mxu0 0.0
    %2874 = vmatprep.subr.mxu0 0.0
    %2875 = vmatpush2.msra.mxu0 0.0
    %2876 = vmatprep.subr.mxu0 0.0
    %2877 = vmatpush2.msra.mxu0 0.0
    %2878 = vmatprep.subr.mxu0 0.0
    %2879 = vmatpush2.msra.mxu0 0.0
    %2880 = vmatprep.subr.mxu0 0.0
    %2881 = vmatpush2.msra.mxu0 0.0
    %2882 = vmatprep.subr.mxu0 0.0
    %2883 = vmatpush2.msra.mxu0 0.0
    %2884 = vmatprep.subr.mxu0 0.0
    %2885 = vmatpush2.msra.mxu0 0.0
    %2886 = vmatprep.subr.mxu0 0.0
    %2887 = vmatpush2.msra.mxu0 0.0
    %2888 = vmatprep.mubr.f32.mxu0 0.0
    %v2889 = vand.u32 %v2646, 4294901760
    %2890 = vmatmul.mubr.f32.gmra.mxu0 %v2889
    %v2891 = vpop.f32.mrf.mxu0
    %v2892 = vadd.f32 %v2741, %v2891
    %v2893 = vpop.f32.mrf.mxu0
    %2894 = vdwg.mxu0
    %2895 = vmatprep.subr.mxu0 0.0
    %v2896 = vand.u32 %v1218, 4294901760
    %v2897 = vsub.f32 %v1218, %v2896
    %2898 = vmatpush1.msra.mxu0 %v2897
    %2899 = vmatprep.subr.mxu0 0.0
    %v2900 = vand.u32 %v1217, 4294901760
    %v2901 = vsub.f32 %v1217, %v2900
    %2902 = vmatpush1.msra.mxu0 %v2901
    %2903 = vmatprep.subr.mxu0 0.0
    %v2904 = vand.u32 %v1216, 4294901760
    %v2905 = vsub.f32 %v1216, %v2904
    %2906 = vmatpush1.msra.mxu0 %v2905
    %2907 = vmatprep.subr.mxu0 0.0
    %v2908 = vand.u32 %v1215, 4294901760
    %v2909 = vsub.f32 %v1215, %v2908
    %2910 = vmatpush1.msra.mxu0 %v2909
    %2911 = vmatprep.subr.mxu0 0.0
    %v2912 = vand.u32 %v1214, 4294901760
    %v2913 = vsub.f32 %v1214, %v2912
    %2914 = vmatpush1.msra.mxu0 %v2913
    %2915 = vmatprep.subr.mxu0 0.0
    %v2916 = vand.u32 %v1213, 4294901760
    %v2917 = vsub.f32 %v1213, %v2916
    %2918 = vmatpush1.msra.mxu0 %v2917
    %2919 = vmatprep.subr.mxu0 0.0
    %v2920 = vand.u32 %v1212, 4294901760
    %v2921 = vsub.f32 %v1212, %v2920
    %2922 = vmatpush1.msra.mxu0 %v2921
    %2923 = vmatprep.subr.mxu0 0.0
    %v2924 = vand.u32 %v1211, 4294901760
    %v2925 = vsub.f32 %v1211, %v2924
    %2926 = vmatpush1.msra.mxu0 %v2925
    %2927 = vmatprep.subr.mxu0 0.0
    %v2928 = vand.u32 %v1210, 4294901760
    %v2929 = vsub.f32 %v1210, %v2928
    %2930 = vmatpush1.msra.mxu0 %v2929
    %2931 = vmatprep.subr.mxu0 0.0
    %v2932 = vand.u32 %v1209, 4294901760
    %v2933 = vsub.f32 %v1209, %v2932
    %2934 = vmatpush1.msra.mxu0 %v2933
    %2935 = vmatprep.subr.mxu0 0.0
    %v2936 = vand.u32 %v1208, 4294901760
    %v2937 = vsub.f32 %v1208, %v2936
    %2938 = vmatpush1.msra.mxu0 %v2937
    %2939 = vmatprep.subr.mxu0 0.0
    %v2940 = vand.u32 %v1207, 4294901760
    %v2941 = vsub.f32 %v1207, %v2940
    %2942 = vmatpush1.msra.mxu0 %v2941
    %2943 = vmatprep.subr.mxu0 0.0
    %v2944 = vand.u32 %v1206, 4294901760
    %v2945 = vsub.f32 %v1206, %v2944
    %2946 = vmatpush1.msra.mxu0 %v2945
    %2947 = vmatprep.subr.mxu0 0.0
    %v2948 = vand.u32 %v1205, 4294901760
    %v2949 = vsub.f32 %v1205, %v2948
    %2950 = vmatpush1.msra.mxu0 %v2949
    %2951 = vmatprep.subr.mxu0 0.0
    %v2952 = vand.u32 %v1204, 4294901760
    %v2953 = vsub.f32 %v1204, %v2952
    %2954 = vmatpush1.msra.mxu0 %v2953
    %2955 = vmatprep.subr.mxu0 0.0
    %v2956 = vand.u32 %v1203, 4294901760
    %v2957 = vsub.f32 %v1203, %v2956
    %2958 = vmatpush1.msra.mxu0 %v2957
    %2959 = vmatprep.subr.mxu0 0.0
    %2960 = vmatpush2.msra.mxu0 0.0
    %2961 = vmatprep.subr.mxu0 0.0
    %2962 = vmatpush2.msra.mxu0 0.0
    %2963 = vmatprep.subr.mxu0 0.0
    %2964 = vmatpush2.msra.mxu0 0.0
    %2965 = vmatprep.subr.mxu0 0.0
    %2966 = vmatpush2.msra.mxu0 0.0
    %2967 = vmatprep.subr.mxu0 0.0
    %2968 = vmatpush2.msra.mxu0 0.0
    %2969 = vmatprep.subr.mxu0 0.0
    %2970 = vmatpush2.msra.mxu0 0.0
    %2971 = vmatprep.subr.mxu0 0.0
    %2972 = vmatpush2.msra.mxu0 0.0
    %2973 = vmatprep.subr.mxu0 0.0
    %2974 = vmatpush2.msra.mxu0 0.0
    %2975 = vmatprep.subr.mxu0 0.0
    %2976 = vmatpush2.msra.mxu0 0.0
    %2977 = vmatprep.subr.mxu0 0.0
    %2978 = vmatpush2.msra.mxu0 0.0
    %2979 = vmatprep.subr.mxu0 0.0
    %2980 = vmatpush2.msra.mxu0 0.0
    %2981 = vmatprep.subr.mxu0 0.0
    %2982 = vmatpush2.msra.mxu0 0.0
    %2983 = vmatprep.subr.mxu0 0.0
    %2984 = vmatpush2.msra.mxu0 0.0
    %2985 = vmatprep.subr.mxu0 0.0
    %2986 = vmatpush2.msra.mxu0 0.0
    %2987 = vmatprep.subr.mxu0 0.0
    %2988 = vmatpush2.msra.mxu0 0.0
    %2989 = vmatprep.subr.mxu0 0.0
    %2990 = vmatpush2.msra.mxu0 0.0
    %2991 = vmatprep.mubr.f32.mxu0 0.0
    %v2992 = vand.u32 %v2646, 4294901760
    %v2993 = vsub.f32 %v2646, %v2992
    %2994 = vmatmul.mubr.f32.gmra.mxu0 %v2993
    %v2995 = vpop.f32.mrf.mxu0
    %v2996 = vadd.f32 %v2892, %v2995
    %v2997 = vpop.f32.mrf.mxu0
    %2998 = vdwg.mxu0
    %2999 = vmatprep.subr.mxu0 0.0
    %v3000 = vand.u32 %v1218, 4294901760
    %3001 = vmatpush1.msra.mxu0 %v3000
    %3002 = vmatprep.subr.mxu0 0.0
    %v3003 = vand.u32 %v1217, 4294901760
    %3004 = vmatpush1.msra.mxu0 %v3003
    %3005 = vmatprep.subr.mxu0 0.0
    %v3006 = vand.u32 %v1216, 4294901760
    %3007 = vmatpush1.msra.mxu0 %v3006
    %3008 = vmatprep.subr.mxu0 0.0
    %v3009 = vand.u32 %v1215, 4294901760
    %3010 = vmatpush1.msra.mxu0 %v3009
    %3011 = vmatprep.subr.mxu0 0.0
    %v3012 = vand.u32 %v1214, 4294901760
    %3013 = vmatpush1.msra.mxu0 %v3012
    %3014 = vmatprep.subr.mxu0 0.0
    %v3015 = vand.u32 %v1213, 4294901760
    %3016 = vmatpush1.msra.mxu0 %v3015
    %3017 = vmatprep.subr.mxu0 0.0
    %v3018 = vand.u32 %v1212, 4294901760
    %3019 = vmatpush1.msra.mxu0 %v3018
    %3020 = vmatprep.subr.mxu0 0.0
    %v3021 = vand.u32 %v1211, 4294901760
    %3022 = vmatpush1.msra.mxu0 %v3021
    %3023 = vmatprep.subr.mxu0 0.0
    %v3024 = vand.u32 %v1210, 4294901760
    %3025 = vmatpush1.msra.mxu0 %v3024
    %3026 = vmatprep.subr.mxu0 0.0
    %v3027 = vand.u32 %v1209, 4294901760
    %3028 = vmatpush1.msra.mxu0 %v3027
    %3029 = vmatprep.subr.mxu0 0.0
    %v3030 = vand.u32 %v1208, 4294901760
    %3031 = vmatpush1.msra.mxu0 %v3030
    %3032 = vmatprep.subr.mxu0 0.0
    %v3033 = vand.u32 %v1207, 4294901760
    %3034 = vmatpush1.msra.mxu0 %v3033
    %3035 = vmatprep.subr.mxu0 0.0
    %v3036 = vand.u32 %v1206, 4294901760
    %3037 = vmatpush1.msra.mxu0 %v3036
    %3038 = vmatprep.subr.mxu0 0.0
    %v3039 = vand.u32 %v1205, 4294901760
    %3040 = vmatpush1.msra.mxu0 %v3039
    %3041 = vmatprep.subr.mxu0 0.0
    %v3042 = vand.u32 %v1204, 4294901760
    %3043 = vmatpush1.msra.mxu0 %v3042
    %3044 = vmatprep.subr.mxu0 0.0
    %v3045 = vand.u32 %v1203, 4294901760
    %3046 = vmatpush1.msra.mxu0 %v3045
    %3047 = vmatprep.subr.mxu0 0.0
    %3048 = vmatpush2.msra.mxu0 0.0
    %3049 = vmatprep.subr.mxu0 0.0
    %3050 = vmatpush2.msra.mxu0 0.0
    %3051 = vmatprep.subr.mxu0 0.0
    %3052 = vmatpush2.msra.mxu0 0.0
    %3053 = vmatprep.subr.mxu0 0.0
    %3054 = vmatpush2.msra.mxu0 0.0
    %3055 = vmatprep.subr.mxu0 0.0
    %3056 = vmatpush2.msra.mxu0 0.0
    %3057 = vmatprep.subr.mxu0 0.0
    %3058 = vmatpush2.msra.mxu0 0.0
    %3059 = vmatprep.subr.mxu0 0.0
    %3060 = vmatpush2.msra.mxu0 0.0
    %3061 = vmatprep.subr.mxu0 0.0
    %3062 = vmatpush2.msra.mxu0 0.0
    %3063 = vmatprep.subr.mxu0 0.0
    %3064 = vmatpush2.msra.mxu0 0.0
    %3065 = vmatprep.subr.mxu0 0.0
    %3066 = vmatpush2.msra.mxu0 0.0
    %3067 = vmatprep.subr.mxu0 0.0
    %3068 = vmatpush2.msra.mxu0 0.0
    %3069 = vmatprep.subr.mxu0 0.0
    %3070 = vmatpush2.msra.mxu0 0.0
    %3071 = vmatprep.subr.mxu0 0.0
    %3072 = vmatpush2.msra.mxu0 0.0
    %3073 = vmatprep.subr.mxu0 0.0
    %3074 = vmatpush2.msra.mxu0 0.0
    %3075 = vmatprep.subr.mxu0 0.0
    %3076 = vmatpush2.msra.mxu0 0.0
    %3077 = vmatprep.subr.mxu0 0.0
    %3078 = vmatpush2.msra.mxu0 0.0
    %3079 = vmatprep.mubr.f32.mxu0 0.0
    %v3080 = vand.u32 %v2646, 4294901760
    %v3081 = vsub.f32 %v2646, %v3080
    %v3082 = vand.u32 %v3081, 4294901760
    %3083 = vmatmul.mubr.f32.gmra.mxu0 %v3082
    %v3084 = vpop.f32.mrf.mxu0
    %v3085 = vadd.f32 %v2996, %v3084
    %v3086 = vpop.f32.mrf.mxu0
    %3087 = vdwg.mxu0
    %3088 = vmatprep.subr.mxu0 0.0
    %v3089 = vand.u32 %v1218, 4294901760
    %v3090 = vsub.f32 %v1218, %v3089
    %v3091 = vand.u32 %v3090, 4294901760
    %3092 = vmatpush1.msra.mxu0 %v3091
    %3093 = vmatprep.subr.mxu0 0.0
    %v3094 = vand.u32 %v1217, 4294901760
    %v3095 = vsub.f32 %v1217, %v3094
    %v3096 = vand.u32 %v3095, 4294901760
    %3097 = vmatpush1.msra.mxu0 %v3096
    %3098 = vmatprep.subr.mxu0 0.0
    %v3099 = vand.u32 %v1216, 4294901760
    %v3100 = vsub.f32 %v1216, %v3099
    %v3101 = vand.u32 %v3100, 4294901760
    %3102 = vmatpush1.msra.mxu0 %v3101
    %3103 = vmatprep.subr.mxu0 0.0
    %v3104 = vand.u32 %v1215, 4294901760
    %v3105 = vsub.f32 %v1215, %v3104
    %v3106 = vand.u32 %v3105, 4294901760
    %3107 = vmatpush1.msra.mxu0 %v3106
    %3108 = vmatprep.subr.mxu0 0.0
    %v3109 = vand.u32 %v1214, 4294901760
    %v3110 = vsub.f32 %v1214, %v3109
    %v3111 = vand.u32 %v3110, 4294901760
    %3112 = vmatpush1.msra.mxu0 %v3111
    %3113 = vmatprep.subr.mxu0 0.0
    %v3114 = vand.u32 %v1213, 4294901760
    %v3115 = vsub.f32 %v1213, %v3114
    %v3116 = vand.u32 %v3115, 4294901760
    %3117 = vmatpush1.msra.mxu0 %v3116
    %3118 = vmatprep.subr.mxu0 0.0
    %v3119 = vand.u32 %v1212, 4294901760
    %v3120 = vsub.f32 %v1212, %v3119
    %v3121 = vand.u32 %v3120, 4294901760
    %3122 = vmatpush1.msra.mxu0 %v3121
    %3123 = vmatprep.subr.mxu0 0.0
    %v3124 = vand.u32 %v1211, 4294901760
    %v3125 = vsub.f32 %v1211, %v3124
    %v3126 = vand.u32 %v3125, 4294901760
    %3127 = vmatpush1.msra.mxu0 %v3126
    %3128 = vmatprep.subr.mxu0 0.0
    %v3129 = vand.u32 %v1210, 4294901760
    %v3130 = vsub.f32 %v1210, %v3129
    %v3131 = vand.u32 %v3130, 4294901760
    %3132 = vmatpush1.msra.mxu0 %v3131
    %3133 = vmatprep.subr.mxu0 0.0
    %v3134 = vand.u32 %v1209, 4294901760
    %v3135 = vsub.f32 %v1209, %v3134
    %v3136 = vand.u32 %v3135, 4294901760
    %3137 = vmatpush1.msra.mxu0 %v3136
    %3138 = vmatprep.subr.mxu0 0.0
    %v3139 = vand.u32 %v1208, 4294901760
    %v3140 = vsub.f32 %v1208, %v3139
    %v3141 = vand.u32 %v3140, 4294901760
    %3142 = vmatpush1.msra.mxu0 %v3141
    %3143 = vmatprep.subr.mxu0 0.0
    %v3144 = vand.u32 %v1207, 4294901760
    %v3145 = vsub.f32 %v1207, %v3144
    %v3146 = vand.u32 %v3145, 4294901760
    %3147 = vmatpush1.msra.mxu0 %v3146
    %3148 = vmatprep.subr.mxu0 0.0
    %v3149 = vand.u32 %v1206, 4294901760
    %v3150 = vsub.f32 %v1206, %v3149
    %v3151 = vand.u32 %v3150, 4294901760
    %3152 = vmatpush1.msra.mxu0 %v3151
    %3153 = vmatprep.subr.mxu0 0.0
    %v3154 = vand.u32 %v1205, 4294901760
    %v3155 = vsub.f32 %v1205, %v3154
    %v3156 = vand.u32 %v3155, 4294901760
    %3157 = vmatpush1.msra.mxu0 %v3156
    %3158 = vmatprep.subr.mxu0 0.0
    %v3159 = vand.u32 %v1204, 4294901760
    %v3160 = vsub.f32 %v1204, %v3159
    %v3161 = vand.u32 %v3160, 4294901760
    %3162 = vmatpush1.msra.mxu0 %v3161
    %3163 = vmatprep.subr.mxu0 0.0
    %v3164 = vand.u32 %v1203, 4294901760
    %v3165 = vsub.f32 %v1203, %v3164
    %v3166 = vand.u32 %v3165, 4294901760
    %3167 = vmatpush1.msra.mxu0 %v3166
    %3168 = vmatprep.subr.mxu0 0.0
    %3169 = vmatpush2.msra.mxu0 0.0
    %3170 = vmatprep.subr.mxu0 0.0
    %3171 = vmatpush2.msra.mxu0 0.0
    %3172 = vmatprep.subr.mxu0 0.0
    %3173 = vmatpush2.msra.mxu0 0.0
    %3174 = vmatprep.subr.mxu0 0.0
    %3175 = vmatpush2.msra.mxu0 0.0
    %3176 = vmatprep.subr.mxu0 0.0
    %3177 = vmatpush2.msra.mxu0 0.0
    %3178 = vmatprep.subr.mxu0 0.0
    %3179 = vmatpush2.msra.mxu0 0.0
    %3180 = vmatprep.subr.mxu0 0.0
    %3181 = vmatpush2.msra.mxu0 0.0
    %3182 = vmatprep.subr.mxu0 0.0
    %3183 = vmatpush2.msra.mxu0 0.0
    %3184 = vmatprep.subr.mxu0 0.0
    %3185 = vmatpush2.msra.mxu0 0.0
    %3186 = vmatprep.subr.mxu0 0.0
    %3187 = vmatpush2.msra.mxu0 0.0
    %3188 = vmatprep.subr.mxu0 0.0
    %3189 = vmatpush2.msra.mxu0 0.0
    %3190 = vmatprep.subr.mxu0 0.0
    %3191 = vmatpush2.msra.mxu0 0.0
    %3192 = vmatprep.subr.mxu0 0.0
    %3193 = vmatpush2.msra.mxu0 0.0
    %3194 = vmatprep.subr.mxu0 0.0
    %3195 = vmatpush2.msra.mxu0 0.0
    %3196 = vmatprep.subr.mxu0 0.0
    %3197 = vmatpush2.msra.mxu0 0.0
    %3198 = vmatprep.subr.mxu0 0.0
    %3199 = vmatpush2.msra.mxu0 0.0
    %3200 = vmatprep.mubr.f32.mxu0 0.0
    %v3201 = vand.u32 %v2646, 4294901760
    %3202 = vmatmul.mubr.f32.gmra.mxu0 %v3201
    %v3203 = vpop.f32.mrf.mxu0
    %v3204 = vadd.f32 %v3085, %v3203
    %v3205 = vpop.f32.mrf.mxu0
    %3206 = vdwg.mxu0
    %3207 = vmatprep.subr.mxu0 0.0
    %v3208 = vand.u32 %v1218, 4294901760
    %3209 = vmatpush1.msra.mxu0 %v3208
    %3210 = vmatprep.subr.mxu0 0.0
    %v3211 = vand.u32 %v1217, 4294901760
    %3212 = vmatpush1.msra.mxu0 %v3211
    %3213 = vmatprep.subr.mxu0 0.0
    %v3214 = vand.u32 %v1216, 4294901760
    %3215 = vmatpush1.msra.mxu0 %v3214
    %3216 = vmatprep.subr.mxu0 0.0
    %v3217 = vand.u32 %v1215, 4294901760
    %3218 = vmatpush1.msra.mxu0 %v3217
    %3219 = vmatprep.subr.mxu0 0.0
    %v3220 = vand.u32 %v1214, 4294901760
    %3221 = vmatpush1.msra.mxu0 %v3220
    %3222 = vmatprep.subr.mxu0 0.0
    %v3223 = vand.u32 %v1213, 4294901760
    %3224 = vmatpush1.msra.mxu0 %v3223
    %3225 = vmatprep.subr.mxu0 0.0
    %v3226 = vand.u32 %v1212, 4294901760
    %3227 = vmatpush1.msra.mxu0 %v3226
    %3228 = vmatprep.subr.mxu0 0.0
    %v3229 = vand.u32 %v1211, 4294901760
    %3230 = vmatpush1.msra.mxu0 %v3229
    %3231 = vmatprep.subr.mxu0 0.0
    %v3232 = vand.u32 %v1210, 4294901760
    %3233 = vmatpush1.msra.mxu0 %v3232
    %3234 = vmatprep.subr.mxu0 0.0
    %v3235 = vand.u32 %v1209, 4294901760
    %3236 = vmatpush1.msra.mxu0 %v3235
    %3237 = vmatprep.subr.mxu0 0.0
    %v3238 = vand.u32 %v1208, 4294901760
    %3239 = vmatpush1.msra.mxu0 %v3238
    %3240 = vmatprep.subr.mxu0 0.0
    %v3241 = vand.u32 %v1207, 4294901760
    %3242 = vmatpush1.msra.mxu0 %v3241
    %3243 = vmatprep.subr.mxu0 0.0
    %v3244 = vand.u32 %v1206, 4294901760
    %3245 = vmatpush1.msra.mxu0 %v3244
    %3246 = vmatprep.subr.mxu0 0.0
    %v3247 = vand.u32 %v1205, 4294901760
    %3248 = vmatpush1.msra.mxu0 %v3247
    %3249 = vmatprep.subr.mxu0 0.0
    %v3250 = vand.u32 %v1204, 4294901760
    %3251 = vmatpush1.msra.mxu0 %v3250
    %3252 = vmatprep.subr.mxu0 0.0
    %v3253 = vand.u32 %v1203, 4294901760
    %3254 = vmatpush1.msra.mxu0 %v3253
    %3255 = vmatprep.subr.mxu0 0.0
    %3256 = vmatpush2.msra.mxu0 0.0
    %3257 = vmatprep.subr.mxu0 0.0
    %3258 = vmatpush2.msra.mxu0 0.0
    %3259 = vmatprep.subr.mxu0 0.0
    %3260 = vmatpush2.msra.mxu0 0.0
    %3261 = vmatprep.subr.mxu0 0.0
    %3262 = vmatpush2.msra.mxu0 0.0
    %3263 = vmatprep.subr.mxu0 0.0
    %3264 = vmatpush2.msra.mxu0 0.0
    %3265 = vmatprep.subr.mxu0 0.0
    %3266 = vmatpush2.msra.mxu0 0.0
    %3267 = vmatprep.subr.mxu0 0.0
    %3268 = vmatpush2.msra.mxu0 0.0
    %3269 = vmatprep.subr.mxu0 0.0
    %3270 = vmatpush2.msra.mxu0 0.0
    %3271 = vmatprep.subr.mxu0 0.0
    %3272 = vmatpush2.msra.mxu0 0.0
    %3273 = vmatprep.subr.mxu0 0.0
    %3274 = vmatpush2.msra.mxu0 0.0
    %3275 = vmatprep.subr.mxu0 0.0
    %3276 = vmatpush2.msra.mxu0 0.0
    %3277 = vmatprep.subr.mxu0 0.0
    %3278 = vmatpush2.msra.mxu0 0.0
    %3279 = vmatprep.subr.mxu0 0.0
    %3280 = vmatpush2.msra.mxu0 0.0
    %3281 = vmatprep.subr.mxu0 0.0
    %3282 = vmatpush2.msra.mxu0 0.0
    %3283 = vmatprep.subr.mxu0 0.0
    %3284 = vmatpush2.msra.mxu0 0.0
    %3285 = vmatprep.subr.mxu0 0.0
    %3286 = vmatpush2.msra.mxu0 0.0
    %3287 = vmatprep.mubr.f32.mxu0 0.0
    %v3288 = vand.u32 %v2646, 4294901760
    %3289 = vmatmul.mubr.f32.gmra.mxu0 %v3288
    %v3290 = vpop.f32.mrf.mxu0
    %v3291 = vadd.f32 %v3204, %v3290
    %v3292 = vpop.f32.mrf.mxu0
    %3293 = vdwg.mxu0
    %3294 = vst [vmem:[#allocation14] sm:$0xff] %v3291
    // Predicated region
    $region74: #{tpu_custom_call.1} parent=1 // pred_check
      _
    $region75: #{tpu_custom_call.1} parent=1 // pred_check_branch
      %3296 = sbr.rel (0) target = $region77
    $region76: #{tpu_custom_call.1} parent=1 // pred_region
      %s3298 = ssub.s32 128, 128
      %3299 = vsyncadd [#allocation4], %s3298
      %s3301 = sshll.u32 [#allocation14], 4
      %s3302 = int_to_ptr.vmem [resolvable:$true] %s3301
      %3304 = dma.vmem_to_hbm [thread:$0]  %s3302, 128, %s11, [#allocation4]
    $region77: #{tpu_custom_call.1} parent=1 // pred_fallthru
      _
    // Predicated region
    $region78: #{tpu_custom_call.1} parent=1 // pred_check
      _
    $region79: #{tpu_custom_call.1} parent=1 // pred_check_branch
      %3306 = sbr.rel (0) target = $region81
    $region80: #{tpu_custom_call.1} parent=1 // pred_region
      %s3308 = ssub.s32 128, 128
      %3309 = vsyncadd [#allocation16], %s3308
      %s3311 = sshll.u32 [#allocation15], 4
      %s3312 = int_to_ptr.vmem [resolvable:$true] %s3311
      %3314 = dma.vmem_to_hbm [thread:$0]  %s3312, 128, %s12, [#allocation16]
    $region81: #{tpu_custom_call.1} parent=1 // pred_fallthru
      _
    // Predicated region
    $region82: #{tpu_custom_call.1} parent=1 // pred_check
      _
    $region83: #{tpu_custom_call.1} parent=1 // pred_check_branch
      %3316 = sbr.rel (0) target = $region85
    $region84: #{tpu_custom_call.1} parent=1 // pred_region
      %3317 = dma.done [#allocation4], 128
    $region85: #{tpu_custom_call.1} parent=1 // pred_fallthru
      _
    // Predicated region
    $region86: #{tpu_custom_call.1} parent=1 // pred_check
      _
    $region87: #{tpu_custom_call.1} parent=1 // pred_check_branch
      %3319 = sbr.rel (0) target = $region89
    $region88: #{tpu_custom_call.1} parent=1 // pred_region
      %3320 = dma.done [#allocation16], 128
    $region89: #{tpu_custom_call.1} parent=1 // pred_fallthru
      _
    %3321 = vsyncpa [#allocation3], 1
    %3322 = vsyncpa [#allocation6], 1
    %3323 = vsyncpa [#allocation9], 1
    %3324 = vsyncpa [#allocation12], 1
    %3325 = vsyncpa [#allocation4], 1
    %3326 = vsyncpa [#allocation16], 1

</llo_original>
